<compile_context>
chip_gen: v7x
topology: tpu7x:2x2x1
jax: 0.10.0
libtpu: 0.0.40
codegen_flags: <defaults>
</compile_context>

<pallas_src>
import jax
import jax.numpy as jnp
from jax.experimental import pallas as pl
from jax.experimental.pallas import tpu as pltpu


# --------------------------------------------------------------------------- #
# Kernel
# --------------------------------------------------------------------------- #
def residual_se_kernel(x_ref, t1_ref, sb1_ref, t2_ref, sb2_ref, pool_ref,
                       exp_ref, fc1w_ref, fc1b_ref, fc2w_ref, fc2b_ref,
                       out_ref, hpad_ref):
    bn, Hp, _ = x_ref.shape
    H = Hp - 2
    M = bn * H
    WCout = out_ref.shape[-1]          # W * Cout  (lane-dense width)
    WpCout = hpad_ref.shape[-1]        # (W + 2) * Cout

    # ---- conv1 (+ fused 1x1 residual projection): 3 dy-slab matmuls --------
    # fused columns = [ res (W*Cout) | conv1-with-zero-W-borders (Wp*Cout) ]
    acc = None
    for ky in range(3):
        lhs = x_ref[:, ky:ky + H, :].reshape(M, x_ref.shape[-1])     # bf16
        part = jnp.dot(lhs, t1_ref[ky], preferred_element_type=jnp.float32)
        acc = part if acc is None else acc + part
    res = acc[:, :WCout]                                             # f32
    h1p = jnp.maximum(acc[:, WCout:] * sb1_ref[0:1, :] + sb1_ref[1:2, :], 0.0)

    # ---- padded h1 scratch: one wide interior store + 2 zero halo rows -----
    zrow = jnp.zeros((bn, 1, WpCout), hpad_ref.dtype)
    hpad_ref[:, 0:1, :] = zrow
    hpad_ref[:, H + 1:H + 2, :] = zrow
    hpad_ref[:, 1:H + 1, :] = h1p.astype(hpad_ref.dtype).reshape(bn, H, WpCout)

    # ---- conv2: 3 dy-slab matmuls off the bf16 padded scratch --------------
    acc2 = None
    for ky in range(3):
        lhs = hpad_ref[:, ky:ky + H, :].reshape(M, WpCout)           # bf16
        part = jnp.dot(lhs, t2_ref[ky], preferred_element_type=jnp.float32)
        acc2 = part if acc2 is None else acc2 + part
    h2 = (acc2 * sb2_ref[0:1, :] + sb2_ref[1:2, :]).reshape(bn, H, WCout)

    # ---- Squeeze-Excitation (per sample) ------------------------------------
    # global mean: sum over H (sublane reduce) then 1/(H*W)-scaled W-pool matmul
    se = jnp.dot(jnp.sum(h2, axis=1), pool_ref[...],
                 preferred_element_type=jnp.float32)                 # (bn, Cout)
    z = jnp.maximum(jnp.dot(se, fc1w_ref[...],
                            preferred_element_type=jnp.float32) + fc1b_ref[...],
                    0.0)
    gate = jax.nn.sigmoid(jnp.dot(z, fc2w_ref[...],
                                  preferred_element_type=jnp.float32)
                          + fc2b_ref[...])                           # (bn, Cout)
    gate_flat = jnp.dot(gate, exp_ref[...],
                        preferred_element_type=jnp.float32)          # (bn, W*Cout)

    out = jnp.maximum(h2 * gate_flat[:, None, :] + res.reshape(bn, H, WCout),
                      0.0)
    out_ref[...] = out                                               # lane-dense


# --------------------------------------------------------------------------- #
# Wrapper helpers
# --------------------------------------------------------------------------- #
def _toeplitz_conv_weight(w, W):
    """w: (3, 3, Cin, Cout) HWIO -> (3, Wp*Cin, W*Cout) lowered weight.

    T[ky, xa*Cin+ci, w*Cout+co] = w[ky, xa-w, ci, co] if 0 <= xa-w <= 2 else 0.
    """
    kh, kw, Cin, Cout = w.shape
    Wp = W + 2
    T = jnp.zeros((kh, Wp * Cin, W * Cout), jnp.float32)
    for kx in range(kw):
        for wi in range(W):
            xa = wi + kx
            T = T.at[:, xa * Cin:(xa + 1) * Cin,
                     wi * Cout:(wi + 1) * Cout].set(w[:, kx])
    return T


def _pick_batch_block(N, max_bn=8):
    bn = 1
    for cand in range(1, min(N, max_bn) + 1):
        if N % cand == 0:
            bn = cand
    return bn


def _pick_vmem_limit():
    try:
        cap = int(pltpu.get_tpu_info().vmem_capacity_bytes)
    except Exception:
        cap = 64 * 1024 * 1024          # conservative default (v7x-sized)
    return int(min(96 * 1024 * 1024, max(32 * 1024 * 1024, cap // 2)))


# --------------------------------------------------------------------------- #
# Public wrapper: NCHW in / NCHW out (matches the PyTorch module)
# --------------------------------------------------------------------------- #
def residual_se_block(x_nchw, params, *, max_batch_block=8):
    (w1, sb1, w2, sb2, fc1w, fc1b, fc2w, fc2b, wproj) = params
    N, Cin, H, W = x_nchw.shape
    Cout = w1.shape[-1]
    Hp, Wp = H + 2, W + 2
    if wproj is None:                   # identity shortcut when in_ch == out_ch
        wproj = jnp.eye(Cin, Cout, dtype=jnp.float32)

    # ---- layout glue: NCHW -> lane-flat padded NHWC, bf16 at rest ----------
    x_nhwc = jnp.transpose(x_nchw, (0, 2, 3, 1)).astype(jnp.float32)
    xflat = jnp.pad(x_nhwc, ((0, 0), (1, 1), (1, 1), (0, 0)))
    xflat = xflat.reshape(N, Hp, Wp * Cin).astype(jnp.bfloat16)

    # ---- lowered (Toeplitz) conv weights ------------------------------------
    T1 = _toeplitz_conv_weight(w1, W)                         # (3, Wp*Cin, W*Cout)
    # conv1 output columns carry the zero W-borders so the h1 slab store is
    # a single aligned full-width write.
    T1p = jnp.zeros((3, Wp * Cin, Wp * Cout), jnp.float32)
    T1p = T1p.at[:, :, Cout:(W + 1) * Cout].set(T1)
    # residual 1x1 projection fused as extra columns (center tap ky=1 only).
    R = jnp.zeros((Wp * Cin, W * Cout), jnp.float32)
    for wi in range(W):
        R = R.at[(wi + 1) * Cin:(wi + 2) * Cin,
                 wi * Cout:(wi + 1) * Cout].set(wproj)
    Rstack = jnp.stack([jnp.zeros_like(R), R, jnp.zeros_like(R)], axis=0)
    T1f = jnp.concatenate([Rstack, T1p], axis=-1).astype(jnp.bfloat16)
    T2 = _toeplitz_conv_weight(w2, W).astype(jnp.bfloat16)    # (3, Wp*Cout, W*Cout)

    # BN scale/bias tiled to the lane-flat layout (zeros on the W borders).
    sb1p = jnp.zeros((2, Wp * Cout), jnp.float32)
    sb1p = sb1p.at[:, Cout:(W + 1) * Cout].set(jnp.tile(sb1, (1, W)))
    sb2t = jnp.tile(sb2, (1, W))                              # (2, W*Cout)

    # SE pooling / gate-expansion matrices (constant 0/1 structure).
    pool = jnp.tile(jnp.eye(Cout, dtype=jnp.float32), (W, 1)) / float(H * W)
    expand = jnp.tile(jnp.eye(Cout, dtype=jnp.float32), (1, W))

    bn = _pick_batch_block(N, max_batch_block)
    grid = (N // bn,)
    vmem_limit = _pick_vmem_limit()

    operands = (xflat, T1f, sb1p, T2, sb2t, pool, expand,
                fc1w, fc1b, fc2w, fc2b)

    def build(single_buffer_weights):
        wkw = ({"pipeline_mode": pl.Buffered(1)}
               if single_buffer_weights else {})

        def wspec(a):
            zero = (0,) * a.ndim
            return pl.BlockSpec(a.shape, lambda n, _z=zero: _z, **wkw)

        in_specs = [pl.BlockSpec((bn, Hp, Wp * Cin), lambda n: (n, 0, 0))]
        in_specs += [wspec(a) for a in operands[1:]]
        return pl.pallas_call(
            residual_se_kernel,
            out_shape=jax.ShapeDtypeStruct((N, H, W * Cout), jnp.float32),
            grid=grid,
            in_specs=in_specs,
            out_specs=pl.BlockSpec((bn, H, W * Cout), lambda n: (n, 0, 0)),
            scratch_shapes=[pltpu.VMEM((bn, Hp, Wp * Cout), jnp.bfloat16)],
            compiler_params=pltpu.CompilerParams(
                dimension_semantics=("parallel",),
                vmem_limit_bytes=vmem_limit),
        )

    try:
        out_flat = build(True)(*operands)
    except Exception:
        # Fallback if pl.Buffered(1) single-buffering is not supported here.
        out_flat = build(False)(*operands)

    out_nhwc = out_flat.reshape(N, H, W, Cout)
    return jnp.transpose(out_nhwc, (0, 3, 1, 2))


# --------------------------------------------------------------------------- #
# Parameters + plain-JAX reference
# --------------------------------------------------------------------------- #
def make_params(key, in_ch, out_ch, reduction=16, eps=1e-5):
    hidden = max(out_ch // reduction, 4)
    ks = jax.random.split(key, 16)

    w1 = 0.1 * jax.random.normal(ks[0], (3, 3, in_ch, out_ch), jnp.float32)   # HWIO
    w2 = 0.1 * jax.random.normal(ks[1], (3, 3, out_ch, out_ch), jnp.float32)  # HWIO

    def bn_fold(kg, kb, km, kv):
        gamma = 1.0 + 0.1 * jax.random.normal(kg, (out_ch,), jnp.float32)
        beta = 0.1 * jax.random.normal(kb, (out_ch,), jnp.float32)
        mean = 0.1 * jax.random.normal(km, (out_ch,), jnp.float32)
        var = 0.5 + jnp.abs(jax.random.normal(kv, (out_ch,), jnp.float32))
        scale = gamma / jnp.sqrt(var + eps)
        bias = beta - mean * scale
        return jnp.stack([scale, bias], axis=0)                               # [2, Cout]

    sb1 = bn_fold(ks[2], ks[3], ks[4], ks[5])
    sb2 = bn_fold(ks[6], ks[7], ks[8], ks[9])

    # nn.Linear weights stored pre-transposed (in, out) so the kernel does x @ W.
    fc1w = 0.2 * jax.random.normal(ks[10], (out_ch, hidden), jnp.float32)
    fc1b = 0.1 * jax.random.normal(ks[11], (1, hidden), jnp.float32)
    fc2w = 0.2 * jax.random.normal(ks[12], (hidden, out_ch), jnp.float32)
    fc2b = 0.1 * jax.random.normal(ks[13], (1, out_ch), jnp.float32)

    # 1x1 residual projection (in_ch != out_ch), no bias.
    wproj = 0.2 * jax.random.normal(ks[14], (in_ch, out_ch), jnp.float32)

    return (w1, sb1, w2, sb2, fc1w, fc1b, fc2w, fc2b, wproj)


def reference_forward(x_nchw, params):
    """Plain-JAX reference (lax convs) with matching bf16 matmul operands."""
    (w1, sb1, w2, sb2, fc1w, fc1b, fc2w, fc2b, wproj) = params
    if wproj is None:
        wproj = jnp.eye(x_nchw.shape[1], w1.shape[-1], dtype=jnp.float32)
    x = jnp.transpose(x_nchw, (0, 2, 3, 1)).astype(jnp.float32)
    xb = x.astype(jnp.bfloat16)

    def conv3x3(a, w):
        return jax.lax.conv_general_dilated(
            a, w, (1, 1), "SAME",
            dimension_numbers=("NHWC", "HWIO", "NHWC"),
            preferred_element_type=jnp.float32)

    h = conv3x3(xb, w1.astype(jnp.bfloat16))
    h = jnp.maximum(h * sb1[0] + sb1[1], 0.0)
    h = conv3x3(h.astype(jnp.bfloat16), w2.astype(jnp.bfloat16))
    h = h * sb2[0] + sb2[1]
    se = jnp.mean(h, axis=(1, 2))
    z = jnp.maximum(se @ fc1w + fc1b, 0.0)
    gate = jax.nn.sigmoid(z @ fc2w + fc2b)
    h = h * gate[:, None, None, :]
    res = jnp.einsum("nhwc,co->nhwo", xb, wproj.astype(jnp.bfloat16),
                     preferred_element_type=jnp.float32)
    out = jnp.maximum(h + res, 0.0)
    return jnp.transpose(out, (0, 3, 1, 2))


if __name__ == "__main__":
    N, Cin, Cout, H, W = 2, 4, 8, 16, 16

    key = jax.random.PRNGKey(0)
    kx, kp = jax.random.split(key)
    x = jax.random.normal(kx, (N, Cin, H, W), jnp.float32)
    params = make_params(kp, Cin, Cout)

    out = jax.block_until_ready(residual_se_block(x, params))
    ref = jax.block_until_ready(reference_forward(x, params))

    assert out.shape == (N, Cout, H, W), out.shape
    max_err = float(jnp.max(jnp.abs(out - ref)))
    assert max_err < 1e-2, max_err
    print("KERNEL_OK")
</pallas_src>

<mosaic_0001>
module attributes {stable_mosaic.version = 11 : i64} {
  func.func @residual_se_kernel(%arg0: i32, %arg1: memref<2x18x72xbf16, #tpu.memory_space<vmem>>, %arg2: memref<3x72x272xbf16, #tpu.memory_space<vmem>>, %arg3: memref<2x144xf32, #tpu.memory_space<vmem>>, %arg4: memref<3x144x128xbf16, #tpu.memory_space<vmem>>, %arg5: memref<2x128xf32, #tpu.memory_space<vmem>>, %arg6: memref<128x8xf32, #tpu.memory_space<vmem>>, %arg7: memref<8x128xf32, #tpu.memory_space<vmem>>, %arg8: memref<8x4xf32, #tpu.memory_space<vmem>>, %arg9: memref<1x4xf32, #tpu.memory_space<vmem>>, %arg10: memref<4x8xf32, #tpu.memory_space<vmem>>, %arg11: memref<1x8xf32, #tpu.memory_space<vmem>>, %arg12: memref<2x16x128xf32, #tpu.memory_space<vmem>>, %arg13: memref<2x18x144xbf16, #tpu.memory_space<vmem>>) attributes {dimension_semantics = [#tpu.dimension_semantics<parallel>], iteration_bounds = array<i64: 1>, scalar_prefetch = 0 : i64, scratch_operands = 1 : i64, tpu.core_type = #tpu.core_type<tc>, window_params = [{transform_indices = @transform_0, window_bounds = array<i64: 2, 18, 72>}, {pipeline_mode = #tpu.pipeline_mode<synchronous>, transform_indices = @transform_1, window_bounds = array<i64: 3, 72, 272>}, {pipeline_mode = #tpu.pipeline_mode<synchronous>, transform_indices = @transform_2, window_bounds = array<i64: 2, 144>}, {pipeline_mode = #tpu.pipeline_mode<synchronous>, transform_indices = @transform_3, window_bounds = array<i64: 3, 144, 128>}, {pipeline_mode = #tpu.pipeline_mode<synchronous>, transform_indices = @transform_4, window_bounds = array<i64: 2, 128>}, {pipeline_mode = #tpu.pipeline_mode<synchronous>, transform_indices = @transform_5, window_bounds = array<i64: 128, 8>}, {pipeline_mode = #tpu.pipeline_mode<synchronous>, transform_indices = @transform_6, window_bounds = array<i64: 8, 128>}, {pipeline_mode = #tpu.pipeline_mode<synchronous>, transform_indices = @transform_7, window_bounds = array<i64: 8, 4>}, {pipeline_mode = #tpu.pipeline_mode<synchronous>, transform_indices = @transform_8, window_bounds = array<i64: 1, 4>}, {pipeline_mode = #tpu.pipeline_mode<synchronous>, transform_indices = @transform_9, window_bounds = array<i64: 4, 8>}, {pipeline_mode = #tpu.pipeline_mode<synchronous>, transform_indices = @transform_10, window_bounds = array<i64: 1, 8>}, {transform_indices = @transform_11, window_bounds = array<i64: 2, 16, 128>}]} {
    %c0 = arith.constant 0 : index
    %c0_0 = arith.constant 0 : index
    %c0_1 = arith.constant 0 : index
    %0 = vector.load %arg1[%c0, %c0_0, %c0_1] : memref<2x18x72xbf16, #tpu.memory_space<vmem>>, vector<2x16x72xbf16>
    %1 = vector.shape_cast %0 : vector<2x16x72xbf16> to vector<32x72xbf16>
    %c0_2 = arith.constant 0 : index
    %c0_3 = arith.constant 0 : index
    %c0_4 = arith.constant 0 : index
    %2 = vector.load %arg2[%c0_2, %c0_3, %c0_4] : memref<3x72x272xbf16, #tpu.memory_space<vmem>>, vector<1x72x272xbf16>
    %3 = vector.shape_cast %2 : vector<1x72x272xbf16> to vector<72x272xbf16>
    %cst = arith.constant dense<0.000000e+00> : vector<32x272xf32>
    %4 = tpu.matmul %1, %3, %cst {dimension_numbers = #tpu.dot_dimension_numbers<[1], [0], [0], [1], [0, 0, 1, 1], [], []>} : vector<32x72xbf16>, vector<72x272xbf16>, vector<32x272xf32> -> vector<32x272xf32>
    %c0_5 = arith.constant 0 : index
    %c1 = arith.constant 1 : index
    %c0_6 = arith.constant 0 : index
    %5 = vector.load %arg1[%c0_5, %c1, %c0_6] : memref<2x18x72xbf16, #tpu.memory_space<vmem>>, vector<2x16x72xbf16>
    %6 = vector.shape_cast %5 : vector<2x16x72xbf16> to vector<32x72xbf16>
    %c1_7 = arith.constant 1 : index
    %c0_8 = arith.constant 0 : index
    %c0_9 = arith.constant 0 : index
    %7 = vector.load %arg2[%c1_7, %c0_8, %c0_9] : memref<3x72x272xbf16, #tpu.memory_space<vmem>>, vector<1x72x272xbf16>
    %8 = vector.shape_cast %7 : vector<1x72x272xbf16> to vector<72x272xbf16>
    %cst_10 = arith.constant dense<0.000000e+00> : vector<32x272xf32>
    %9 = tpu.matmul %6, %8, %cst_10 {dimension_numbers = #tpu.dot_dimension_numbers<[1], [0], [0], [1], [0, 0, 1, 1], [], []>} : vector<32x72xbf16>, vector<72x272xbf16>, vector<32x272xf32> -> vector<32x272xf32>
    %10 = arith.addf %4, %9 : vector<32x272xf32>
    %c0_11 = arith.constant 0 : index
    %c2 = arith.constant 2 : index
    %c0_12 = arith.constant 0 : index
    %11 = vector.load %arg1[%c0_11, %c2, %c0_12] : memref<2x18x72xbf16, #tpu.memory_space<vmem>>, vector<2x16x72xbf16>
    %12 = vector.shape_cast %11 : vector<2x16x72xbf16> to vector<32x72xbf16>
    %c2_13 = arith.constant 2 : index
    %c0_14 = arith.constant 0 : index
    %c0_15 = arith.constant 0 : index
    %13 = vector.load %arg2[%c2_13, %c0_14, %c0_15] : memref<3x72x272xbf16, #tpu.memory_space<vmem>>, vector<1x72x272xbf16>
    %14 = vector.shape_cast %13 : vector<1x72x272xbf16> to vector<72x272xbf16>
    %cst_16 = arith.constant dense<0.000000e+00> : vector<32x272xf32>
    %15 = tpu.matmul %12, %14, %cst_16 {dimension_numbers = #tpu.dot_dimension_numbers<[1], [0], [0], [1], [0, 0, 1, 1], [], []>} : vector<32x72xbf16>, vector<72x272xbf16>, vector<32x272xf32> -> vector<32x272xf32>
    %16 = arith.addf %10, %15 : vector<32x272xf32>
    %17 = vector.extract_strided_slice %16 {offsets = [0, 0], sizes = [32, 128], strides = [1, 1]} : vector<32x272xf32> to vector<32x128xf32>
    %18 = vector.extract_strided_slice %16 {offsets = [0, 128], sizes = [32, 144], strides = [1, 1]} : vector<32x272xf32> to vector<32x144xf32>
    %c0_17 = arith.constant 0 : index
    %c0_18 = arith.constant 0 : index
    %19 = vector.load %arg3[%c0_17, %c0_18] : memref<2x144xf32, #tpu.memory_space<vmem>>, vector<1x144xf32>
    %20 = vector.broadcast %19 : vector<1x144xf32> to vector<32x144xf32>
    %21 = arith.mulf %18, %20 : vector<32x144xf32>
    %c1_19 = arith.constant 1 : index
    %c0_20 = arith.constant 0 : index
    %22 = vector.load %arg3[%c1_19, %c0_20] : memref<2x144xf32, #tpu.memory_space<vmem>>, vector<1x144xf32>
    %23 = vector.broadcast %22 : vector<1x144xf32> to vector<32x144xf32>
    %24 = arith.addf %21, %23 : vector<32x144xf32>
    %cst_21 = arith.constant 0.000000e+00 : f32
    %25 = vector.broadcast %cst_21 : f32 to vector<32x144xf32>
    %26 = arith.maximumf %24, %25 : vector<32x144xf32>
    %cst_22 = arith.constant 0.000000e+00 : bf16
    %27 = vector.broadcast %cst_22 : bf16 to vector<2x1x144xbf16>
    %c0_23 = arith.constant 0 : index
    %c0_24 = arith.constant 0 : index
    %c0_25 = arith.constant 0 : index
    %28 = vector.load %arg13[%c0_23, %c0_24, %c0_25] : memref<2x18x144xbf16, #tpu.memory_space<vmem>>, vector<2x1x144xbf16>
    tpu.vector_store %arg13[%c0_23, %c0_24, %c0_25], %27 {strides = array<i32>} : memref<2x18x144xbf16, #tpu.memory_space<vmem>>, vector<2x1x144xbf16>,
    %c0_26 = arith.constant 0 : index
    %c17 = arith.constant 17 : index
    %c0_27 = arith.constant 0 : index
    %29 = vector.load %arg13[%c0_26, %c17, %c0_27] : memref<2x18x144xbf16, #tpu.memory_space<vmem>>, vector<2x1x144xbf16>
    tpu.vector_store %arg13[%c0_26, %c17, %c0_27], %27 {strides = array<i32>} : memref<2x18x144xbf16, #tpu.memory_space<vmem>>, vector<2x1x144xbf16>,
    %30 = arith.truncf %26 : vector<32x144xf32> to vector<32x144xbf16>
    %31 = vector.shape_cast %30 : vector<32x144xbf16> to vector<2x16x144xbf16>
    %c0_28 = arith.constant 0 : index
    %c1_29 = arith.constant 1 : index
    %c0_30 = arith.constant 0 : index
    %32 = vector.load %arg13[%c0_28, %c1_29, %c0_30] : memref<2x18x144xbf16, #tpu.memory_space<vmem>>, vector<2x16x144xbf16>
    tpu.vector_store %arg13[%c0_28, %c1_29, %c0_30], %31 {strides = array<i32>} : memref<2x18x144xbf16, #tpu.memory_space<vmem>>, vector<2x16x144xbf16>,
    %c0_31 = arith.constant 0 : index
    %c0_32 = arith.constant 0 : index
    %c0_33 = arith.constant 0 : index
    %33 = vector.load %arg13[%c0_31, %c0_32, %c0_33] : memref<2x18x144xbf16, #tpu.memory_space<vmem>>, vector<2x16x144xbf16>
    %34 = vector.shape_cast %33 : vector<2x16x144xbf16> to vector<32x144xbf16>
    %c0_34 = arith.constant 0 : index
    %c0_35 = arith.constant 0 : index
    %c0_36 = arith.constant 0 : index
    %35 = vector.load %arg4[%c0_34, %c0_35, %c0_36] : memref<3x144x128xbf16, #tpu.memory_space<vmem>>, vector<1x144x128xbf16>
    %36 = vector.shape_cast %35 : vector<1x144x128xbf16> to vector<144x128xbf16>
    %cst_37 = arith.constant dense<0.000000e+00> : vector<32x128xf32>
    %37 = tpu.matmul %34, %36, %cst_37 {dimension_numbers = #tpu.dot_dimension_numbers<[1], [0], [0], [1], [0, 0, 1, 1], [], []>} : vector<32x144xbf16>, vector<144x128xbf16>, vector<32x128xf32> -> vector<32x128xf32>
    %c0_38 = arith.constant 0 : index
    %c1_39 = arith.constant 1 : index
    %c0_40 = arith.constant 0 : index
    %38 = vector.load %arg13[%c0_38, %c1_39, %c0_40] : memref<2x18x144xbf16, #tpu.memory_space<vmem>>, vector<2x16x144xbf16>
    %39 = vector.shape_cast %38 : vector<2x16x144xbf16> to vector<32x144xbf16>
    %c1_41 = arith.constant 1 : index
    %c0_42 = arith.constant 0 : index
    %c0_43 = arith.constant 0 : index
    %40 = vector.load %arg4[%c1_41, %c0_42, %c0_43] : memref<3x144x128xbf16, #tpu.memory_space<vmem>>, vector<1x144x128xbf16>
    %41 = vector.shape_cast %40 : vector<1x144x128xbf16> to vector<144x128xbf16>
    %cst_44 = arith.constant dense<0.000000e+00> : vector<32x128xf32>
    %42 = tpu.matmul %39, %41, %cst_44 {dimension_numbers = #tpu.dot_dimension_numbers<[1], [0], [0], [1], [0, 0, 1, 1], [], []>} : vector<32x144xbf16>, vector<144x128xbf16>, vector<32x128xf32> -> vector<32x128xf32>
    %43 = arith.addf %37, %42 : vector<32x128xf32>
    %c0_45 = arith.constant 0 : index
    %c2_46 = arith.constant 2 : index
    %c0_47 = arith.constant 0 : index
    %44 = vector.load %arg13[%c0_45, %c2_46, %c0_47] : memref<2x18x144xbf16, #tpu.memory_space<vmem>>, vector<2x16x144xbf16>
    %45 = vector.shape_cast %44 : vector<2x16x144xbf16> to vector<32x144xbf16>
    %c2_48 = arith.constant 2 : index
    %c0_49 = arith.constant 0 : index
    %c0_50 = arith.constant 0 : index
    %46 = vector.load %arg4[%c2_48, %c0_49, %c0_50] : memref<3x144x128xbf16, #tpu.memory_space<vmem>>, vector<1x144x128xbf16>
    %47 = vector.shape_cast %46 : vector<1x144x128xbf16> to vector<144x128xbf16>
    %cst_51 = arith.constant dense<0.000000e+00> : vector<32x128xf32>
    %48 = tpu.matmul %45, %47, %cst_51 {dimension_numbers = #tpu.dot_dimension_numbers<[1], [0], [0], [1], [0, 0, 1, 1], [], []>} : vector<32x144xbf16>, vector<144x128xbf16>, vector<32x128xf32> -> vector<32x128xf32>
    %49 = arith.addf %43, %48 : vector<32x128xf32>
    %c0_52 = arith.constant 0 : index
    %c0_53 = arith.constant 0 : index
    %50 = vector.load %arg5[%c0_52, %c0_53] : memref<2x128xf32, #tpu.memory_space<vmem>>, vector<1x128xf32>
    %51 = vector.broadcast %50 : vector<1x128xf32> to vector<32x128xf32>
    %52 = arith.mulf %49, %51 : vector<32x128xf32>
    %c1_54 = arith.constant 1 : index
    %c0_55 = arith.constant 0 : index
    %53 = vector.load %arg5[%c1_54, %c0_55] : memref<2x128xf32, #tpu.memory_space<vmem>>, vector<1x128xf32>
    %54 = vector.broadcast %53 : vector<1x128xf32> to vector<32x128xf32>
    %55 = arith.addf %52, %54 : vector<32x128xf32>
    %56 = vector.shape_cast %55 : vector<32x128xf32> to vector<2x16x128xf32>
    %cst_56 = arith.constant dense<0.000000e+00> : vector<2x128xf32>
    %57 = vector.multi_reduction <add>, %56, %cst_56 [1] : vector<2x16x128xf32> to vector<2x128xf32>
    %c0_57 = arith.constant 0 : index
    %c0_58 = arith.constant 0 : index
    %58 = vector.load %arg6[%c0_57, %c0_58] : memref<128x8xf32, #tpu.memory_space<vmem>>, vector<128x8xf32>
    %cst_59 = arith.constant dense<0.000000e+00> : vector<2x8xf32>
    %59 = tpu.matmul %57, %58, %cst_59 {dimension_numbers = #tpu.dot_dimension_numbers<[1], [0], [0], [1], [0, 0, 1, 1], [], []>} : vector<2x128xf32>, vector<128x8xf32>, vector<2x8xf32> -> vector<2x8xf32>
    %c0_60 = arith.constant 0 : index
    %c0_61 = arith.constant 0 : index
    %60 = vector.load %arg8[%c0_60, %c0_61] : memref<8x4xf32, #tpu.memory_space<vmem>>, vector<8x4xf32>
    %cst_62 = arith.constant dense<0.000000e+00> : vector<2x4xf32>
    %61 = tpu.matmul %59, %60, %cst_62 {dimension_numbers = #tpu.dot_dimension_numbers<[1], [0], [0], [1], [0, 0, 1, 1], [], []>} : vector<2x8xf32>, vector<8x4xf32>, vector<2x4xf32> -> vector<2x4xf32>
    %c0_63 = arith.constant 0 : index
    %c0_64 = arith.constant 0 : index
    %62 = vector.load %arg9[%c0_63, %c0_64] : memref<1x4xf32, #tpu.memory_space<vmem>>, vector<1x4xf32>
    %63 = vector.broadcast %62 : vector<1x4xf32> to vector<2x4xf32>
    %64 = arith.addf %61, %63 : vector<2x4xf32>
    %cst_65 = arith.constant 0.000000e+00 : f32
    %65 = vector.broadcast %cst_65 : f32 to vector<2x4xf32>
    %66 = arith.maximumf %64, %65 : vector<2x4xf32>
    %c0_66 = arith.constant 0 : index
    %c0_67 = arith.constant 0 : index
    %67 = vector.load %arg10[%c0_66, %c0_67] : memref<4x8xf32, #tpu.memory_space<vmem>>, vector<4x8xf32>
    %cst_68 = arith.constant dense<0.000000e+00> : vector<2x8xf32>
    %68 = tpu.matmul %66, %67, %cst_68 {dimension_numbers = #tpu.dot_dimension_numbers<[1], [0], [0], [1], [0, 0, 1, 1], [], []>} : vector<2x4xf32>, vector<4x8xf32>, vector<2x8xf32> -> vector<2x8xf32>
    %c0_69 = arith.constant 0 : index
    %c0_70 = arith.constant 0 : index
    %69 = vector.load %arg11[%c0_69, %c0_70] : memref<1x8xf32, #tpu.memory_space<vmem>>, vector<1x8xf32>
    %70 = vector.broadcast %69 : vector<1x8xf32> to vector<2x8xf32>
    %71 = arith.addf %68, %70 : vector<2x8xf32>
    %72 = arith.negf %71 : vector<2x8xf32>
    %73 = math.exp %72 : vector<2x8xf32>
    %cst_71 = arith.constant 1.000000e+00 : f32
    %74 = vector.broadcast %cst_71 : f32 to vector<2x8xf32>
    %75 = arith.addf %74, %73 : vector<2x8xf32>
    %76 = arith.divf %74, %75 : vector<2x8xf32>
    %c0_72 = arith.constant 0 : index
    %c0_73 = arith.constant 0 : index
    %77 = vector.load %arg7[%c0_72, %c0_73] : memref<8x128xf32, #tpu.memory_space<vmem>>, vector<8x128xf32>
    %cst_74 = arith.constant dense<0.000000e+00> : vector<2x128xf32>
    %78 = tpu.matmul %76, %77, %cst_74 {dimension_numbers = #tpu.dot_dimension_numbers<[1], [0], [0], [1], [0, 0, 1, 1], [], []>} : vector<2x8xf32>, vector<8x128xf32>, vector<2x128xf32> -> vector<2x128xf32>
    %79 = vector.shape_cast %78 : vector<2x128xf32> to vector<2x1x128xf32>
    %80 = vector.broadcast %79 : vector<2x1x128xf32> to vector<2x16x128xf32>
    %81 = arith.mulf %56, %80 : vector<2x16x128xf32>
    %82 = vector.shape_cast %17 : vector<32x128xf32> to vector<2x16x128xf32>
    %83 = arith.addf %81, %82 : vector<2x16x128xf32>
    %cst_75 = arith.constant 0.000000e+00 : f32
    %84 = vector.broadcast %cst_75 : f32 to vector<2x16x128xf32>
    %85 = arith.maximumf %83, %84 : vector<2x16x128xf32>
    %c0_76 = arith.constant 0 : index
    %c0_77 = arith.constant 0 : index
    %c0_78 = arith.constant 0 : index
    %86 = vector.load %arg12[%c0_76, %c0_77, %c0_78] : memref<2x16x128xf32, #tpu.memory_space<vmem>>, vector<2x16x128xf32>
    tpu.vector_store %arg12[%c0_76, %c0_77, %c0_78], %85 {strides = array<i32>} : memref<2x16x128xf32, #tpu.memory_space<vmem>>, vector<2x16x128xf32>,
    return
  }
  func.func @transform_0(%arg0: i32) -> (i32, i32, i32) {
    %c0_i32 = arith.constant 0 : i32
    %c0_i32_0 = arith.constant 0 : i32
    %c0_i32_1 = arith.constant 0 : i32
    return %arg0, %c0_i32, %c0_i32_0 : i32, i32, i32
  }
  func.func @transform_1(%arg0: i32) -> (i32, i32, i32) {
    %c0_i32 = arith.constant 0 : i32
    %c0_i32_0 = arith.constant 0 : i32
    %c0_i32_1 = arith.constant 0 : i32
    %c0_i32_2 = arith.constant 0 : i32
    return %c0_i32, %c0_i32_0, %c0_i32_1 : i32, i32, i32
  }
  func.func @transform_2(%arg0: i32) -> (i32, i32) {
    %c0_i32 = arith.constant 0 : i32
    %c0_i32_0 = arith.constant 0 : i32
    %c0_i32_1 = arith.constant 0 : i32
    return %c0_i32, %c0_i32_0 : i32, i32
  }
  func.func @transform_3(%arg0: i32) -> (i32, i32, i32) {
    %c0_i32 = arith.constant 0 : i32
    %c0_i32_0 = arith.constant 0 : i32
    %c0_i32_1 = arith.constant 0 : i32
    %c0_i32_2 = arith.constant 0 : i32
    return %c0_i32, %c0_i32_0, %c0_i32_1 : i32, i32, i32
  }
  func.func @transform_4(%arg0: i32) -> (i32, i32) {
    %c0_i32 = arith.constant 0 : i32
    %c0_i32_0 = arith.constant 0 : i32
    %c0_i32_1 = arith.constant 0 : i32
    return %c0_i32, %c0_i32_0 : i32, i32
  }
  func.func @transform_5(%arg0: i32) -> (i32, i32) {
    %c0_i32 = arith.constant 0 : i32
    %c0_i32_0 = arith.constant 0 : i32
    %c0_i32_1 = arith.constant 0 : i32
    return %c0_i32, %c0_i32_0 : i32, i32
  }
  func.func @transform_6(%arg0: i32) -> (i32, i32) {
    %c0_i32 = arith.constant 0 : i32
    %c0_i32_0 = arith.constant 0 : i32
    %c0_i32_1 = arith.constant 0 : i32
    return %c0_i32, %c0_i32_0 : i32, i32
  }
  func.func @transform_7(%arg0: i32) -> (i32, i32) {
    %c0_i32 = arith.constant 0 : i32
    %c0_i32_0 = arith.constant 0 : i32
    %c0_i32_1 = arith.constant 0 : i32
    return %c0_i32, %c0_i32_0 : i32, i32
  }
  func.func @transform_8(%arg0: i32) -> (i32, i32) {
    %c0_i32 = arith.constant 0 : i32
    %c0_i32_0 = arith.constant 0 : i32
    %c0_i32_1 = arith.constant 0 : i32
    return %c0_i32, %c0_i32_0 : i32, i32
  }
  func.func @transform_9(%arg0: i32) -> (i32, i32) {
    %c0_i32 = arith.constant 0 : i32
    %c0_i32_0 = arith.constant 0 : i32
    %c0_i32_1 = arith.constant 0 : i32
    return %c0_i32, %c0_i32_0 : i32, i32
  }
  func.func @transform_10(%arg0: i32) -> (i32, i32) {
    %c0_i32 = arith.constant 0 : i32
    %c0_i32_0 = arith.constant 0 : i32
    %c0_i32_1 = arith.constant 0 : i32
    return %c0_i32, %c0_i32_0 : i32, i32
  }
  func.func @transform_11(%arg0: i32) -> (i32, i32, i32) {
    %c0_i32 = arith.constant 0 : i32
    %c0_i32_0 = arith.constant 0 : i32
    %c0_i32_1 = arith.constant 0 : i32
    return %arg0, %c0_i32, %c0_i32_0 : i32, i32, i32
  }
}

module attributes {stable_mosaic.version = 11 : i64} {
  func.func @residual_se_kernel(%arg0: i32, %arg1: memref<2x18x72xbf16, #tpu.memory_space<vmem>>, %arg2: memref<3x72x272xbf16, #tpu.memory_space<vmem>>, %arg3: memref<2x144xf32, #tpu.memory_space<vmem>>, %arg4: memref<3x144x128xbf16, #tpu.memory_space<vmem>>, %arg5: memref<2x128xf32, #tpu.memory_space<vmem>>, %arg6: memref<128x8xf32, #tpu.memory_space<vmem>>, %arg7: memref<8x128xf32, #tpu.memory_space<vmem>>, %arg8: memref<8x4xf32, #tpu.memory_space<vmem>>, %arg9: memref<1x4xf32, #tpu.memory_space<vmem>>, %arg10: memref<4x8xf32, #tpu.memory_space<vmem>>, %arg11: memref<1x8xf32, #tpu.memory_space<vmem>>, %arg12: memref<2x16x128xf32, #tpu.memory_space<vmem>>, %arg13: memref<2x18x144xbf16, #tpu.memory_space<vmem>>) attributes {dimension_semantics = [#tpu.dimension_semantics<parallel>], iteration_bounds = array<i64: 1>, scalar_prefetch = 0 : i64, scratch_operands = 1 : i64, tpu.core_type = #tpu.core_type<tc>, window_params = [{transform_indices = @transform_0, window_bounds = array<i64: 2, 18, 72>}, {pipeline_mode = #tpu.pipeline_mode<synchronous>, transform_indices = @transform_1, window_bounds = array<i64: 3, 72, 272>}, {pipeline_mode = #tpu.pipeline_mode<synchronous>, transform_indices = @transform_2, window_bounds = array<i64: 2, 144>}, {pipeline_mode = #tpu.pipeline_mode<synchronous>, transform_indices = @transform_3, window_bounds = array<i64: 3, 144, 128>}, {pipeline_mode = #tpu.pipeline_mode<synchronous>, transform_indices = @transform_4, window_bounds = array<i64: 2, 128>}, {pipeline_mode = #tpu.pipeline_mode<synchronous>, transform_indices = @transform_5, window_bounds = array<i64: 128, 8>}, {pipeline_mode = #tpu.pipeline_mode<synchronous>, transform_indices = @transform_6, window_bounds = array<i64: 8, 128>}, {pipeline_mode = #tpu.pipeline_mode<synchronous>, transform_indices = @transform_7, window_bounds = array<i64: 8, 4>}, {pipeline_mode = #tpu.pipeline_mode<synchronous>, transform_indices = @transform_8, window_bounds = array<i64: 1, 4>}, {pipeline_mode = #tpu.pipeline_mode<synchronous>, transform_indices = @transform_9, window_bounds = array<i64: 4, 8>}, {pipeline_mode = #tpu.pipeline_mode<synchronous>, transform_indices = @transform_10, window_bounds = array<i64: 1, 8>}, {transform_indices = @transform_11, window_bounds = array<i64: 2, 16, 128>}]} {
    %c0 = arith.constant 0 : index
    %c0_0 = arith.constant 0 : index
    %c0_1 = arith.constant 0 : index
    %0 = vector.load %arg1[%c0, %c0_0, %c0_1] : memref<2x18x72xbf16, #tpu.memory_space<vmem>>, vector<2x16x72xbf16>
    %1 = vector.shape_cast %0 : vector<2x16x72xbf16> to vector<32x72xbf16>
    %c0_2 = arith.constant 0 : index
    %c0_3 = arith.constant 0 : index
    %c0_4 = arith.constant 0 : index
    %2 = vector.load %arg2[%c0_2, %c0_3, %c0_4] : memref<3x72x272xbf16, #tpu.memory_space<vmem>>, vector<1x72x272xbf16>
    %3 = vector.shape_cast %2 : vector<1x72x272xbf16> to vector<72x272xbf16>
    %cst = arith.constant dense<0.000000e+00> : vector<32x272xf32>
    %4 = tpu.matmul %1, %3, %cst {dimension_numbers = #tpu.dot_dimension_numbers<[1], [0], [0], [1], [0, 0, 1, 1], [], []>} : vector<32x72xbf16>, vector<72x272xbf16>, vector<32x272xf32> -> vector<32x272xf32>
    %c0_5 = arith.constant 0 : index
    %c1 = arith.constant 1 : index
    %c0_6 = arith.constant 0 : index
    %5 = vector.load %arg1[%c0_5, %c1, %c0_6] : memref<2x18x72xbf16, #tpu.memory_space<vmem>>, vector<2x16x72xbf16>
    %6 = vector.shape_cast %5 : vector<2x16x72xbf16> to vector<32x72xbf16>
    %c1_7 = arith.constant 1 : index
    %c0_8 = arith.constant 0 : index
    %c0_9 = arith.constant 0 : index
    %7 = vector.load %arg2[%c1_7, %c0_8, %c0_9] : memref<3x72x272xbf16, #tpu.memory_space<vmem>>, vector<1x72x272xbf16>
    %8 = vector.shape_cast %7 : vector<1x72x272xbf16> to vector<72x272xbf16>
    %cst_10 = arith.constant dense<0.000000e+00> : vector<32x272xf32>
    %9 = tpu.matmul %6, %8, %cst_10 {dimension_numbers = #tpu.dot_dimension_numbers<[1], [0], [0], [1], [0, 0, 1, 1], [], []>} : vector<32x72xbf16>, vector<72x272xbf16>, vector<32x272xf32> -> vector<32x272xf32>
    %10 = arith.addf %4, %9 : vector<32x272xf32>
    %c0_11 = arith.constant 0 : index
    %c2 = arith.constant 2 : index
    %c0_12 = arith.constant 0 : index
    %11 = vector.load %arg1[%c0_11, %c2, %c0_12] : memref<2x18x72xbf16, #tpu.memory_space<vmem>>, vector<2x16x72xbf16>
    %12 = vector.shape_cast %11 : vector<2x16x72xbf16> to vector<32x72xbf16>
    %c2_13 = arith.constant 2 : index
    %c0_14 = arith.constant 0 : index
    %c0_15 = arith.constant 0 : index
    %13 = vector.load %arg2[%c2_13, %c0_14, %c0_15] : memref<3x72x272xbf16, #tpu.memory_space<vmem>>, vector<1x72x272xbf16>
    %14 = vector.shape_cast %13 : vector<1x72x272xbf16> to vector<72x272xbf16>
    %cst_16 = arith.constant dense<0.000000e+00> : vector<32x272xf32>
    %15 = tpu.matmul %12, %14, %cst_16 {dimension_numbers = #tpu.dot_dimension_numbers<[1], [0], [0], [1], [0, 0, 1, 1], [], []>} : vector<32x72xbf16>, vector<72x272xbf16>, vector<32x272xf32> -> vector<32x272xf32>
    %16 = arith.addf %10, %15 : vector<32x272xf32>
    %17 = vector.extract_strided_slice %16 {offsets = [0, 0], sizes = [32, 128], strides = [1, 1]} : vector<32x272xf32> to vector<32x128xf32>
    %18 = vector.extract_strided_slice %16 {offsets = [0, 128], sizes = [32, 144], strides = [1, 1]} : vector<32x272xf32> to vector<32x144xf32>
    %c0_17 = arith.constant 0 : index
    %c0_18 = arith.constant 0 : index
    %19 = vector.load %arg3[%c0_17, %c0_18] : memref<2x144xf32, #tpu.memory_space<vmem>>, vector<1x144xf32>
    %20 = vector.broadcast %19 : vector<1x144xf32> to vector<32x144xf32>
    %21 = arith.mulf %18, %20 : vector<32x144xf32>
    %c1_19 = arith.constant 1 : index
    %c0_20 = arith.constant 0 : index
    %22 = vector.load %arg3[%c1_19, %c0_20] : memref<2x144xf32, #tpu.memory_space<vmem>>, vector<1x144xf32>
    %23 = vector.broadcast %22 : vector<1x144xf32> to vector<32x144xf32>
    %24 = arith.addf %21, %23 : vector<32x144xf32>
    %cst_21 = arith.constant 0.000000e+00 : f32
    %25 = vector.broadcast %cst_21 : f32 to vector<32x144xf32>
    %26 = arith.maximumf %24, %25 : vector<32x144xf32>
    %cst_22 = arith.constant 0.000000e+00 : bf16
    %27 = vector.broadcast %cst_22 : bf16 to vector<2x1x144xbf16>
    %c0_23 = arith.constant 0 : index
    %c0_24 = arith.constant 0 : index
    %c0_25 = arith.constant 0 : index
    %28 = vector.load %arg13[%c0_23, %c0_24, %c0_25] : memref<2x18x144xbf16, #tpu.memory_space<vmem>>, vector<2x1x144xbf16>
    tpu.vector_store %arg13[%c0_23, %c0_24, %c0_25], %27 {strides = array<i32>} : memref<2x18x144xbf16, #tpu.memory_space<vmem>>, vector<2x1x144xbf16>,
    %c0_26 = arith.constant 0 : index
    %c17 = arith.constant 17 : index
    %c0_27 = arith.constant 0 : index
    %29 = vector.load %arg13[%c0_26, %c17, %c0_27] : memref<2x18x144xbf16, #tpu.memory_space<vmem>>, vector<2x1x144xbf16>
    tpu.vector_store %arg13[%c0_26, %c17, %c0_27], %27 {strides = array<i32>} : memref<2x18x144xbf16, #tpu.memory_space<vmem>>, vector<2x1x144xbf16>,
    %30 = arith.truncf %26 : vector<32x144xf32> to vector<32x144xbf16>
    %31 = vector.shape_cast %30 : vector<32x144xbf16> to vector<2x16x144xbf16>
    %c0_28 = arith.constant 0 : index
    %c1_29 = arith.constant 1 : index
    %c0_30 = arith.constant 0 : index
    %32 = vector.load %arg13[%c0_28, %c1_29, %c0_30] : memref<2x18x144xbf16, #tpu.memory_space<vmem>>, vector<2x16x144xbf16>
    tpu.vector_store %arg13[%c0_28, %c1_29, %c0_30], %31 {strides = array<i32>} : memref<2x18x144xbf16, #tpu.memory_space<vmem>>, vector<2x16x144xbf16>,
    %c0_31 = arith.constant 0 : index
    %c0_32 = arith.constant 0 : index
    %c0_33 = arith.constant 0 : index
    %33 = vector.load %arg13[%c0_31, %c0_32, %c0_33] : memref<2x18x144xbf16, #tpu.memory_space<vmem>>, vector<2x16x144xbf16>
    %34 = vector.shape_cast %33 : vector<2x16x144xbf16> to vector<32x144xbf16>
    %c0_34 = arith.constant 0 : index
    %c0_35 = arith.constant 0 : index
    %c0_36 = arith.constant 0 : index
    %35 = vector.load %arg4[%c0_34, %c0_35, %c0_36] : memref<3x144x128xbf16, #tpu.memory_space<vmem>>, vector<1x144x128xbf16>
    %36 = vector.shape_cast %35 : vector<1x144x128xbf16> to vector<144x128xbf16>
    %cst_37 = arith.constant dense<0.000000e+00> : vector<32x128xf32>
    %37 = tpu.matmul %34, %36, %cst_37 {dimension_numbers = #tpu.dot_dimension_numbers<[1], [0], [0], [1], [0, 0, 1, 1], [], []>} : vector<32x144xbf16>, vector<144x128xbf16>, vector<32x128xf32> -> vector<32x128xf32>
    %c0_38 = arith.constant 0 : index
    %c1_39 = arith.constant 1 : index
    %c0_40 = arith.constant 0 : index
    %38 = vector.load %arg13[%c0_38, %c1_39, %c0_40] : memref<2x18x144xbf16, #tpu.memory_space<vmem>>, vector<2x16x144xbf16>
    %39 = vector.shape_cast %38 : vector<2x16x144xbf16> to vector<32x144xbf16>
    %c1_41 = arith.constant 1 : index
    %c0_42 = arith.constant 0 : index
    %c0_43 = arith.constant 0 : index
    %40 = vector.load %arg4[%c1_41, %c0_42, %c0_43] : memref<3x144x128xbf16, #tpu.memory_space<vmem>>, vector<1x144x128xbf16>
    %41 = vector.shape_cast %40 : vector<1x144x128xbf16> to vector<144x128xbf16>
    %cst_44 = arith.constant dense<0.000000e+00> : vector<32x128xf32>
    %42 = tpu.matmul %39, %41, %cst_44 {dimension_numbers = #tpu.dot_dimension_numbers<[1], [0], [0], [1], [0, 0, 1, 1], [], []>} : vector<32x144xbf16>, vector<144x128xbf16>, vector<32x128xf32> -> vector<32x128xf32>
    %43 = arith.addf %37, %42 : vector<32x128xf32>
    %c0_45 = arith.constant 0 : index
    %c2_46 = arith.constant 2 : index
    %c0_47 = arith.constant 0 : index
    %44 = vector.load %arg13[%c0_45, %c2_46, %c0_47] : memref<2x18x144xbf16, #tpu.memory_space<vmem>>, vector<2x16x144xbf16>
    %45 = vector.shape_cast %44 : vector<2x16x144xbf16> to vector<32x144xbf16>
    %c2_48 = arith.constant 2 : index
    %c0_49 = arith.constant 0 : index
    %c0_50 = arith.constant 0 : index
    %46 = vector.load %arg4[%c2_48, %c0_49, %c0_50] : memref<3x144x128xbf16, #tpu.memory_space<vmem>>, vector<1x144x128xbf16>
    %47 = vector.shape_cast %46 : vector<1x144x128xbf16> to vector<144x128xbf16>
    %cst_51 = arith.constant dense<0.000000e+00> : vector<32x128xf32>
    %48 = tpu.matmul %45, %47, %cst_51 {dimension_numbers = #tpu.dot_dimension_numbers<[1], [0], [0], [1], [0, 0, 1, 1], [], []>} : vector<32x144xbf16>, vector<144x128xbf16>, vector<32x128xf32> -> vector<32x128xf32>
    %49 = arith.addf %43, %48 : vector<32x128xf32>
    %c0_52 = arith.constant 0 : index
    %c0_53 = arith.constant 0 : index
    %50 = vector.load %arg5[%c0_52, %c0_53] : memref<2x128xf32, #tpu.memory_space<vmem>>, vector<1x128xf32>
    %51 = vector.broadcast %50 : vector<1x128xf32> to vector<32x128xf32>
    %52 = arith.mulf %49, %51 : vector<32x128xf32>
    %c1_54 = arith.constant 1 : index
    %c0_55 = arith.constant 0 : index
    %53 = vector.load %arg5[%c1_54, %c0_55] : memref<2x128xf32, #tpu.memory_space<vmem>>, vector<1x128xf32>
    %54 = vector.broadcast %53 : vector<1x128xf32> to vector<32x128xf32>
    %55 = arith.addf %52, %54 : vector<32x128xf32>
    %56 = vector.shape_cast %55 : vector<32x128xf32> to vector<2x16x128xf32>
    %cst_56 = arith.constant dense<0.000000e+00> : vector<2x128xf32>
    %57 = vector.multi_reduction <add>, %56, %cst_56 [1] : vector<2x16x128xf32> to vector<2x128xf32>
    %c0_57 = arith.constant 0 : index
    %c0_58 = arith.constant 0 : index
    %58 = vector.load %arg6[%c0_57, %c0_58] : memref<128x8xf32, #tpu.memory_space<vmem>>, vector<128x8xf32>
    %cst_59 = arith.constant dense<0.000000e+00> : vector<2x8xf32>
    %59 = tpu.matmul %57, %58, %cst_59 {dimension_numbers = #tpu.dot_dimension_numbers<[1], [0], [0], [1], [0, 0, 1, 1], [], []>} : vector<2x128xf32>, vector<128x8xf32>, vector<2x8xf32> -> vector<2x8xf32>
    %c0_60 = arith.constant 0 : index
    %c0_61 = arith.constant 0 : index
    %60 = vector.load %arg8[%c0_60, %c0_61] : memref<8x4xf32, #tpu.memory_space<vmem>>, vector<8x4xf32>
    %cst_62 = arith.constant dense<0.000000e+00> : vector<2x4xf32>
    %61 = tpu.matmul %59, %60, %cst_62 {dimension_numbers = #tpu.dot_dimension_numbers<[1], [0], [0], [1], [0, 0, 1, 1], [], []>} : vector<2x8xf32>, vector<8x4xf32>, vector<2x4xf32> -> vector<2x4xf32>
    %c0_63 = arith.constant 0 : index
    %c0_64 = arith.constant 0 : index
    %62 = vector.load %arg9[%c0_63, %c0_64] : memref<1x4xf32, #tpu.memory_space<vmem>>, vector<1x4xf32>
    %63 = vector.broadcast %62 : vector<1x4xf32> to vector<2x4xf32>
    %64 = arith.addf %61, %63 : vector<2x4xf32>
    %cst_65 = arith.constant 0.000000e+00 : f32
    %65 = vector.broadcast %cst_65 : f32 to vector<2x4xf32>
    %66 = arith.maximumf %64, %65 : vector<2x4xf32>
    %c0_66 = arith.constant 0 : index
    %c0_67 = arith.constant 0 : index
    %67 = vector.load %arg10[%c0_66, %c0_67] : memref<4x8xf32, #tpu.memory_space<vmem>>, vector<4x8xf32>
    %cst_68 = arith.constant dense<0.000000e+00> : vector<2x8xf32>
    %68 = tpu.matmul %66, %67, %cst_68 {dimension_numbers = #tpu.dot_dimension_numbers<[1], [0], [0], [1], [0, 0, 1, 1], [], []>} : vector<2x4xf32>, vector<4x8xf32>, vector<2x8xf32> -> vector<2x8xf32>
    %c0_69 = arith.constant 0 : index
    %c0_70 = arith.constant 0 : index
    %69 = vector.load %arg11[%c0_69, %c0_70] : memref<1x8xf32, #tpu.memory_space<vmem>>, vector<1x8xf32>
    %70 = vector.broadcast %69 : vector<1x8xf32> to vector<2x8xf32>
    %71 = arith.addf %68, %70 : vector<2x8xf32>
    %72 = arith.negf %71 : vector<2x8xf32>
    %73 = math.exp %72 : vector<2x8xf32>
    %cst_71 = arith.constant 1.000000e+00 : f32
    %74 = vector.broadcast %cst_71 : f32 to vector<2x8xf32>
    %75 = arith.addf %74, %73 : vector<2x8xf32>
    %76 = arith.divf %74, %75 : vector<2x8xf32>
    %c0_72 = arith.constant 0 : index
    %c0_73 = arith.constant 0 : index
    %77 = vector.load %arg7[%c0_72, %c0_73] : memref<8x128xf32, #tpu.memory_space<vmem>>, vector<8x128xf32>
    %cst_74 = arith.constant dense<0.000000e+00> : vector<2x128xf32>
    %78 = tpu.matmul %76, %77, %cst_74 {dimension_numbers = #tpu.dot_dimension_numbers<[1], [0], [0], [1], [0, 0, 1, 1], [], []>} : vector<2x8xf32>, vector<8x128xf32>, vector<2x128xf32> -> vector<2x128xf32>
    %79 = vector.shape_cast %78 : vector<2x128xf32> to vector<2x1x128xf32>
    %80 = vector.broadcast %79 : vector<2x1x128xf32> to vector<2x16x128xf32>
    %81 = arith.mulf %56, %80 : vector<2x16x128xf32>
    %82 = vector.shape_cast %17 : vector<32x128xf32> to vector<2x16x128xf32>
    %83 = arith.addf %81, %82 : vector<2x16x128xf32>
    %cst_75 = arith.constant 0.000000e+00 : f32
    %84 = vector.broadcast %cst_75 : f32 to vector<2x16x128xf32>
    %85 = arith.maximumf %83, %84 : vector<2x16x128xf32>
    %c0_76 = arith.constant 0 : index
    %c0_77 = arith.constant 0 : index
    %c0_78 = arith.constant 0 : index
    %86 = vector.load %arg12[%c0_76, %c0_77, %c0_78] : memref<2x16x128xf32, #tpu.memory_space<vmem>>, vector<2x16x128xf32>
    tpu.vector_store %arg12[%c0_76, %c0_77, %c0_78], %85 {strides = array<i32>} : memref<2x16x128xf32, #tpu.memory_space<vmem>>, vector<2x16x128xf32>,
    return
  }
  func.func @transform_0(%arg0: i32) -> (i32, i32, i32) {
    %c0_i32 = arith.constant 0 : i32
    %c0_i32_0 = arith.constant 0 : i32
    %c0_i32_1 = arith.constant 0 : i32
    return %arg0, %c0_i32, %c0_i32_0 : i32, i32, i32
  }
  func.func @transform_1(%arg0: i32) -> (i32, i32, i32) {
    %c0_i32 = arith.constant 0 : i32
    %c0_i32_0 = arith.constant 0 : i32
    %c0_i32_1 = arith.constant 0 : i32
    %c0_i32_2 = arith.constant 0 : i32
    return %c0_i32, %c0_i32_0, %c0_i32_1 : i32, i32, i32
  }
  func.func @transform_2(%arg0: i32) -> (i32, i32) {
    %c0_i32 = arith.constant 0 : i32
    %c0_i32_0 = arith.constant 0 : i32
    %c0_i32_1 = arith.constant 0 : i32
    return %c0_i32, %c0_i32_0 : i32, i32
  }
  func.func @transform_3(%arg0: i32) -> (i32, i32, i32) {
    %c0_i32 = arith.constant 0 : i32
    %c0_i32_0 = arith.constant 0 : i32
    %c0_i32_1 = arith.constant 0 : i32
    %c0_i32_2 = arith.constant 0 : i32
    return %c0_i32, %c0_i32_0, %c0_i32_1 : i32, i32, i32
  }
  func.func @transform_4(%arg0: i32) -> (i32, i32) {
    %c0_i32 = arith.constant 0 : i32
    %c0_i32_0 = arith.constant 0 : i32
    %c0_i32_1 = arith.constant 0 : i32
    return %c0_i32, %c0_i32_0 : i32, i32
  }
  func.func @transform_5(%arg0: i32) -> (i32, i32) {
    %c0_i32 = arith.constant 0 : i32
    %c0_i32_0 = arith.constant 0 : i32
    %c0_i32_1 = arith.constant 0 : i32
    return %c0_i32, %c0_i32_0 : i32, i32
  }
  func.func @transform_6(%arg0: i32) -> (i32, i32) {
    %c0_i32 = arith.constant 0 : i32
    %c0_i32_0 = arith.constant 0 : i32
    %c0_i32_1 = arith.constant 0 : i32
    return %c0_i32, %c0_i32_0 : i32, i32
  }
  func.func @transform_7(%arg0: i32) -> (i32, i32) {
    %c0_i32 = arith.constant 0 : i32
    %c0_i32_0 = arith.constant 0 : i32
    %c0_i32_1 = arith.constant 0 : i32
    return %c0_i32, %c0_i32_0 : i32, i32
  }
  func.func @transform_8(%arg0: i32) -> (i32, i32) {
    %c0_i32 = arith.constant 0 : i32
    %c0_i32_0 = arith.constant 0 : i32
    %c0_i32_1 = arith.constant 0 : i32
    return %c0_i32, %c0_i32_0 : i32, i32
  }
  func.func @transform_9(%arg0: i32) -> (i32, i32) {
    %c0_i32 = arith.constant 0 : i32
    %c0_i32_0 = arith.constant 0 : i32
    %c0_i32_1 = arith.constant 0 : i32
    return %c0_i32, %c0_i32_0 : i32, i32
  }
  func.func @transform_10(%arg0: i32) -> (i32, i32) {
    %c0_i32 = arith.constant 0 : i32
    %c0_i32_0 = arith.constant 0 : i32
    %c0_i32_1 = arith.constant 0 : i32
    return %c0_i32, %c0_i32_0 : i32, i32
  }
  func.func @transform_11(%arg0: i32) -> (i32, i32, i32) {
    %c0_i32 = arith.constant 0 : i32
    %c0_i32_0 = arith.constant 0 : i32
    %c0_i32_1 = arith.constant 0 : i32
    return %arg0, %c0_i32, %c0_i32_0 : i32, i32, i32
  }
}

</mosaic_0001>

<llo_original>
// kernel: tpu_custom_call.1
$region0: #{tpu_custom_call.1}
  #allocation0 [shape = 'u32[]', space=smem, size = 0x4, offset = 0x4, fixed_abs, tag = 'smem constant byte address 0x4 - core index']
  #allocation1 [shape = 'u32[144,128]{1,0:T(1,128)}', space=vmem, size = 0x12000, scoped, tag = 'internal scratch']
  #allocation2 [shape = 'bf16[2,18,144]{2,1,0:T(8,128)(2,1)}', space=vmem, size = 0x6000, scoped, tag = 'scratch operand']
  %s0 = inlined_call_operand.vmem [shape: bf16[2,18,72], index: 0, kind: input, shape index: {}]
  %s1 = inlined_call_operand.hbm [shape: bf16[3,72,272], index: 1, kind: input, shape index: {}]
  %s2 = inlined_call_operand.vmem [shape: f32[2,144], index: 2, kind: input, shape index: {}]
  %s3 = inlined_call_operand.hbm [shape: bf16[3,144,128], index: 3, kind: input, shape index: {}]
  %s4 = inlined_call_operand.vmem [shape: f32[2,128], index: 4, kind: input, shape index: {}]
  %s5 = inlined_call_operand.vmem [shape: f32[128,8], index: 5, kind: input, shape index: {}]
  %s6 = inlined_call_operand.vmem [shape: f32[8,128], index: 6, kind: input, shape index: {}]
  %s7 = inlined_call_operand.vmem [shape: f32[8,4], index: 7, kind: input, shape index: {}]
  %s8 = inlined_call_operand.vmem [shape: f32[1,4], index: 8, kind: input, shape index: {}]
  %s9 = inlined_call_operand.vmem [shape: f32[4,8], index: 9, kind: input, shape index: {}]
  %s10 = inlined_call_operand.vmem [shape: f32[1,8], index: 10, kind: input, shape index: {}]
  %s11 = inlined_call_operand.hbm [shape: f32[2,16,128], index: 11, kind: output, shape index: {}]
  %s12 = sld [smem:[#allocation0]]
  $region62: #{tpu_custom_call.1} parent=0
    _
  %s14 = ssub.s32 1, %s12
  %s15 = scalar_select 0, %s14, %s12
  $region1: #{tpu_custom_call.1} parent=0
    #allocation3 [shape = 'u8[165888]{0}', space=vmem, size = 0x28800, scoped, tag = 'input window, operand 1, single buffered']
    #allocation4 [shape = 's32[1]{0}', space=sflag, size = 0x4, scoped, tag = 'scoped memory for tpu_custom_call.1']
    #allocation5 [shape = 's32[1]{0}', space=sflag, size = 0x4, scoped, tag = 'scoped memory for tpu_custom_call.1']
    #allocation6 [shape = 'u8[110592]{0}', space=vmem, size = 0x1b000, scoped, tag = 'input window, operand 3, single buffered']
    #allocation7 [shape = 's32[1]{0}', space=sflag, size = 0x4, scoped, tag = 'scoped memory for tpu_custom_call.1']
    #allocation8 [shape = 'u8[16384]{0}', space=vmem, size = 0x4000, scoped, tag = 'output window, operand 0, single buffered']
    %16 = vsyncpa [#allocation4], 0
    %17 = vsyncpa [#allocation7], 0
    %18 = vsyncpa [#allocation5], 0
    // Predicated region
    $region2: #{tpu_custom_call.1} parent=1 // pred_check
      _
    $region3: #{tpu_custom_call.1} parent=1 // pred_check_branch
      %20 = sbr.rel (0) target = $region5
    $region4: #{tpu_custom_call.1} parent=1 // pred_region
      _
    $region5: #{tpu_custom_call.1} parent=1 // pred_fallthru
      _
    // Predicated region
    $region6: #{tpu_custom_call.1} parent=1 // pred_check
      _
    $region7: #{tpu_custom_call.1} parent=1 // pred_check_branch
      %22 = sbr.rel (0) target = $region9
    $region8: #{tpu_custom_call.1} parent=1 // pred_region
      %s24 = ssub.s32 5184, 5184
      %25 = vsyncadd [#allocation4], %s24
      %s26 = sshll.u32 [#allocation3], 4
      %s27 = int_to_ptr.vmem [resolvable:$true] %s26
      %32 = dma.hbm_to_vmem [thread:$0]  %s1, 5184, %s27, [#allocation4], 192, 192, 12
    $region9: #{tpu_custom_call.1} parent=1 // pred_fallthru
      _
    // Predicated region
    $region10: #{tpu_custom_call.1} parent=1 // pred_check
      _
    $region11: #{tpu_custom_call.1} parent=1 // pred_check_branch
      %34 = sbr.rel (0) target = $region13
    $region12: #{tpu_custom_call.1} parent=1 // pred_region
      _
    $region13: #{tpu_custom_call.1} parent=1 // pred_fallthru
      _
    // Predicated region
    $region14: #{tpu_custom_call.1} parent=1 // pred_check
      _
    $region15: #{tpu_custom_call.1} parent=1 // pred_check_branch
      %36 = sbr.rel (0) target = $region17
    $region16: #{tpu_custom_call.1} parent=1 // pred_region
      %s38 = ssub.s32 3456, 3456
      %39 = vsyncadd [#allocation7], %s38
      %s40 = sshll.u32 [#allocation6], 4
      %s41 = int_to_ptr.vmem [resolvable:$true] %s40
      %46 = dma.hbm_to_vmem [thread:$0]  %s3, 3456, %s41, [#allocation7], 64, 64, 4
    $region17: #{tpu_custom_call.1} parent=1 // pred_fallthru
      _
    // Predicated region
    $region18: #{tpu_custom_call.1} parent=1 // pred_check
      _
    $region19: #{tpu_custom_call.1} parent=1 // pred_check_branch
      %48 = sbr.rel (0) target = $region21
    $region20: #{tpu_custom_call.1} parent=1 // pred_region
      _
    $region21: #{tpu_custom_call.1} parent=1 // pred_fallthru
      _
    // Predicated region
    $region22: #{tpu_custom_call.1} parent=1 // pred_check
      _
    $region23: #{tpu_custom_call.1} parent=1 // pred_check_branch
      %50 = sbr.rel (0) target = $region25
    $region24: #{tpu_custom_call.1} parent=1 // pred_region
      _
    $region25: #{tpu_custom_call.1} parent=1 // pred_fallthru
      _
    // Predicated region
    $region26: #{tpu_custom_call.1} parent=1 // pred_check
      _
    $region27: #{tpu_custom_call.1} parent=1 // pred_check_branch
      %52 = sbr.rel (0) target = $region29
    $region28: #{tpu_custom_call.1} parent=1 // pred_region
      _
    $region29: #{tpu_custom_call.1} parent=1 // pred_fallthru
      _
    // Predicated region
    $region30: #{tpu_custom_call.1} parent=1 // pred_check
      _
    $region31: #{tpu_custom_call.1} parent=1 // pred_check_branch
      %54 = sbr.rel (0) target = $region33
    $region32: #{tpu_custom_call.1} parent=1 // pred_region
      _
    $region33: #{tpu_custom_call.1} parent=1 // pred_fallthru
      _
    // Predicated region
    $region34: #{tpu_custom_call.1} parent=1 // pred_check
      _
    $region35: #{tpu_custom_call.1} parent=1 // pred_check_branch
      %56 = sbr.rel (0) target = $region37
    $region36: #{tpu_custom_call.1} parent=1 // pred_region
      _
    $region37: #{tpu_custom_call.1} parent=1 // pred_fallthru
      _
    // Predicated region
    $region38: #{tpu_custom_call.1} parent=1 // pred_check
      _
    $region39: #{tpu_custom_call.1} parent=1 // pred_check_branch
      %58 = sbr.rel (0) target = $region41
    $region40: #{tpu_custom_call.1} parent=1 // pred_region
      _
    $region41: #{tpu_custom_call.1} parent=1 // pred_fallthru
      _
    // Predicated region
    $region42: #{tpu_custom_call.1} parent=1 // pred_check
      _
    $region43: #{tpu_custom_call.1} parent=1 // pred_check_branch
      %60 = sbr.rel (0) target = $region45
    $region44: #{tpu_custom_call.1} parent=1 // pred_region
      _
    $region45: #{tpu_custom_call.1} parent=1 // pred_fallthru
      _
    // Predicated region
    $region46: #{tpu_custom_call.1} parent=1 // pred_check
      _
    $region47: #{tpu_custom_call.1} parent=1 // pred_check_branch
      %62 = sbr.rel (0) target = $region49
    $region48: #{tpu_custom_call.1} parent=1 // pred_region
      %63 = dma.done [#allocation4], 5184
    $region49: #{tpu_custom_call.1} parent=1 // pred_fallthru
      _
    // Predicated region
    $region50: #{tpu_custom_call.1} parent=1 // pred_check
      _
    $region51: #{tpu_custom_call.1} parent=1 // pred_check_branch
      %65 = sbr.rel (0) target = $region53
    $region52: #{tpu_custom_call.1} parent=1 // pred_region
      %66 = dma.done [#allocation7], 3456
    $region53: #{tpu_custom_call.1} parent=1 // pred_fallthru
      _
    %v68 = vld [vmem:[%s0] sm:$0xf]
    %v69 = vld [vmem:[%s0 + $0x4] sm:$0xf]
    %v70 = vld [vmem:[%s0 + $0xc] sm:$0xf]
    %v71 = vld [vmem:[%s0 + $0x10] sm:$0xf]
    %v72 = vld [vmem:[#allocation3] sm:$0xff]
    %v73 = vld [vmem:[#allocation3 + $0x8] sm:$0xf]
    %v74 = vld [vmem:[#allocation3 + $0xc] sm:$0xff]
    %v75 = vld [vmem:[#allocation3 + $0x14] sm:$0xf]
    %v76 = vld [vmem:[#allocation3 + $0x18] sm:$0xff]
    %v77 = vld [vmem:[#allocation3 + $0x20] sm:$0xf]
    %v78 = vld [vmem:[#allocation3 + $0x24] sm:$0xff]
    %v79 = vld [vmem:[#allocation3 + $0x2c] sm:$0xf]
    %v80 = vld [vmem:[#allocation3 + $0x30] sm:$0xff]
    %v81 = vld [vmem:[#allocation3 + $0x38] sm:$0xf]
    %v82 = vld [vmem:[#allocation3 + $0x3c] sm:$0xff]
    %v83 = vld [vmem:[#allocation3 + $0x44] sm:$0xf]
    %v84 = vld [vmem:[#allocation3 + $0x48] sm:$0xff]
    %v85 = vld [vmem:[#allocation3 + $0x50] sm:$0xf]
    %v86 = vld [vmem:[#allocation3 + $0x54] sm:$0xff]
    %v87 = vld [vmem:[#allocation3 + $0x5c] sm:$0xf]
    %v88 = vld [vmem:[#allocation3 + $0x60] sm:$0xff]
    %v89 = vld [vmem:[#allocation3 + $0x68] sm:$0xf]
    %v90 = vld [vmem:[%s0 + $0x8] sm:$0x1]
    %v91 = vld [vmem:[%s0 + $0x14] sm:$0x1]
    %vm92 = vsmask.f32 3328
    %vm93 = vsmask.f32 7440
    %vm94 = vmor %vm92, %vm93
    %v96 = vshrl.u32 %v68, 16
    %v98 = vrot.slane %v96, 4
    %v99 = vshll.u32 %v68, 16
    %v101 = vrot.slane %v99, 5
    %v102 = vor.u32 %v98, %v101
    %v103 = vrot.slane %v102, 4
    %v105 = vshll.u32 %v69, 16
    %v107 = vrot.slane %v105, 5
    %v108 = vsel %vm94, %v103, %v107
    %v109 = vshrl.u32 %v69, 16
    %v111 = vrot.slane %v109, 4
    %v112 = vor.u32 %v111, %v107
    %v113 = vrot.slane %v112, 4
    %v115 = vshll.u32 %v90, 16
    %v117 = vrot.slane %v115, 5
    %v118 = vsel %vm94, %v113, %v117
    %v120 = vshrl.u32 %v70, 16
    %v122 = vrot.slane %v120, 4
    %v123 = vshll.u32 %v70, 16
    %v125 = vrot.slane %v123, 5
    %v126 = vor.u32 %v122, %v125
    %v127 = vrot.slane %v126, 4
    %v129 = vshll.u32 %v71, 16
    %v131 = vrot.slane %v129, 5
    %v132 = vsel %vm94, %v127, %v131
    %v133 = vshrl.u32 %v71, 16
    %v135 = vrot.slane %v133, 4
    %v136 = vor.u32 %v135, %v131
    %v137 = vrot.slane %v136, 4
    %v139 = vshll.u32 %v91, 16
    %v141 = vrot.slane %v139, 5
    %v142 = vsel %vm94, %v137, %v141
    %s143 = scalar_lea.vmem [#allocation3], 108
    %v144 = vld [vmem:[%s143] sm:$0xff]
    %v145 = vld [vmem:[%s143 + $0x8] sm:$0xf]
    %v146 = vld [vmem:[%s143 + $0xc] sm:$0xff]
    %v147 = vld [vmem:[%s143 + $0x14] sm:$0xf]
    %v148 = vld [vmem:[%s143 + $0x18] sm:$0xff]
    %v149 = vld [vmem:[%s143 + $0x20] sm:$0xf]
    %v150 = vld [vmem:[%s143 + $0x24] sm:$0xff]
    %v151 = vld [vmem:[%s143 + $0x2c] sm:$0xf]
    %v152 = vld [vmem:[%s143 + $0x30] sm:$0xff]
    %v153 = vld [vmem:[%s143 + $0x38] sm:$0xf]
    %v154 = vld [vmem:[%s143 + $0x3c] sm:$0xff]
    %v155 = vld [vmem:[%s143 + $0x44] sm:$0xf]
    %v156 = vld [vmem:[%s143 + $0x48] sm:$0xff]
    %v157 = vld [vmem:[%s143 + $0x50] sm:$0xf]
    %v158 = vld [vmem:[%s143 + $0x54] sm:$0xff]
    %v159 = vld [vmem:[%s143 + $0x5c] sm:$0xf]
    %v160 = vld [vmem:[%s143 + $0x60] sm:$0xff]
    %v161 = vld [vmem:[%s143 + $0x68] sm:$0xf]
    %v162 = vunpack.c.l.b16 %v108
    %v163 = vunpack.c.l.b16 %v118
    %v164 = vunpack.c.l.b16 %v132
    %v165 = vunpack.c.l.b16 %v142
    %v166 = vpack.c.b16 %v163, %v162
    %v167 = vpack.c.b16 %v165, %v164
    %v186 = vunpack.c.l.b16 %v144
    %v187 = vunpack.c.h.b16 %v144
    %v188 = vunpack.c.l.b16 %v145
    %v189 = vunpack.c.l.b16 %v146
    %v190 = vunpack.c.h.b16 %v146
    %v191 = vunpack.c.l.b16 %v147
    %v192 = vunpack.c.l.b16 %v148
    %v193 = vunpack.c.h.b16 %v148
    %v194 = vunpack.c.l.b16 %v149
    %v195 = vunpack.c.l.b16 %v150
    %v196 = vunpack.c.h.b16 %v150
    %v197 = vunpack.c.l.b16 %v151
    %v198 = vunpack.c.l.b16 %v152
    %v199 = vunpack.c.h.b16 %v152
    %v200 = vunpack.c.l.b16 %v153
    %v201 = vunpack.c.l.b16 %v154
    %v202 = vunpack.c.h.b16 %v154
    %v203 = vunpack.c.l.b16 %v155
    %v204 = vunpack.c.l.b16 %v156
    %v205 = vunpack.c.h.b16 %v156
    %v206 = vunpack.c.l.b16 %v157
    %v207 = vunpack.c.l.b16 %v158
    %v208 = vunpack.c.h.b16 %v158
    %v209 = vunpack.c.l.b16 %v159
    %v210 = vunpack.c.l.b16 %v160
    %v211 = vunpack.c.h.b16 %v160
    %v212 = vunpack.c.l.b16 %v161
    %v213 = vpack.c.b16 %v189, %v186
    %v214 = vpack.c.b16 %v190, %v187
    %v215 = vpack.c.b16 %v191, %v188
    %v216 = vpack.c.b16 %v195, %v192
    %v217 = vpack.c.b16 %v196, %v193
    %v218 = vpack.c.b16 %v197, %v194
    %v219 = vpack.c.b16 %v201, %v198
    %v220 = vpack.c.b16 %v202, %v199
    %v221 = vpack.c.b16 %v203, %v200
    %v222 = vpack.c.b16 %v207, %v204
    %v223 = vpack.c.b16 %v208, %v205
    %v224 = vpack.c.b16 %v209, %v206
    %v225 = vpack.c.b16 %v210, %v210
    %v226 = vpack.c.b16 %v211, %v211
    %v227 = vpack.c.b16 %v212, %v212
    %vm240 = vcmask 588800
    %v242 = vsel %vm240, %v166, 0
    %v245 = vsel %vm240, %v167, 0
    %vm247 = vcmask 1043456
    %v249 = vsel %vm247, %v225, 0
    %v252 = vsel %vm247, %v226, 0
    %v255 = vsel %vm247, %v227, 0
    %257 = vmatprep.subr.bf16.mxu0 %v214
    %258 = vmatpush1.bf16.msra.mxu0 %v213
    %259 = vmatprep.subr.bf16.mxu0 %v217
    %260 = vmatpush1.bf16.msra.mxu0 %v216
    %261 = vmatprep.subr.bf16.mxu0 %v220
    %262 = vmatpush1.bf16.msra.mxu0 %v219
    %263 = vmatprep.subr.bf16.mxu0 %v223
    %264 = vmatpush1.bf16.msra.mxu0 %v222
    %265 = vmatprep.subr.bf16.mxu0 %v252
    %266 = vmatpush1.bf16.msra.mxu0 %v249
    %267 = vmatprep.subr.bf16.mxu0 0
    %268 = vmatpush1.bf16.msra.mxu0 0
    %269 = vmatprep.subr.bf16.mxu0 0
    %270 = vmatpush1.bf16.msra.mxu0 0
    %271 = vmatprep.subr.bf16.mxu0 0
    %272 = vmatpush1.bf16.msra.mxu0 0
    %273 = vmatprep.subr.bf16.mxu0 0
    %274 = vmatpush1.bf16.msra.mxu0 0
    %275 = vmatprep.subr.bf16.mxu0 0
    %276 = vmatpush1.bf16.msra.mxu0 0
    %277 = vmatprep.subr.bf16.mxu0 0
    %278 = vmatpush1.bf16.msra.mxu0 0
    %279 = vmatprep.subr.bf16.mxu0 0
    %280 = vmatpush1.bf16.msra.mxu0 0
    %281 = vmatprep.subr.bf16.mxu0 0
    %282 = vmatpush1.bf16.msra.mxu0 0
    %283 = vmatprep.subr.bf16.mxu0 0
    %284 = vmatpush1.bf16.msra.mxu0 0
    %285 = vmatprep.subr.bf16.mxu0 0
    %286 = vmatpush1.bf16.msra.mxu0 0
    %287 = vmatprep.subr.bf16.mxu0 0
    %288 = vmatpush1.bf16.msra.mxu0 0
    %289 = vmatprep.mubr.bf16.mxu0 0
    %290 = vmatmul.mubr.bf16.gmra.mrb[0].mxu0 %v242
    %v291 = vpop.f32.mrb[0].mxu0
    %v292 = vadd.f32 0.0, %v291
    %v293 = vpop.f32.mrb[0].mxu0
    %v294 = vadd.f32 0.0, %v293
    %v295 = vpop.f32.mrb[0].mxu0
    %v296 = vadd.f32 0.0, %v295
    %v297 = vpop.f32.mrb[0].mxu0
    %v298 = vadd.f32 0.0, %v297
    %299 = vmatprep.mubr.bf16.mxu0 0
    %300 = vmatmul.mubr.bf16.gmra.mrb[0].mxu0 %v245
    %v301 = vpop.f32.mrb[0].mxu0
    %v302 = vadd.f32 0.0, %v301
    %v303 = vpop.f32.mrb[0].mxu0
    %v304 = vadd.f32 0.0, %v303
    %v305 = vpop.f32.mrb[0].mxu0
    %v306 = vadd.f32 0.0, %v305
    %v307 = vpop.f32.mrb[0].mxu0
    %v308 = vadd.f32 0.0, %v307
    %309 = vdwg.mxu0
    %310 = vmatprep.subr.bf16.mxu0 0
    %311 = vmatpush1.bf16.msra.mxu0 %v215
    %312 = vmatprep.subr.bf16.mxu0 0
    %313 = vmatpush1.bf16.msra.mxu0 %v218
    %314 = vmatprep.subr.bf16.mxu0 0
    %315 = vmatpush1.bf16.msra.mxu0 %v221
    %316 = vmatprep.subr.bf16.mxu0 0
    %317 = vmatpush1.bf16.msra.mxu0 %v224
    %318 = vmatprep.subr.bf16.mxu0 0
    %319 = vmatpush1.bf16.msra.mxu0 %v255
    %320 = vmatprep.subr.bf16.mxu0 0
    %321 = vmatpush1.bf16.msra.mxu0 0
    %322 = vmatprep.subr.bf16.mxu0 0
    %323 = vmatpush1.bf16.msra.mxu0 0
    %324 = vmatprep.subr.bf16.mxu0 0
    %325 = vmatpush1.bf16.msra.mxu0 0
    %326 = vmatprep.subr.bf16.mxu0 0
    %327 = vmatpush1.bf16.msra.mxu0 0
    %328 = vmatprep.subr.bf16.mxu0 0
    %329 = vmatpush1.bf16.msra.mxu0 0
    %330 = vmatprep.subr.bf16.mxu0 0
    %331 = vmatpush1.bf16.msra.mxu0 0
    %332 = vmatprep.subr.bf16.mxu0 0
    %333 = vmatpush1.bf16.msra.mxu0 0
    %334 = vmatprep.subr.bf16.mxu0 0
    %335 = vmatpush1.bf16.msra.mxu0 0
    %336 = vmatprep.subr.bf16.mxu0 0
    %337 = vmatpush1.bf16.msra.mxu0 0
    %338 = vmatprep.subr.bf16.mxu0 0
    %339 = vmatpush1.bf16.msra.mxu0 0
    %340 = vmatprep.subr.bf16.mxu0 0
    %341 = vmatpush1.bf16.msra.mxu0 0
    %342 = vmatprep.mubr.bf16.mxu0 0
    %343 = vmatmul.mubr.bf16.gmra.mrb[0].mxu0 %v242
    %v344 = vpop.f32.mrb[0].mxu0
    %v345 = vadd.f32 0.0, %v344
    %v346 = vpop.f32.mrb[0].mxu0
    %v347 = vpop.f32.mrb[0].mxu0
    %v348 = vadd.f32 0.0, %v347
    %v349 = vpop.f32.mrb[0].mxu0
    %350 = vmatprep.mubr.bf16.mxu0 0
    %351 = vmatmul.mubr.bf16.gmra.mrb[0].mxu0 %v245
    %v352 = vpop.f32.mrb[0].mxu0
    %v353 = vadd.f32 0.0, %v352
    %v354 = vpop.f32.mrb[0].mxu0
    %v355 = vpop.f32.mrb[0].mxu0
    %v356 = vadd.f32 0.0, %v355
    %v357 = vpop.f32.mrb[0].mxu0
    %358 = vdwg.mxu0
    %v363 = vunpack.c.l.b16 %v68
    %v364 = vunpack.c.l.b16 %v69
    %v365 = vunpack.c.l.b16 %v70
    %v366 = vunpack.c.l.b16 %v71
    %v367 = vpack.c.b16 %v364, %v363
    %v368 = vpack.c.b16 %v366, %v365
    %v387 = vunpack.c.l.b16 %v72
    %v388 = vunpack.c.h.b16 %v72
    %v389 = vunpack.c.l.b16 %v73
    %v390 = vunpack.c.l.b16 %v74
    %v391 = vunpack.c.h.b16 %v74
    %v392 = vunpack.c.l.b16 %v75
    %v393 = vunpack.c.l.b16 %v76
    %v394 = vunpack.c.h.b16 %v76
    %v395 = vunpack.c.l.b16 %v77
    %v396 = vunpack.c.l.b16 %v78
    %v397 = vunpack.c.h.b16 %v78
    %v398 = vunpack.c.l.b16 %v79
    %v399 = vunpack.c.l.b16 %v80
    %v400 = vunpack.c.h.b16 %v80
    %v401 = vunpack.c.l.b16 %v81
    %v402 = vunpack.c.l.b16 %v82
    %v403 = vunpack.c.h.b16 %v82
    %v404 = vunpack.c.l.b16 %v83
    %v405 = vunpack.c.l.b16 %v84
    %v406 = vunpack.c.h.b16 %v84
    %v407 = vunpack.c.l.b16 %v85
    %v408 = vunpack.c.l.b16 %v86
    %v409 = vunpack.c.h.b16 %v86
    %v410 = vunpack.c.l.b16 %v87
    %v411 = vunpack.c.l.b16 %v88
    %v412 = vunpack.c.h.b16 %v88
    %v413 = vunpack.c.l.b16 %v89
    %v414 = vpack.c.b16 %v390, %v387
    %v415 = vpack.c.b16 %v391, %v388
    %v416 = vpack.c.b16 %v392, %v389
    %v417 = vpack.c.b16 %v396, %v393
    %v418 = vpack.c.b16 %v397, %v394
    %v419 = vpack.c.b16 %v398, %v395
    %v420 = vpack.c.b16 %v402, %v399
    %v421 = vpack.c.b16 %v403, %v400
    %v422 = vpack.c.b16 %v404, %v401
    %v423 = vpack.c.b16 %v408, %v405
    %v424 = vpack.c.b16 %v409, %v406
    %v425 = vpack.c.b16 %v410, %v407
    %v426 = vpack.c.b16 %v411, %v411
    %v427 = vpack.c.b16 %v412, %v412
    %v428 = vpack.c.b16 %v413, %v413
    %v442 = vsel %vm240, %v367, 0
    %v445 = vsel %vm240, %v368, 0
    %v448 = vsel %vm247, %v426, 0
    %v451 = vsel %vm247, %v427, 0
    %v454 = vsel %vm247, %v428, 0
    %456 = vmatprep.subr.bf16.mxu0 %v415
    %457 = vmatpush1.bf16.msra.mxu0 %v414
    %458 = vmatprep.subr.bf16.mxu0 %v418
    %459 = vmatpush1.bf16.msra.mxu0 %v417
    %460 = vmatprep.subr.bf16.mxu0 %v421
    %461 = vmatpush1.bf16.msra.mxu0 %v420
    %462 = vmatprep.subr.bf16.mxu0 %v424
    %463 = vmatpush1.bf16.msra.mxu0 %v423
    %464 = vmatprep.subr.bf16.mxu0 %v451
    %465 = vmatpush1.bf16.msra.mxu0 %v448
    %466 = vmatprep.subr.bf16.mxu0 0
    %467 = vmatpush1.bf16.msra.mxu0 0
    %468 = vmatprep.subr.bf16.mxu0 0
    %469 = vmatpush1.bf16.msra.mxu0 0
    %470 = vmatprep.subr.bf16.mxu0 0
    %471 = vmatpush1.bf16.msra.mxu0 0
    %472 = vmatprep.subr.bf16.mxu0 0
    %473 = vmatpush1.bf16.msra.mxu0 0
    %474 = vmatprep.subr.bf16.mxu0 0
    %475 = vmatpush1.bf16.msra.mxu0 0
    %476 = vmatprep.subr.bf16.mxu0 0
    %477 = vmatpush1.bf16.msra.mxu0 0
    %478 = vmatprep.subr.bf16.mxu0 0
    %479 = vmatpush1.bf16.msra.mxu0 0
    %480 = vmatprep.subr.bf16.mxu0 0
    %481 = vmatpush1.bf16.msra.mxu0 0
    %482 = vmatprep.subr.bf16.mxu0 0
    %483 = vmatpush1.bf16.msra.mxu0 0
    %484 = vmatprep.subr.bf16.mxu0 0
    %485 = vmatpush1.bf16.msra.mxu0 0
    %486 = vmatprep.subr.bf16.mxu0 0
    %487 = vmatpush1.bf16.msra.mxu0 0
    %488 = vmatprep.mubr.bf16.mxu0 0
    %489 = vmatmul.mubr.bf16.gmra.mrb[0].mxu0 %v442
    %v490 = vpop.f32.mrb[0].mxu0
    %v491 = vadd.f32 %v292, %v490
    %v492 = vpop.f32.mrb[0].mxu0
    %v493 = vadd.f32 %v294, %v492
    %v494 = vpop.f32.mrb[0].mxu0
    %v495 = vadd.f32 %v296, %v494
    %v496 = vpop.f32.mrb[0].mxu0
    %v497 = vadd.f32 %v298, %v496
    %498 = vmatprep.mubr.bf16.mxu0 0
    %499 = vmatmul.mubr.bf16.gmra.mrb[0].mxu0 %v445
    %v500 = vpop.f32.mrb[0].mxu0
    %v501 = vadd.f32 %v302, %v500
    %v502 = vpop.f32.mrb[0].mxu0
    %v503 = vadd.f32 %v304, %v502
    %v504 = vpop.f32.mrb[0].mxu0
    %v505 = vadd.f32 %v306, %v504
    %v506 = vpop.f32.mrb[0].mxu0
    %v507 = vadd.f32 %v308, %v506
    %508 = vdwg.mxu0
    %509 = vmatprep.subr.bf16.mxu0 0
    %510 = vmatpush1.bf16.msra.mxu0 %v416
    %511 = vmatprep.subr.bf16.mxu0 0
    %512 = vmatpush1.bf16.msra.mxu0 %v419
    %513 = vmatprep.subr.bf16.mxu0 0
    %514 = vmatpush1.bf16.msra.mxu0 %v422
    %515 = vmatprep.subr.bf16.mxu0 0
    %516 = vmatpush1.bf16.msra.mxu0 %v425
    %517 = vmatprep.subr.bf16.mxu0 0
    %518 = vmatpush1.bf16.msra.mxu0 %v454
    %519 = vmatprep.subr.bf16.mxu0 0
    %520 = vmatpush1.bf16.msra.mxu0 0
    %521 = vmatprep.subr.bf16.mxu0 0
    %522 = vmatpush1.bf16.msra.mxu0 0
    %523 = vmatprep.subr.bf16.mxu0 0
    %524 = vmatpush1.bf16.msra.mxu0 0
    %525 = vmatprep.subr.bf16.mxu0 0
    %526 = vmatpush1.bf16.msra.mxu0 0
    %527 = vmatprep.subr.bf16.mxu0 0
    %528 = vmatpush1.bf16.msra.mxu0 0
    %529 = vmatprep.subr.bf16.mxu0 0
    %530 = vmatpush1.bf16.msra.mxu0 0
    %531 = vmatprep.subr.bf16.mxu0 0
    %532 = vmatpush1.bf16.msra.mxu0 0
    %533 = vmatprep.subr.bf16.mxu0 0
    %534 = vmatpush1.bf16.msra.mxu0 0
    %535 = vmatprep.subr.bf16.mxu0 0
    %536 = vmatpush1.bf16.msra.mxu0 0
    %537 = vmatprep.subr.bf16.mxu0 0
    %538 = vmatpush1.bf16.msra.mxu0 0
    %539 = vmatprep.subr.bf16.mxu0 0
    %540 = vmatpush1.bf16.msra.mxu0 0
    %541 = vmatprep.mubr.bf16.mxu0 0
    %542 = vmatmul.mubr.bf16.gmra.mrb[0].mxu0 %v442
    %v543 = vpop.f32.mrb[0].mxu0
    %v544 = vadd.f32 %v345, %v543
    %v545 = vpop.f32.mrb[0].mxu0
    %v546 = vpop.f32.mrb[0].mxu0
    %v547 = vadd.f32 %v348, %v546
    %v548 = vpop.f32.mrb[0].mxu0
    %549 = vmatprep.mubr.bf16.mxu0 0
    %550 = vmatmul.mubr.bf16.gmra.mrb[0].mxu0 %v445
    %v551 = vpop.f32.mrb[0].mxu0
    %v552 = vadd.f32 %v353, %v551
    %v553 = vpop.f32.mrb[0].mxu0
    %v554 = vpop.f32.mrb[0].mxu0
    %v555 = vadd.f32 %v356, %v554
    %v556 = vpop.f32.mrb[0].mxu0
    %557 = vdwg.mxu0
    %v558 = vld [vmem:[%s0] sm:$0xe]
    %v559 = vld [vmem:[%s0 + $0xc] sm:$0xe]
    %vm564 = vcmask 1042432
    %vm565 = vcmask 1046532
    %vm566 = vmor %vm564, %vm565
    %v567 = vrot.slane %v558, 5
    %v568 = vrot.slane %v567, 4
    %v569 = vrot.slane %v69, 5
    %v570 = vsel %vm566, %v568, %v569
    %v571 = vrot.slane %v569, 4
    %v572 = vrot.slane %v90, 5
    %v573 = vsel %vm566, %v571, %v572
    %v574 = vrot.slane %v559, 5
    %v575 = vrot.slane %v574, 4
    %v576 = vrot.slane %v71, 5
    %v577 = vsel %vm566, %v575, %v576
    %v578 = vrot.slane %v576, 4
    %v579 = vrot.slane %v91, 5
    %v580 = vsel %vm566, %v578, %v579
    %s581 = scalar_lea.vmem [#allocation3], 216
    %v582 = vld [vmem:[%s581] sm:$0xff]
    %v583 = vld [vmem:[%s581 + $0x8] sm:$0xf]
    %v584 = vld [vmem:[%s581 + $0xc] sm:$0xff]
    %v585 = vld [vmem:[%s581 + $0x14] sm:$0xf]
    %v586 = vld [vmem:[%s581 + $0x18] sm:$0xff]
    %v587 = vld [vmem:[%s581 + $0x20] sm:$0xf]
    %v588 = vld [vmem:[%s581 + $0x24] sm:$0xff]
    %v589 = vld [vmem:[%s581 + $0x2c] sm:$0xf]
    %v590 = vld [vmem:[%s581 + $0x30] sm:$0xff]
    %v591 = vld [vmem:[%s581 + $0x38] sm:$0xf]
    %v592 = vld [vmem:[%s581 + $0x3c] sm:$0xff]
    %v593 = vld [vmem:[%s581 + $0x44] sm:$0xf]
    %v594 = vld [vmem:[%s581 + $0x48] sm:$0xff]
    %v595 = vld [vmem:[%s581 + $0x50] sm:$0xf]
    %v596 = vld [vmem:[%s581 + $0x54] sm:$0xff]
    %v597 = vld [vmem:[%s581 + $0x5c] sm:$0xf]
    %v598 = vld [vmem:[%s581 + $0x60] sm:$0xff]
    %v599 = vld [vmem:[%s581 + $0x68] sm:$0xf]
    %v600 = vunpack.c.l.b16 %v570
    %v601 = vunpack.c.l.b16 %v573
    %v602 = vunpack.c.l.b16 %v577
    %v603 = vunpack.c.l.b16 %v580
    %v604 = vpack.c.b16 %v601, %v600
    %v605 = vpack.c.b16 %v603, %v602
    %v624 = vunpack.c.l.b16 %v582
    %v625 = vunpack.c.h.b16 %v582
    %v626 = vunpack.c.l.b16 %v583
    %v627 = vunpack.c.l.b16 %v584
    %v628 = vunpack.c.h.b16 %v584
    %v629 = vunpack.c.l.b16 %v585
    %v630 = vunpack.c.l.b16 %v586
    %v631 = vunpack.c.h.b16 %v586
    %v632 = vunpack.c.l.b16 %v587
    %v633 = vunpack.c.l.b16 %v588
    %v634 = vunpack.c.h.b16 %v588
    %v635 = vunpack.c.l.b16 %v589
    %v636 = vunpack.c.l.b16 %v590
    %v637 = vunpack.c.h.b16 %v590
    %v638 = vunpack.c.l.b16 %v591
    %v639 = vunpack.c.l.b16 %v592
    %v640 = vunpack.c.h.b16 %v592
    %v641 = vunpack.c.l.b16 %v593
    %v642 = vunpack.c.l.b16 %v594
    %v643 = vunpack.c.h.b16 %v594
    %v644 = vunpack.c.l.b16 %v595
    %v645 = vunpack.c.l.b16 %v596
    %v646 = vunpack.c.h.b16 %v596
    %v647 = vunpack.c.l.b16 %v597
    %v648 = vunpack.c.l.b16 %v598
    %v649 = vunpack.c.h.b16 %v598
    %v650 = vunpack.c.l.b16 %v599
    %v651 = vpack.c.b16 %v627, %v624
    %v652 = vpack.c.b16 %v628, %v625
    %v653 = vpack.c.b16 %v629, %v626
    %v654 = vpack.c.b16 %v633, %v630
    %v655 = vpack.c.b16 %v634, %v631
    %v656 = vpack.c.b16 %v635, %v632
    %v657 = vpack.c.b16 %v639, %v636
    %v658 = vpack.c.b16 %v640, %v637
    %v659 = vpack.c.b16 %v641, %v638
    %v660 = vpack.c.b16 %v645, %v642
    %v661 = vpack.c.b16 %v646, %v643
    %v662 = vpack.c.b16 %v647, %v644
    %v663 = vpack.c.b16 %v648, %v648
    %v664 = vpack.c.b16 %v649, %v649
    %v665 = vpack.c.b16 %v650, %v650
    %v679 = vsel %vm240, %v604, 0
    %v682 = vsel %vm240, %v605, 0
    %v685 = vsel %vm247, %v663, 0
    %v688 = vsel %vm247, %v664, 0
    %v691 = vsel %vm247, %v665, 0
    %693 = vmatprep.subr.bf16.mxu0 %v652
    %694 = vmatpush1.bf16.msra.mxu0 %v651
    %695 = vmatprep.subr.bf16.mxu0 %v655
    %696 = vmatpush1.bf16.msra.mxu0 %v654
    %697 = vmatprep.subr.bf16.mxu0 %v658
    %698 = vmatpush1.bf16.msra.mxu0 %v657
    %699 = vmatprep.subr.bf16.mxu0 %v661
    %700 = vmatpush1.bf16.msra.mxu0 %v660
    %701 = vmatprep.subr.bf16.mxu0 %v688
    %702 = vmatpush1.bf16.msra.mxu0 %v685
    %703 = vmatprep.subr.bf16.mxu0 0
    %704 = vmatpush1.bf16.msra.mxu0 0
    %705 = vmatprep.subr.bf16.mxu0 0
    %706 = vmatpush1.bf16.msra.mxu0 0
    %707 = vmatprep.subr.bf16.mxu0 0
    %708 = vmatpush1.bf16.msra.mxu0 0
    %709 = vmatprep.subr.bf16.mxu0 0
    %710 = vmatpush1.bf16.msra.mxu0 0
    %711 = vmatprep.subr.bf16.mxu0 0
    %712 = vmatpush1.bf16.msra.mxu0 0
    %713 = vmatprep.subr.bf16.mxu0 0
    %714 = vmatpush1.bf16.msra.mxu0 0
    %715 = vmatprep.subr.bf16.mxu0 0
    %716 = vmatpush1.bf16.msra.mxu0 0
    %717 = vmatprep.subr.bf16.mxu0 0
    %718 = vmatpush1.bf16.msra.mxu0 0
    %719 = vmatprep.subr.bf16.mxu0 0
    %720 = vmatpush1.bf16.msra.mxu0 0
    %721 = vmatprep.subr.bf16.mxu0 0
    %722 = vmatpush1.bf16.msra.mxu0 0
    %723 = vmatprep.subr.bf16.mxu0 0
    %724 = vmatpush1.bf16.msra.mxu0 0
    %725 = vmatprep.mubr.bf16.mxu0 0
    %726 = vmatmul.mubr.bf16.gmra.mrb[0].mxu0 %v679
    %v727 = vpop.f32.mrb[0].mxu0
    %v728 = vadd.f32 0.0, %v727
    %v729 = vpop.f32.mrb[0].mxu0
    %v730 = vadd.f32 0.0, %v729
    %v731 = vpop.f32.mrb[0].mxu0
    %v732 = vadd.f32 0.0, %v731
    %v733 = vpop.f32.mrb[0].mxu0
    %v734 = vadd.f32 0.0, %v733
    %735 = vmatprep.mubr.bf16.mxu0 0
    %736 = vmatmul.mubr.bf16.gmra.mrb[0].mxu0 %v682
    %v737 = vpop.f32.mrb[0].mxu0
    %v738 = vadd.f32 0.0, %v737
    %v739 = vpop.f32.mrb[0].mxu0
    %v740 = vadd.f32 0.0, %v739
    %v741 = vpop.f32.mrb[0].mxu0
    %v742 = vadd.f32 0.0, %v741
    %v743 = vpop.f32.mrb[0].mxu0
    %v744 = vadd.f32 0.0, %v743
    %745 = vdwg.mxu0
    %746 = vmatprep.subr.bf16.mxu0 0
    %747 = vmatpush1.bf16.msra.mxu0 %v653
    %748 = vmatprep.subr.bf16.mxu0 0
    %749 = vmatpush1.bf16.msra.mxu0 %v656
    %750 = vmatprep.subr.bf16.mxu0 0
    %751 = vmatpush1.bf16.msra.mxu0 %v659
    %752 = vmatprep.subr.bf16.mxu0 0
    %753 = vmatpush1.bf16.msra.mxu0 %v662
    %754 = vmatprep.subr.bf16.mxu0 0
    %755 = vmatpush1.bf16.msra.mxu0 %v691
    %756 = vmatprep.subr.bf16.mxu0 0
    %757 = vmatpush1.bf16.msra.mxu0 0
    %758 = vmatprep.subr.bf16.mxu0 0
    %759 = vmatpush1.bf16.msra.mxu0 0
    %760 = vmatprep.subr.bf16.mxu0 0
    %761 = vmatpush1.bf16.msra.mxu0 0
    %762 = vmatprep.subr.bf16.mxu0 0
    %763 = vmatpush1.bf16.msra.mxu0 0
    %764 = vmatprep.subr.bf16.mxu0 0
    %765 = vmatpush1.bf16.msra.mxu0 0
    %766 = vmatprep.subr.bf16.mxu0 0
    %767 = vmatpush1.bf16.msra.mxu0 0
    %768 = vmatprep.subr.bf16.mxu0 0
    %769 = vmatpush1.bf16.msra.mxu0 0
    %770 = vmatprep.subr.bf16.mxu0 0
    %771 = vmatpush1.bf16.msra.mxu0 0
    %772 = vmatprep.subr.bf16.mxu0 0
    %773 = vmatpush1.bf16.msra.mxu0 0
    %774 = vmatprep.subr.bf16.mxu0 0
    %775 = vmatpush1.bf16.msra.mxu0 0
    %776 = vmatprep.subr.bf16.mxu0 0
    %777 = vmatpush1.bf16.msra.mxu0 0
    %778 = vmatprep.mubr.bf16.mxu0 0
    %779 = vmatmul.mubr.bf16.gmra.mrb[0].mxu0 %v679
    %v780 = vpop.f32.mrb[0].mxu0
    %v781 = vadd.f32 0.0, %v780
    %v782 = vpop.f32.mrb[0].mxu0
    %v783 = vpop.f32.mrb[0].mxu0
    %v784 = vadd.f32 0.0, %v783
    %v785 = vpop.f32.mrb[0].mxu0
    %786 = vmatprep.mubr.bf16.mxu0 0
    %787 = vmatmul.mubr.bf16.gmra.mrb[0].mxu0 %v682
    %v788 = vpop.f32.mrb[0].mxu0
    %v789 = vadd.f32 0.0, %v788
    %v790 = vpop.f32.mrb[0].mxu0
    %v791 = vpop.f32.mrb[0].mxu0
    %v792 = vadd.f32 0.0, %v791
    %v793 = vpop.f32.mrb[0].mxu0
    %794 = vdwg.mxu0
    %v795 = vadd.f32 %v491, %v728
    %v796 = vadd.f32 %v493, %v730
    %v797 = vadd.f32 %v544, %v781
    %v798 = vadd.f32 %v495, %v732
    %v799 = vadd.f32 %v497, %v734
    %v800 = vadd.f32 %v547, %v784
    %v801 = vadd.f32 %v501, %v738
    %v802 = vadd.f32 %v503, %v740
    %v803 = vadd.f32 %v552, %v789
    %v804 = vadd.f32 %v505, %v742
    %v805 = vadd.f32 %v507, %v744
    %v806 = vadd.f32 %v555, %v792
    %v807 = vld [vmem:[%s2] ss:$2 sm:$0x3]
    %v809 = vlaneseq
    %v810 = vshrl.u32 %v809, 7
    %v811 = vsub.s32 0, %v810
    %v812 = vrot.slane %v807, %v811
    %v813 = vlaneseq
    %v814 = vshrl.u32 %v813, 7
    %v815 = vsub.s32 1, %v814
    %v816 = vrot.slane %v807, %v815
    %v819 = vmul.f32 %v796, %v812
    %v820 = vmul.f32 %v797, %v816
    %v821 = vmul.f32 %v799, %v812
    %v822 = vmul.f32 %v800, %v816
    %v823 = vmul.f32 %v802, %v812
    %v824 = vmul.f32 %v803, %v816
    %v825 = vmul.f32 %v805, %v812
    %v826 = vmul.f32 %v806, %v816
    %s827 = scalar_lea.vmem %s2, 1
    %v828 = vld [vmem:[%s827] ss:$2 sm:$0x3]
    %v830 = vlaneseq
    %v831 = vshrl.u32 %v830, 7
    %v832 = vsub.s32 0, %v831
    %v833 = vrot.slane %v828, %v832
    %v834 = vlaneseq
    %v835 = vshrl.u32 %v834, 7
    %v836 = vsub.s32 1, %v835
    %v837 = vrot.slane %v828, %v836
    %v840 = vadd.f32 %v819, %v833
    %v841 = vadd.f32 %v820, %v837
    %v842 = vadd.f32 %v821, %v833
    %v843 = vadd.f32 %v822, %v837
    %v844 = vadd.f32 %v823, %v833
    %v845 = vadd.f32 %v824, %v837
    %v846 = vadd.f32 %v825, %v833
    %v847 = vadd.f32 %v826, %v837
    %v848 = vmax.f32 %v840, 0.0
    %v849 = vmax.f32 %v841, 0.0
    %v850 = vmax.f32 %v842, 0.0
    %v851 = vmax.f32 %v843, 0.0
    %v852 = vmax.f32 %v844, 0.0
    %v853 = vmax.f32 %v845, 0.0
    %v854 = vmax.f32 %v846, 0.0
    %v855 = vmax.f32 %v847, 0.0
    %vm856 = vcmask 1040384
    %vm857 = vsmask.f32 256
    %vm858 = vmand %vm856, %vm857
    %vm859 = vcmask 126980
    %vm860 = vsmask.f32 4352
    %vm861 = vmand %vm859, %vm860
    %vm862 = vmor %vm861, %vm858
    %v863 = vld [vmem:[#allocation2] sm:$0x11]
    %v864 = vsel %vm862, 0, %v863
    %865 = vst [vmem:[#allocation2] sm:$0x11] %v864
    %v866 = vld [vmem:[#allocation2 + $0x18] sm:$0x11]
    %v867 = vsel %vm862, 0, %v866
    %868 = vst [vmem:[#allocation2 + $0x18] sm:$0x11] %v867
    %vm869 = vsmask.f32 7938
    %vm870 = vmand %vm856, %vm869
    %vm871 = vsmask.f32 7954
    %vm872 = vmand %vm859, %vm871
    %vm873 = vmor %vm872, %vm870
    %v874 = vld [vmem:[#allocation2 + $0x10] sm:$0x11]
    %v875 = vsel %vm873, 0, %v874
    %876 = vst [vmem:[#allocation2 + $0x10] sm:$0x11] %v875
    %v877 = vld [vmem:[#allocation2 + $0x28] sm:$0x11]
    %v878 = vsel %vm873, 0, %v877
    %879 = vst [vmem:[#allocation2 + $0x28] sm:$0x11] %v878
    %v880 = vpack.c.bf16 %v850, %v848
    %v881 = vpack.c.bf16 %v851, %v849
    %v882 = vpack.c.bf16 %v854, %v852
    %v883 = vpack.c.bf16 %v855, %v853
    %v888 = vunpack.c.l.b16 %v880
    %v889 = vunpack.c.l.b16 %v881
    %v890 = vunpack.c.h.b16 %v880
    %v891 = vunpack.c.h.b16 %v881
    %v892 = vunpack.c.l.b16 %v882
    %v893 = vunpack.c.l.b16 %v883
    %v894 = vunpack.c.h.b16 %v882
    %v895 = vunpack.c.h.b16 %v883
    %v896 = vpack.c.b16 %v889, %v888
    %v897 = vpack.c.b16 %v891, %v890
    %v898 = vpack.c.b16 %v893, %v892
    %v899 = vpack.c.b16 %v895, %v894
    %vm900 = vsmask.f32 4368
    %vm901 = vmor %vm857, %vm900
    %v903 = vshrl.u32 %v896, 16
    %v905 = vrot.slane %v903, 7
    %v906 = vshll.u32 %v896, 16
    %v908 = vor.u32 %v905, %v906
    %v909 = vrot.slane %v905, 4
    %v911 = vshrl.u32 %v897, 16
    %v913 = vrot.slane %v911, 7
    %v914 = vshll.u32 %v897, 16
    %v916 = vor.u32 %v913, %v914
    %v917 = vsel %vm901, %v909, %v916
    %v918 = vrot.slane %v913, 4
    %v920 = vshrl.u32 %v898, 16
    %v922 = vrot.slane %v920, 7
    %v923 = vshll.u32 %v898, 16
    %v925 = vor.u32 %v922, %v923
    %v926 = vrot.slane %v922, 4
    %v928 = vshrl.u32 %v899, 16
    %v930 = vrot.slane %v928, 7
    %v931 = vshll.u32 %v899, 16
    %v933 = vor.u32 %v930, %v931
    %v934 = vsel %vm901, %v926, %v933
    %v935 = vrot.slane %v930, 4
    %vm942 = vcmask 1043456
    %vm943 = vmand %vm942, %vm869
    %vm944 = vcmask 130052
    %vm945 = vmand %vm944, %vm871
    %vm946 = vmor %vm945, %vm943
    %v947 = vld [vmem:[#allocation2] sm:$0xff]
    %v948 = vsel %vm946, %v908, %v947
    %949 = vst [vmem:[#allocation2] sm:$0xff] %v948
    %vm950 = vcmask 130052
    %vm951 = vmor %vm950, %vm247
    %952 = vst.msk [vmem:[#allocation2 + $0x8] sm:$0xff] %vm951, %v917
    %v953 = vld [vmem:[#allocation2 + $0x10] sm:$0x11]
    %v954 = vsel %vm862, %v918, %v953
    %955 = vst [vmem:[#allocation2 + $0x10] sm:$0x11] %v954
    %v956 = vld [vmem:[#allocation2 + $0x18] sm:$0xff]
    %v957 = vsel %vm946, %v925, %v956
    %958 = vst [vmem:[#allocation2 + $0x18] sm:$0xff] %v957
    %959 = vst.msk [vmem:[#allocation2 + $0x20] sm:$0xff] %vm951, %v934
    %v960 = vld [vmem:[#allocation2 + $0x28] sm:$0x11]
    %v961 = vsel %vm862, %v935, %v960
    %962 = vst [vmem:[#allocation2 + $0x28] sm:$0x11] %v961
    %v963 = vld [vmem:[#allocation2] sm:$0xff]
    %v964 = vld [vmem:[#allocation2 + $0x8] sm:$0xff]
    %v965 = vld [vmem:[#allocation2 + $0x18] sm:$0xff]
    %v966 = vld [vmem:[#allocation2 + $0x20] sm:$0xff]
    %v967 = vld [vmem:[#allocation6] sm:$0xf]
    %v968 = vld [vmem:[#allocation6 + $0x4] sm:$0xf]
    %v969 = vld [vmem:[#allocation6 + $0x8] sm:$0xf]
    %v970 = vld [vmem:[#allocation6 + $0xc] sm:$0xf]
    %v971 = vld [vmem:[#allocation6 + $0x10] sm:$0xf]
    %v972 = vld [vmem:[#allocation6 + $0x14] sm:$0xf]
    %v973 = vld [vmem:[#allocation6 + $0x18] sm:$0xf]
    %v974 = vld [vmem:[#allocation6 + $0x1c] sm:$0xf]
    %v975 = vld [vmem:[#allocation6 + $0x20] sm:$0xf]
    %v976 = vld [vmem:[#allocation6 + $0x24] sm:$0xf]
    %v977 = vld [vmem:[#allocation6 + $0x28] sm:$0xf]
    %v978 = vld [vmem:[#allocation6 + $0x2c] sm:$0xf]
    %v979 = vld [vmem:[#allocation6 + $0x30] sm:$0xf]
    %v980 = vld [vmem:[#allocation6 + $0x34] sm:$0xf]
    %v981 = vld [vmem:[#allocation6 + $0x38] sm:$0xf]
    %v982 = vld [vmem:[#allocation6 + $0x3c] sm:$0xf]
    %v983 = vld [vmem:[#allocation6 + $0x40] sm:$0xf]
    %v984 = vld [vmem:[#allocation6 + $0x44] sm:$0xf]
    %v985 = vld [vmem:[#allocation2 + $0x10] sm:$0x11]
    %v986 = vld [vmem:[#allocation2 + $0x28] sm:$0x11]
    %v988 = vshrl.u32 %v963, 16
    %v990 = vrot.slane %v988, 4
    %v991 = vshll.u32 %v963, 16
    %v993 = vrot.slane %v991, 5
    %v994 = vor.u32 %v990, %v993
    %v995 = vrot.slane %v994, 4
    %v997 = vshll.u32 %v964, 16
    %v999 = vrot.slane %v997, 5
    %v1000 = vsel %vm94, %v995, %v999
    %v1001 = vshrl.u32 %v964, 16
    %v1003 = vrot.slane %v1001, 4
    %v1004 = vor.u32 %v1003, %v999
    %v1005 = vrot.slane %v1004, 4
    %v1007 = vshll.u32 %v985, 16
    %v1009 = vrot.slane %v1007, 5
    %v1010 = vsel %vm94, %v1005, %v1009
    %v1012 = vshrl.u32 %v965, 16
    %v1014 = vrot.slane %v1012, 4
    %v1015 = vshll.u32 %v965, 16
    %v1017 = vrot.slane %v1015, 5
    %v1018 = vor.u32 %v1014, %v1017
    %v1019 = vrot.slane %v1018, 4
    %v1021 = vshll.u32 %v966, 16
    %v1023 = vrot.slane %v1021, 5
    %v1024 = vsel %vm94, %v1019, %v1023
    %v1025 = vshrl.u32 %v966, 16
    %v1027 = vrot.slane %v1025, 4
    %v1028 = vor.u32 %v1027, %v1023
    %v1029 = vrot.slane %v1028, 4
    %v1031 = vshll.u32 %v986, 16
    %v1033 = vrot.slane %v1031, 5
    %v1034 = vsel %vm94, %v1029, %v1033
    %s1035 = scalar_lea.vmem [#allocation6], 72
    %v1036 = vld [vmem:[%s1035] sm:$0xf]
    %v1037 = vld [vmem:[%s1035 + $0x4] sm:$0xf]
    %v1038 = vld [vmem:[%s1035 + $0x8] sm:$0xf]
    %v1039 = vld [vmem:[%s1035 + $0xc] sm:$0xf]
    %v1040 = vld [vmem:[%s1035 + $0x10] sm:$0xf]
    %v1041 = vld [vmem:[%s1035 + $0x14] sm:$0xf]
    %v1042 = vld [vmem:[%s1035 + $0x18] sm:$0xf]
    %v1043 = vld [vmem:[%s1035 + $0x1c] sm:$0xf]
    %v1044 = vld [vmem:[%s1035 + $0x20] sm:$0xf]
    %v1045 = vld [vmem:[%s1035 + $0x24] sm:$0xf]
    %v1046 = vld [vmem:[%s1035 + $0x28] sm:$0xf]
    %v1047 = vld [vmem:[%s1035 + $0x2c] sm:$0xf]
    %v1048 = vld [vmem:[%s1035 + $0x30] sm:$0xf]
    %v1049 = vld [vmem:[%s1035 + $0x34] sm:$0xf]
    %v1050 = vld [vmem:[%s1035 + $0x38] sm:$0xf]
    %v1051 = vld [vmem:[%s1035 + $0x3c] sm:$0xf]
    %v1052 = vld [vmem:[%s1035 + $0x40] sm:$0xf]
    %v1053 = vld [vmem:[%s1035 + $0x44] sm:$0xf]
    %v1054 = vunpack.c.l.b16 %v1000
    %v1055 = vunpack.c.h.b16 %v1000
    %v1056 = vunpack.c.l.b16 %v1010
    %v1057 = vunpack.c.h.b16 %v1010
    %v1058 = vunpack.c.l.b16 %v1024
    %v1059 = vunpack.c.h.b16 %v1024
    %v1060 = vunpack.c.l.b16 %v1034
    %v1061 = vunpack.c.h.b16 %v1034
    %v1062 = vpack.c.b16 %v1056, %v1054
    %v1063 = vpack.c.b16 %v1057, %v1055
    %v1064 = vpack.c.b16 %v1060, %v1058
    %v1065 = vpack.c.b16 %v1061, %v1059
    %v1086 = vunpack.c.l.b16 %v1036
    %v1087 = vunpack.c.l.b16 %v1037
    %v1088 = vunpack.c.l.b16 %v1038
    %v1089 = vunpack.c.l.b16 %v1039
    %v1090 = vunpack.c.l.b16 %v1040
    %v1091 = vunpack.c.l.b16 %v1041
    %v1092 = vunpack.c.l.b16 %v1042
    %v1093 = vunpack.c.l.b16 %v1043
    %v1094 = vunpack.c.l.b16 %v1044
    %v1095 = vunpack.c.l.b16 %v1045
    %v1096 = vunpack.c.l.b16 %v1046
    %v1097 = vunpack.c.l.b16 %v1047
    %v1098 = vunpack.c.l.b16 %v1048
    %v1099 = vunpack.c.l.b16 %v1049
    %v1100 = vunpack.c.l.b16 %v1050
    %v1101 = vunpack.c.l.b16 %v1051
    %v1102 = vunpack.c.l.b16 %v1052
    %v1103 = vunpack.c.l.b16 %v1053
    %v1104 = vpack.c.b16 %v1087, %v1086
    %v1105 = vpack.c.b16 %v1089, %v1088
    %v1106 = vpack.c.b16 %v1091, %v1090
    %v1107 = vpack.c.b16 %v1093, %v1092
    %v1108 = vpack.c.b16 %v1095, %v1094
    %v1109 = vpack.c.b16 %v1097, %v1096
    %v1110 = vpack.c.b16 %v1099, %v1098
    %v1111 = vpack.c.b16 %v1101, %v1100
    %v1112 = vpack.c.b16 %v1103, %v1102
    %vm1122 = vcmask 130048
    %v1124 = vsel %vm1122, %v1063, 0
    %v1127 = vsel %vm1122, %v1065, 0
    %1129 = vmatprep.subr.bf16.mxu0 0
    %1130 = vmatpush1.bf16.msra.mxu0 %v1104
    %1131 = vmatprep.subr.bf16.mxu0 0
    %1132 = vmatpush1.bf16.msra.mxu0 %v1105
    %1133 = vmatprep.subr.bf16.mxu0 0
    %1134 = vmatpush1.bf16.msra.mxu0 %v1106
    %1135 = vmatprep.subr.bf16.mxu0 0
    %1136 = vmatpush1.bf16.msra.mxu0 %v1107
    %1137 = vmatprep.subr.bf16.mxu0 0
    %1138 = vmatpush1.bf16.msra.mxu0 %v1108
    %1139 = vmatprep.subr.bf16.mxu0 0
    %1140 = vmatpush1.bf16.msra.mxu0 %v1109
    %1141 = vmatprep.subr.bf16.mxu0 0
    %1142 = vmatpush1.bf16.msra.mxu0 %v1110
    %1143 = vmatprep.subr.bf16.mxu0 0
    %1144 = vmatpush1.bf16.msra.mxu0 %v1111
    %1145 = vmatprep.subr.bf16.mxu0 0
    %1146 = vmatpush1.bf16.msra.mxu0 %v1112
    %1147 = vmatprep.subr.bf16.mxu0 0
    %1148 = vmatpush1.bf16.msra.mxu0 0
    %1149 = vmatprep.subr.bf16.mxu0 0
    %1150 = vmatpush1.bf16.msra.mxu0 0
    %1151 = vmatprep.subr.bf16.mxu0 0
    %1152 = vmatpush1.bf16.msra.mxu0 0
    %1153 = vmatprep.subr.bf16.mxu0 0
    %1154 = vmatpush1.bf16.msra.mxu0 0
    %1155 = vmatprep.subr.bf16.mxu0 0
    %1156 = vmatpush1.bf16.msra.mxu0 0
    %1157 = vmatprep.subr.bf16.mxu0 0
    %1158 = vmatpush1.bf16.msra.mxu0 0
    %1159 = vmatprep.subr.bf16.mxu0 0
    %1160 = vmatpush1.bf16.msra.mxu0 0
    %1161 = vmatprep.mubr.bf16.mxu0 %v1124
    %1162 = vmatmul.mubr.bf16.gmra.mrb[0].mxu0 %v1062
    %v1163 = vpop.f32.mrb[0].mxu0
    %v1164 = vadd.f32 0.0, %v1163
    %v1165 = vpop.f32.mrb[0].mxu0
    %v1166 = vpop.f32.mrb[0].mxu0
    %v1167 = vadd.f32 0.0, %v1166
    %v1168 = vpop.f32.mrb[0].mxu0
    %1169 = vmatprep.mubr.bf16.mxu0 %v1127
    %1170 = vmatmul.mubr.bf16.gmra.mrb[0].mxu0 %v1064
    %v1171 = vpop.f32.mrb[0].mxu0
    %v1172 = vadd.f32 0.0, %v1171
    %v1173 = vpop.f32.mrb[0].mxu0
    %v1174 = vpop.f32.mrb[0].mxu0
    %v1175 = vadd.f32 0.0, %v1174
    %v1176 = vpop.f32.mrb[0].mxu0
    %1177 = vdwg.mxu0
    %v1182 = vunpack.c.l.b16 %v963
    %v1183 = vunpack.c.h.b16 %v963
    %v1184 = vunpack.c.l.b16 %v964
    %v1185 = vunpack.c.h.b16 %v964
    %v1186 = vunpack.c.l.b16 %v965
    %v1187 = vunpack.c.h.b16 %v965
    %v1188 = vunpack.c.l.b16 %v966
    %v1189 = vunpack.c.h.b16 %v966
    %v1190 = vpack.c.b16 %v1184, %v1182
    %v1191 = vpack.c.b16 %v1185, %v1183
    %v1192 = vpack.c.b16 %v1188, %v1186
    %v1193 = vpack.c.b16 %v1189, %v1187
    %v1214 = vunpack.c.l.b16 %v967
    %v1215 = vunpack.c.l.b16 %v968
    %v1216 = vunpack.c.l.b16 %v969
    %v1217 = vunpack.c.l.b16 %v970
    %v1218 = vunpack.c.l.b16 %v971
    %v1219 = vunpack.c.l.b16 %v972
    %v1220 = vunpack.c.l.b16 %v973
    %v1221 = vunpack.c.l.b16 %v974
    %v1222 = vunpack.c.l.b16 %v975
    %v1223 = vunpack.c.l.b16 %v976
    %v1224 = vunpack.c.l.b16 %v977
    %v1225 = vunpack.c.l.b16 %v978
    %v1226 = vunpack.c.l.b16 %v979
    %v1227 = vunpack.c.l.b16 %v980
    %v1228 = vunpack.c.l.b16 %v981
    %v1229 = vunpack.c.l.b16 %v982
    %v1230 = vunpack.c.l.b16 %v983
    %v1231 = vunpack.c.l.b16 %v984
    %v1232 = vpack.c.b16 %v1215, %v1214
    %v1233 = vpack.c.b16 %v1217, %v1216
    %v1234 = vpack.c.b16 %v1219, %v1218
    %v1235 = vpack.c.b16 %v1221, %v1220
    %v1236 = vpack.c.b16 %v1223, %v1222
    %v1237 = vpack.c.b16 %v1225, %v1224
    %v1238 = vpack.c.b16 %v1227, %v1226
    %v1239 = vpack.c.b16 %v1229, %v1228
    %v1240 = vpack.c.b16 %v1231, %v1230
    %v1251 = vsel %vm1122, %v1191, 0
    %v1254 = vsel %vm1122, %v1193, 0
    %1256 = vmatprep.subr.bf16.mxu0 0
    %1257 = vmatpush1.bf16.msra.mxu0 %v1232
    %1258 = vmatprep.subr.bf16.mxu0 0
    %1259 = vmatpush1.bf16.msra.mxu0 %v1233
    %1260 = vmatprep.subr.bf16.mxu0 0
    %1261 = vmatpush1.bf16.msra.mxu0 %v1234
    %1262 = vmatprep.subr.bf16.mxu0 0
    %1263 = vmatpush1.bf16.msra.mxu0 %v1235
    %1264 = vmatprep.subr.bf16.mxu0 0
    %1265 = vmatpush1.bf16.msra.mxu0 %v1236
    %1266 = vmatprep.subr.bf16.mxu0 0
    %1267 = vmatpush1.bf16.msra.mxu0 %v1237
    %1268 = vmatprep.subr.bf16.mxu0 0
    %1269 = vmatpush1.bf16.msra.mxu0 %v1238
    %1270 = vmatprep.subr.bf16.mxu0 0
    %1271 = vmatpush1.bf16.msra.mxu0 %v1239
    %1272 = vmatprep.subr.bf16.mxu0 0
    %1273 = vmatpush1.bf16.msra.mxu0 %v1240
    %1274 = vmatprep.subr.bf16.mxu0 0
    %1275 = vmatpush1.bf16.msra.mxu0 0
    %1276 = vmatprep.subr.bf16.mxu0 0
    %1277 = vmatpush1.bf16.msra.mxu0 0
    %1278 = vmatprep.subr.bf16.mxu0 0
    %1279 = vmatpush1.bf16.msra.mxu0 0
    %1280 = vmatprep.subr.bf16.mxu0 0
    %1281 = vmatpush1.bf16.msra.mxu0 0
    %1282 = vmatprep.subr.bf16.mxu0 0
    %1283 = vmatpush1.bf16.msra.mxu0 0
    %1284 = vmatprep.subr.bf16.mxu0 0
    %1285 = vmatpush1.bf16.msra.mxu0 0
    %1286 = vmatprep.subr.bf16.mxu0 0
    %1287 = vmatpush1.bf16.msra.mxu0 0
    %1288 = vmatprep.mubr.bf16.mxu0 %v1251
    %1289 = vmatmul.mubr.bf16.gmra.mrb[0].mxu0 %v1190
    %v1290 = vpop.f32.mrb[0].mxu0
    %v1291 = vadd.f32 %v1164, %v1290
    %v1292 = vpop.f32.mrb[0].mxu0
    %v1293 = vpop.f32.mrb[0].mxu0
    %v1294 = vadd.f32 %v1167, %v1293
    %v1295 = vpop.f32.mrb[0].mxu0
    %1296 = vmatprep.mubr.bf16.mxu0 %v1254
    %1297 = vmatmul.mubr.bf16.gmra.mrb[0].mxu0 %v1192
    %v1298 = vpop.f32.mrb[0].mxu0
    %v1299 = vadd.f32 %v1172, %v1298
    %v1300 = vpop.f32.mrb[0].mxu0
    %v1301 = vpop.f32.mrb[0].mxu0
    %v1302 = vadd.f32 %v1175, %v1301
    %v1303 = vpop.f32.mrb[0].mxu0
    %1304 = vdwg.mxu0
    %v1305 = vld [vmem:[#allocation2] sm:$0xee]
    %v1306 = vld [vmem:[#allocation2 + $0x18] sm:$0xee]
    %v1311 = vrot.slane %v1305, 5
    %v1312 = vrot.slane %v1311, 4
    %v1313 = vrot.slane %v964, 5
    %v1314 = vsel %vm566, %v1312, %v1313
    %v1315 = vrot.slane %v1313, 4
    %v1316 = vrot.slane %v985, 5
    %v1317 = vsel %vm566, %v1315, %v1316
    %v1318 = vrot.slane %v1306, 5
    %v1319 = vrot.slane %v1318, 4
    %v1320 = vrot.slane %v966, 5
    %v1321 = vsel %vm566, %v1319, %v1320
    %v1322 = vrot.slane %v1320, 4
    %v1323 = vrot.slane %v986, 5
    %v1324 = vsel %vm566, %v1322, %v1323
    %s1325 = scalar_lea.vmem [#allocation6], 144
    %v1326 = vld [vmem:[%s1325] sm:$0xf]
    %v1327 = vld [vmem:[%s1325 + $0x4] sm:$0xf]
    %v1328 = vld [vmem:[%s1325 + $0x8] sm:$0xf]
    %v1329 = vld [vmem:[%s1325 + $0xc] sm:$0xf]
    %v1330 = vld [vmem:[%s1325 + $0x10] sm:$0xf]
    %v1331 = vld [vmem:[%s1325 + $0x14] sm:$0xf]
    %v1332 = vld [vmem:[%s1325 + $0x18] sm:$0xf]
    %v1333 = vld [vmem:[%s1325 + $0x1c] sm:$0xf]
    %v1334 = vld [vmem:[%s1325 + $0x20] sm:$0xf]
    %v1335 = vld [vmem:[%s1325 + $0x24] sm:$0xf]
    %v1336 = vld [vmem:[%s1325 + $0x28] sm:$0xf]
    %v1337 = vld [vmem:[%s1325 + $0x2c] sm:$0xf]
    %v1338 = vld [vmem:[%s1325 + $0x30] sm:$0xf]
    %v1339 = vld [vmem:[%s1325 + $0x34] sm:$0xf]
    %v1340 = vld [vmem:[%s1325 + $0x38] sm:$0xf]
    %v1341 = vld [vmem:[%s1325 + $0x3c] sm:$0xf]
    %v1342 = vld [vmem:[%s1325 + $0x40] sm:$0xf]
    %v1343 = vld [vmem:[%s1325 + $0x44] sm:$0xf]
    %v1344 = vunpack.c.l.b16 %v1314
    %v1345 = vunpack.c.h.b16 %v1314
    %v1346 = vunpack.c.l.b16 %v1317
    %v1347 = vunpack.c.h.b16 %v1317
    %v1348 = vunpack.c.l.b16 %v1321
    %v1349 = vunpack.c.h.b16 %v1321
    %v1350 = vunpack.c.l.b16 %v1324
    %v1351 = vunpack.c.h.b16 %v1324
    %v1352 = vpack.c.b16 %v1346, %v1344
    %v1353 = vpack.c.b16 %v1347, %v1345
    %v1354 = vpack.c.b16 %v1350, %v1348
    %v1355 = vpack.c.b16 %v1351, %v1349
    %v1376 = vunpack.c.l.b16 %v1326
    %v1377 = vunpack.c.l.b16 %v1327
    %v1378 = vunpack.c.l.b16 %v1328
    %v1379 = vunpack.c.l.b16 %v1329
    %v1380 = vunpack.c.l.b16 %v1330
    %v1381 = vunpack.c.l.b16 %v1331
    %v1382 = vunpack.c.l.b16 %v1332
    %v1383 = vunpack.c.l.b16 %v1333
    %v1384 = vunpack.c.l.b16 %v1334
    %v1385 = vunpack.c.l.b16 %v1335
    %v1386 = vunpack.c.l.b16 %v1336
    %v1387 = vunpack.c.l.b16 %v1337
    %v1388 = vunpack.c.l.b16 %v1338
    %v1389 = vunpack.c.l.b16 %v1339
    %v1390 = vunpack.c.l.b16 %v1340
    %v1391 = vunpack.c.l.b16 %v1341
    %v1392 = vunpack.c.l.b16 %v1342
    %v1393 = vunpack.c.l.b16 %v1343
    %v1394 = vpack.c.b16 %v1377, %v1376
    %v1395 = vpack.c.b16 %v1379, %v1378
    %v1396 = vpack.c.b16 %v1381, %v1380
    %v1397 = vpack.c.b16 %v1383, %v1382
    %v1398 = vpack.c.b16 %v1385, %v1384
    %v1399 = vpack.c.b16 %v1387, %v1386
    %v1400 = vpack.c.b16 %v1389, %v1388
    %v1401 = vpack.c.b16 %v1391, %v1390
    %v1402 = vpack.c.b16 %v1393, %v1392
    %v1413 = vsel %vm1122, %v1353, 0
    %v1416 = vsel %vm1122, %v1355, 0
    %1418 = vmatprep.subr.bf16.mxu0 0
    %1419 = vmatpush1.bf16.msra.mxu0 %v1394
    %1420 = vmatprep.subr.bf16.mxu0 0
    %1421 = vmatpush1.bf16.msra.mxu0 %v1395
    %1422 = vmatprep.subr.bf16.mxu0 0
    %1423 = vmatpush1.bf16.msra.mxu0 %v1396
    %1424 = vmatprep.subr.bf16.mxu0 0
    %1425 = vmatpush1.bf16.msra.mxu0 %v1397
    %1426 = vmatprep.subr.bf16.mxu0 0
    %1427 = vmatpush1.bf16.msra.mxu0 %v1398
    %1428 = vmatprep.subr.bf16.mxu0 0
    %1429 = vmatpush1.bf16.msra.mxu0 %v1399
    %1430 = vmatprep.subr.bf16.mxu0 0
    %1431 = vmatpush1.bf16.msra.mxu0 %v1400
    %1432 = vmatprep.subr.bf16.mxu0 0
    %1433 = vmatpush1.bf16.msra.mxu0 %v1401
    %1434 = vmatprep.subr.bf16.mxu0 0
    %1435 = vmatpush1.bf16.msra.mxu0 %v1402
    %1436 = vmatprep.subr.bf16.mxu0 0
    %1437 = vmatpush1.bf16.msra.mxu0 0
    %1438 = vmatprep.subr.bf16.mxu0 0
    %1439 = vmatpush1.bf16.msra.mxu0 0
    %1440 = vmatprep.subr.bf16.mxu0 0
    %1441 = vmatpush1.bf16.msra.mxu0 0
    %1442 = vmatprep.subr.bf16.mxu0 0
    %1443 = vmatpush1.bf16.msra.mxu0 0
    %1444 = vmatprep.subr.bf16.mxu0 0
    %1445 = vmatpush1.bf16.msra.mxu0 0
    %1446 = vmatprep.subr.bf16.mxu0 0
    %1447 = vmatpush1.bf16.msra.mxu0 0
    %1448 = vmatprep.subr.bf16.mxu0 0
    %1449 = vmatpush1.bf16.msra.mxu0 0
    %1450 = vmatprep.mubr.bf16.mxu0 %v1413
    %1451 = vmatmul.mubr.bf16.gmra.mrb[0].mxu0 %v1352
    %v1452 = vpop.f32.mrb[0].mxu0
    %v1453 = vadd.f32 0.0, %v1452
    %v1454 = vpop.f32.mrb[0].mxu0
    %v1455 = vpop.f32.mrb[0].mxu0
    %v1456 = vadd.f32 0.0, %v1455
    %v1457 = vpop.f32.mrb[0].mxu0
    %1458 = vmatprep.mubr.bf16.mxu0 %v1416
    %1459 = vmatmul.mubr.bf16.gmra.mrb[0].mxu0 %v1354
    %v1460 = vpop.f32.mrb[0].mxu0
    %v1461 = vadd.f32 0.0, %v1460
    %v1462 = vpop.f32.mrb[0].mxu0
    %v1463 = vpop.f32.mrb[0].mxu0
    %v1464 = vadd.f32 0.0, %v1463
    %v1465 = vpop.f32.mrb[0].mxu0
    %1466 = vdwg.mxu0
    %v1467 = vadd.f32 %v1291, %v1453
    %v1468 = vadd.f32 %v1294, %v1456
    %v1469 = vadd.f32 %v1299, %v1461
    %v1470 = vadd.f32 %v1302, %v1464
    %v1471 = vld [vmem:[%s4] sm:$0x1]
    %v1472 = vlaneseq
    %v1473 = vshrl.u32 %v1472, 7
    %v1474 = vsub.s32 0, %v1473
    %v1475 = vrot.slane %v1471, %v1474
    %v1476 = vmul.f32 %v1467, %v1475
    %v1477 = vmul.f32 %v1468, %v1475
    %v1478 = vmul.f32 %v1469, %v1475
    %v1479 = vmul.f32 %v1470, %v1475
    %v1480 = vld [vmem:[%s4 + $0x1] sm:$0x1]
    %v1481 = vlaneseq
    %v1482 = vshrl.u32 %v1481, 7
    %v1483 = vsub.s32 0, %v1482
    %v1484 = vrot.slane %v1480, %v1483
    %v1485 = vadd.f32 %v1476, %v1484
    %v1486 = vadd.f32 %v1477, %v1484
    %v1487 = vadd.f32 %v1478, %v1484
    %v1488 = vadd.f32 %v1479, %v1484
    %v1489 = vadd.f32 %v1485, %v1486
    %v1490 = vrot.slane %v1489, 4
    %v1491 = vadd.f32 %v1489, %v1490
    %v1492 = vrot.slane %v1491, 2
    %v1493 = vadd.f32 %v1491, %v1492
    %v1494 = vrot.slane %v1493, 1
    %v1495 = vadd.f32 %v1493, %v1494
    %v1496 = vadd.f32 %v1487, %v1488
    %v1497 = vrot.slane %v1496, 4
    %v1498 = vadd.f32 %v1496, %v1497
    %v1499 = vrot.slane %v1498, 2
    %v1500 = vadd.f32 %v1498, %v1499
    %v1501 = vrot.slane %v1500, 1
    %v1502 = vadd.f32 %v1500, %v1501
    %v1503 = vld [vmem:[%s5] sm:$0xff]
    %v1504 = vld [vmem:[%s5 + $0x8] sm:$0xff]
    %v1505 = vld [vmem:[%s5 + $0x10] sm:$0xff]
    %v1506 = vld [vmem:[%s5 + $0x18] sm:$0xff]
    %v1507 = vld [vmem:[%s5 + $0x20] sm:$0xff]
    %v1508 = vld [vmem:[%s5 + $0x28] sm:$0xff]
    %v1509 = vld [vmem:[%s5 + $0x30] sm:$0xff]
    %v1510 = vld [vmem:[%s5 + $0x38] sm:$0xff]
    %v1511 = vld [vmem:[%s5 + $0x40] sm:$0xff]
    %v1512 = vld [vmem:[%s5 + $0x48] sm:$0xff]
    %v1513 = vld [vmem:[%s5 + $0x50] sm:$0xff]
    %v1514 = vld [vmem:[%s5 + $0x58] sm:$0xff]
    %v1515 = vld [vmem:[%s5 + $0x60] sm:$0xff]
    %v1516 = vld [vmem:[%s5 + $0x68] sm:$0xff]
    %v1517 = vld [vmem:[%s5 + $0x70] sm:$0xff]
    %v1518 = vld [vmem:[%s5 + $0x78] sm:$0xff]
    %vm1521 = vcmask 1041409
    %v1522 = vsel %vm1521, %v1502, %v1495
    %1524 = vmatprep.subr.mxu0 0.0
    %1525 = vmatpush1.msra.mxu0 %v1503
    %1526 = vmatprep.subr.mxu0 0.0
    %1527 = vmatpush1.msra.mxu0 %v1504
    %1528 = vmatprep.subr.mxu0 0.0
    %1529 = vmatpush1.msra.mxu0 %v1505
    %1530 = vmatprep.subr.mxu0 0.0
    %1531 = vmatpush1.msra.mxu0 %v1506
    %1532 = vmatprep.subr.mxu0 0.0
    %1533 = vmatpush1.msra.mxu0 %v1507
    %1534 = vmatprep.subr.mxu0 0.0
    %1535 = vmatpush1.msra.mxu0 %v1508
    %1536 = vmatprep.subr.mxu0 0.0
    %1537 = vmatpush1.msra.mxu0 %v1509
    %1538 = vmatprep.subr.mxu0 0.0
    %1539 = vmatpush1.msra.mxu0 %v1510
    %1540 = vmatprep.subr.mxu0 0.0
    %1541 = vmatpush1.msra.mxu0 %v1511
    %1542 = vmatprep.subr.mxu0 0.0
    %1543 = vmatpush1.msra.mxu0 %v1512
    %1544 = vmatprep.subr.mxu0 0.0
    %1545 = vmatpush1.msra.mxu0 %v1513
    %1546 = vmatprep.subr.mxu0 0.0
    %1547 = vmatpush1.msra.mxu0 %v1514
    %1548 = vmatprep.subr.mxu0 0.0
    %1549 = vmatpush1.msra.mxu0 %v1515
    %1550 = vmatprep.subr.mxu0 0.0
    %1551 = vmatpush1.msra.mxu0 %v1516
    %1552 = vmatprep.subr.mxu0 0.0
    %1553 = vmatpush1.msra.mxu0 %v1517
    %1554 = vmatprep.subr.mxu0 0.0
    %1555 = vmatpush1.msra.mxu0 %v1518
    %1556 = vmatprep.subr.mxu0 0.0
    %1557 = vmatpush1.msra.mxu0 0.0
    %1558 = vmatprep.subr.mxu0 0.0
    %1559 = vmatpush1.msra.mxu0 0.0
    %1560 = vmatprep.subr.mxu0 0.0
    %1561 = vmatpush1.msra.mxu0 0.0
    %1562 = vmatprep.subr.mxu0 0.0
    %1563 = vmatpush1.msra.mxu0 0.0
    %1564 = vmatprep.subr.mxu0 0.0
    %1565 = vmatpush1.msra.mxu0 0.0
    %1566 = vmatprep.subr.mxu0 0.0
    %1567 = vmatpush1.msra.mxu0 0.0
    %1568 = vmatprep.subr.mxu0 0.0
    %1569 = vmatpush1.msra.mxu0 0.0
    %1570 = vmatprep.subr.mxu0 0.0
    %1571 = vmatpush1.msra.mxu0 0.0
    %1572 = vmatprep.subr.mxu0 0.0
    %1573 = vmatpush1.msra.mxu0 0.0
    %1574 = vmatprep.subr.mxu0 0.0
    %1575 = vmatpush1.msra.mxu0 0.0
    %1576 = vmatprep.subr.mxu0 0.0
    %1577 = vmatpush1.msra.mxu0 0.0
    %1578 = vmatprep.subr.mxu0 0.0
    %1579 = vmatpush1.msra.mxu0 0.0
    %1580 = vmatprep.subr.mxu0 0.0
    %1581 = vmatpush1.msra.mxu0 0.0
    %1582 = vmatprep.subr.mxu0 0.0
    %1583 = vmatpush1.msra.mxu0 0.0
    %1584 = vmatprep.subr.mxu0 0.0
    %1585 = vmatpush1.msra.mxu0 0.0
    %1586 = vmatprep.subr.mxu0 0.0
    %1587 = vmatpush1.msra.mxu0 0.0
    %1588 = vmatprep.mubr.f32.mxu0 0.0
    %1589 = vmatmul.mubr.f32.gmra.mrb[0].mxu0 %v1522
    %v1590 = vpop.f32.mrb[0].mxu0
    %v1591 = vadd.f32 0.0, %v1590
    %v1592 = vpop.f32.mrb[0].mxu0
    %1593 = vdwg.mxu0
    %v1594 = vld [vmem:[%s7] sm:$0xff]
    %v1595 = vld [vmem:[%s8] sm:$0x1]
    %v1597 = vlaneseq
    %v1598 = vshrl.u32 %v1597, 7
    %v1599 = vsub.s32 0, %v1598
    %v1600 = vrot.slane %v1595, %v1599
    %vm1602 = vcmask 64512
    %v1604 = vsel %vm1602, %v1591, 0
    %1606 = vmatprep.subr.mxu0 0.0
    %1607 = vmatpush1.msra.mxu0 %v1594
    %1608 = vmatprep.subr.mxu0 0.0
    %1609 = vmatpush1.msra.mxu0 0.0
    %1610 = vmatprep.subr.mxu0 0.0
    %1611 = vmatpush1.msra.mxu0 0.0
    %1612 = vmatprep.subr.mxu0 0.0
    %1613 = vmatpush1.msra.mxu0 0.0
    %1614 = vmatprep.subr.mxu0 0.0
    %1615 = vmatpush1.msra.mxu0 0.0
    %1616 = vmatprep.subr.mxu0 0.0
    %1617 = vmatpush1.msra.mxu0 0.0
    %1618 = vmatprep.subr.mxu0 0.0
    %1619 = vmatpush1.msra.mxu0 0.0
    %1620 = vmatprep.subr.mxu0 0.0
    %1621 = vmatpush1.msra.mxu0 0.0
    %1622 = vmatprep.subr.mxu0 0.0
    %1623 = vmatpush1.msra.mxu0 0.0
    %1624 = vmatprep.subr.mxu0 0.0
    %1625 = vmatpush1.msra.mxu0 0.0
    %1626 = vmatprep.subr.mxu0 0.0
    %1627 = vmatpush1.msra.mxu0 0.0
    %1628 = vmatprep.subr.mxu0 0.0
    %1629 = vmatpush1.msra.mxu0 0.0
    %1630 = vmatprep.subr.mxu0 0.0
    %1631 = vmatpush1.msra.mxu0 0.0
    %1632 = vmatprep.subr.mxu0 0.0
    %1633 = vmatpush1.msra.mxu0 0.0
    %1634 = vmatprep.subr.mxu0 0.0
    %1635 = vmatpush1.msra.mxu0 0.0
    %1636 = vmatprep.subr.mxu0 0.0
    %1637 = vmatpush1.msra.mxu0 0.0
    %1638 = vmatprep.subr.mxu0 0.0
    %1639 = vmatpush1.msra.mxu0 0.0
    %1640 = vmatprep.subr.mxu0 0.0
    %1641 = vmatpush1.msra.mxu0 0.0
    %1642 = vmatprep.subr.mxu0 0.0
    %1643 = vmatpush1.msra.mxu0 0.0
    %1644 = vmatprep.subr.mxu0 0.0
    %1645 = vmatpush1.msra.mxu0 0.0
    %1646 = vmatprep.subr.mxu0 0.0
    %1647 = vmatpush1.msra.mxu0 0.0
    %1648 = vmatprep.subr.mxu0 0.0
    %1649 = vmatpush1.msra.mxu0 0.0
    %1650 = vmatprep.subr.mxu0 0.0
    %1651 = vmatpush1.msra.mxu0 0.0
    %1652 = vmatprep.subr.mxu0 0.0
    %1653 = vmatpush1.msra.mxu0 0.0
    %1654 = vmatprep.subr.mxu0 0.0
    %1655 = vmatpush1.msra.mxu0 0.0
    %1656 = vmatprep.subr.mxu0 0.0
    %1657 = vmatpush1.msra.mxu0 0.0
    %1658 = vmatprep.subr.mxu0 0.0
    %1659 = vmatpush1.msra.mxu0 0.0
    %1660 = vmatprep.subr.mxu0 0.0
    %1661 = vmatpush1.msra.mxu0 0.0
    %1662 = vmatprep.subr.mxu0 0.0
    %1663 = vmatpush1.msra.mxu0 0.0
    %1664 = vmatprep.subr.mxu0 0.0
    %1665 = vmatpush1.msra.mxu0 0.0
    %1666 = vmatprep.subr.mxu0 0.0
    %1667 = vmatpush1.msra.mxu0 0.0
    %1668 = vmatprep.subr.mxu0 0.0
    %1669 = vmatpush1.msra.mxu0 0.0
    %1670 = vmatprep.mubr.f32.mxu0 0.0
    %1671 = vmatmul.mubr.f32.gmra.mrb[0].mxu0 %v1604
    %v1672 = vpop.f32.mrb[0].mxu0
    %v1673 = vadd.f32 %v1600, %v1672
    %v1674 = vpop.f32.mrb[0].mxu0
    %1675 = vdwg.mxu0
    %v1676 = vmax.f32 %v1673, 0.0
    %v1677 = vld [vmem:[%s9] sm:$0xf]
    %v1678 = vld [vmem:[%s10] sm:$0x1]
    %v1680 = vlaneseq
    %v1681 = vshrl.u32 %v1680, 7
    %v1682 = vsub.s32 0, %v1681
    %v1683 = vrot.slane %v1678, %v1682
    %vm1685 = vcmask 31744
    %v1687 = vsel %vm1685, %v1676, 0
    %v1690 = vsel %vm247, %v1677, 0
    %1692 = vmatprep.subr.mxu0 0.0
    %1693 = vmatpush1.msra.mxu0 %v1690
    %1694 = vmatprep.subr.mxu0 0.0
    %1695 = vmatpush1.msra.mxu0 0.0
    %1696 = vmatprep.subr.mxu0 0.0
    %1697 = vmatpush1.msra.mxu0 0.0
    %1698 = vmatprep.subr.mxu0 0.0
    %1699 = vmatpush1.msra.mxu0 0.0
    %1700 = vmatprep.subr.mxu0 0.0
    %1701 = vmatpush1.msra.mxu0 0.0
    %1702 = vmatprep.subr.mxu0 0.0
    %1703 = vmatpush1.msra.mxu0 0.0
    %1704 = vmatprep.subr.mxu0 0.0
    %1705 = vmatpush1.msra.mxu0 0.0
    %1706 = vmatprep.subr.mxu0 0.0
    %1707 = vmatpush1.msra.mxu0 0.0
    %1708 = vmatprep.subr.mxu0 0.0
    %1709 = vmatpush1.msra.mxu0 0.0
    %1710 = vmatprep.subr.mxu0 0.0
    %1711 = vmatpush1.msra.mxu0 0.0
    %1712 = vmatprep.subr.mxu0 0.0
    %1713 = vmatpush1.msra.mxu0 0.0
    %1714 = vmatprep.subr.mxu0 0.0
    %1715 = vmatpush1.msra.mxu0 0.0
    %1716 = vmatprep.subr.mxu0 0.0
    %1717 = vmatpush1.msra.mxu0 0.0
    %1718 = vmatprep.subr.mxu0 0.0
    %1719 = vmatpush1.msra.mxu0 0.0
    %1720 = vmatprep.subr.mxu0 0.0
    %1721 = vmatpush1.msra.mxu0 0.0
    %1722 = vmatprep.subr.mxu0 0.0
    %1723 = vmatpush1.msra.mxu0 0.0
    %1724 = vmatprep.subr.mxu0 0.0
    %1725 = vmatpush1.msra.mxu0 0.0
    %1726 = vmatprep.subr.mxu0 0.0
    %1727 = vmatpush1.msra.mxu0 0.0
    %1728 = vmatprep.subr.mxu0 0.0
    %1729 = vmatpush1.msra.mxu0 0.0
    %1730 = vmatprep.subr.mxu0 0.0
    %1731 = vmatpush1.msra.mxu0 0.0
    %1732 = vmatprep.subr.mxu0 0.0
    %1733 = vmatpush1.msra.mxu0 0.0
    %1734 = vmatprep.subr.mxu0 0.0
    %1735 = vmatpush1.msra.mxu0 0.0
    %1736 = vmatprep.subr.mxu0 0.0
    %1737 = vmatpush1.msra.mxu0 0.0
    %1738 = vmatprep.subr.mxu0 0.0
    %1739 = vmatpush1.msra.mxu0 0.0
    %1740 = vmatprep.subr.mxu0 0.0
    %1741 = vmatpush1.msra.mxu0 0.0
    %1742 = vmatprep.subr.mxu0 0.0
    %1743 = vmatpush1.msra.mxu0 0.0
    %1744 = vmatprep.subr.mxu0 0.0
    %1745 = vmatpush1.msra.mxu0 0.0
    %1746 = vmatprep.subr.mxu0 0.0
    %1747 = vmatpush1.msra.mxu0 0.0
    %1748 = vmatprep.subr.mxu0 0.0
    %1749 = vmatpush1.msra.mxu0 0.0
    %1750 = vmatprep.subr.mxu0 0.0
    %1751 = vmatpush1.msra.mxu0 0.0
    %1752 = vmatprep.subr.mxu0 0.0
    %1753 = vmatpush1.msra.mxu0 0.0
    %1754 = vmatprep.subr.mxu0 0.0
    %1755 = vmatpush1.msra.mxu0 0.0
    %1756 = vmatprep.mubr.f32.mxu0 0.0
    %1757 = vmatmul.mubr.f32.gmra.mrb[0].mxu0 %v1687
    %v1758 = vpop.f32.mrb[0].mxu0
    %v1759 = vadd.f32 %v1683, %v1758
    %v1760 = vpop.f32.mrb[0].mxu0
    %1761 = vdwg.mxu0
    %v1762 = vxor.u32 %v1759, 2147483648
    %v1763 = vmul.f32 %v1762, 1.442695
    %v1764 = vpow.pop %v1763
    %v1765 = vadd.f32 %v1764, 1.0
    %v1766 = vrcp.pop %v1765
    %v1767 = vmul.f32 1.0, %v1766
    %v1768 = vld [vmem:[%s6] sm:$0xff]
    %v1770 = vsel %vm1602, %v1767, 0
    %1772 = vmatprep.subr.mxu0 0.0
    %1773 = vmatpush1.msra.mxu0 %v1768
    %1774 = vmatprep.subr.mxu0 0.0
    %1775 = vmatpush1.msra.mxu0 0.0
    %1776 = vmatprep.subr.mxu0 0.0
    %1777 = vmatpush1.msra.mxu0 0.0
    %1778 = vmatprep.subr.mxu0 0.0
    %1779 = vmatpush1.msra.mxu0 0.0
    %1780 = vmatprep.subr.mxu0 0.0
    %1781 = vmatpush1.msra.mxu0 0.0
    %1782 = vmatprep.subr.mxu0 0.0
    %1783 = vmatpush1.msra.mxu0 0.0
    %1784 = vmatprep.subr.mxu0 0.0
    %1785 = vmatpush1.msra.mxu0 0.0
    %1786 = vmatprep.subr.mxu0 0.0
    %1787 = vmatpush1.msra.mxu0 0.0
    %1788 = vmatprep.subr.mxu0 0.0
    %1789 = vmatpush1.msra.mxu0 0.0
    %1790 = vmatprep.subr.mxu0 0.0
    %1791 = vmatpush1.msra.mxu0 0.0
    %1792 = vmatprep.subr.mxu0 0.0
    %1793 = vmatpush1.msra.mxu0 0.0
    %1794 = vmatprep.subr.mxu0 0.0
    %1795 = vmatpush1.msra.mxu0 0.0
    %1796 = vmatprep.subr.mxu0 0.0
    %1797 = vmatpush1.msra.mxu0 0.0
    %1798 = vmatprep.subr.mxu0 0.0
    %1799 = vmatpush1.msra.mxu0 0.0
    %1800 = vmatprep.subr.mxu0 0.0
    %1801 = vmatpush1.msra.mxu0 0.0
    %1802 = vmatprep.subr.mxu0 0.0
    %1803 = vmatpush1.msra.mxu0 0.0
    %1804 = vmatprep.subr.mxu0 0.0
    %1805 = vmatpush1.msra.mxu0 0.0
    %1806 = vmatprep.subr.mxu0 0.0
    %1807 = vmatpush1.msra.mxu0 0.0
    %1808 = vmatprep.subr.mxu0 0.0
    %1809 = vmatpush1.msra.mxu0 0.0
    %1810 = vmatprep.subr.mxu0 0.0
    %1811 = vmatpush1.msra.mxu0 0.0
    %1812 = vmatprep.subr.mxu0 0.0
    %1813 = vmatpush1.msra.mxu0 0.0
    %1814 = vmatprep.subr.mxu0 0.0
    %1815 = vmatpush1.msra.mxu0 0.0
    %1816 = vmatprep.subr.mxu0 0.0
    %1817 = vmatpush1.msra.mxu0 0.0
    %1818 = vmatprep.subr.mxu0 0.0
    %1819 = vmatpush1.msra.mxu0 0.0
    %1820 = vmatprep.subr.mxu0 0.0
    %1821 = vmatpush1.msra.mxu0 0.0
    %1822 = vmatprep.subr.mxu0 0.0
    %1823 = vmatpush1.msra.mxu0 0.0
    %1824 = vmatprep.subr.mxu0 0.0
    %1825 = vmatpush1.msra.mxu0 0.0
    %1826 = vmatprep.subr.mxu0 0.0
    %1827 = vmatpush1.msra.mxu0 0.0
    %1828 = vmatprep.subr.mxu0 0.0
    %1829 = vmatpush1.msra.mxu0 0.0
    %1830 = vmatprep.subr.mxu0 0.0
    %1831 = vmatpush1.msra.mxu0 0.0
    %1832 = vmatprep.subr.mxu0 0.0
    %1833 = vmatpush1.msra.mxu0 0.0
    %1834 = vmatprep.subr.mxu0 0.0
    %1835 = vmatpush1.msra.mxu0 0.0
    %1836 = vmatprep.mubr.f32.mxu0 0.0
    %1837 = vmatmul.mubr.f32.gmra.mrb[0].mxu0 %v1770
    %v1838 = vpop.f32.mrb[0].mxu0
    %v1839 = vadd.f32 0.0, %v1838
    %v1840 = vpop.f32.mrb[0].mxu0
    %1841 = vdwg.mxu0
    %v1844 = vunpack.c.l.s4 1966171168
    %v1845 = vunpack.c.0.s8 %v1844
    %v1846 = vlaneseq
    %v1847 = vshrl.u32 %v1846, 7
    %v1848 = vsub.s32 %v1845, %v1847
    %v1849 = vrot.slane %v1839, %v1848
    %v1850 = vcombine.high %v1849, %v1849
    %v1852 = vunpack.c.l.s4 1966171168
    %v1853 = vunpack.c.0.s8 %v1852
    %v1854 = vlaneseq
    %v1855 = vshrl.u32 %v1854, 7
    %v1856 = vsub.s32 %v1853, %v1855
    %v1857 = vrot.slane %v1849, %v1856
    %v1859 = vunpack.c.l.s4 1966171168
    %v1860 = vunpack.c.0.s8 %v1859
    %v1861 = vlaneseq
    %v1862 = vshrl.u32 %v1861, 7
    %v1863 = vsub.s32 %v1860, %v1862
    %v1864 = vrot.slane %v1850, %v1863
    %v1865 = vlaneseq
    %v1866 = vshrl.u32 %v1865, 7
    %v1867 = vsub.s32 0, %v1866
    %v1868 = vrot.slane %v1857, %v1867
    %v1869 = vlaneseq
    %v1870 = vshrl.u32 %v1869, 7
    %v1871 = vsub.s32 0, %v1870
    %v1872 = vrot.slane %v1864, %v1871
    %v1875 = vmul.f32 %v1485, %v1868
    %v1876 = vmul.f32 %v1486, %v1868
    %v1877 = vmul.f32 %v1487, %v1872
    %v1878 = vmul.f32 %v1488, %v1872
    %v1879 = vadd.f32 %v1875, %v795
    %v1880 = vadd.f32 %v1876, %v798
    %v1881 = vadd.f32 %v1877, %v801
    %v1882 = vadd.f32 %v1878, %v804
    %v1883 = vmax.f32 %v1879, 0.0
    %v1884 = vmax.f32 %v1880, 0.0
    %v1885 = vmax.f32 %v1881, 0.0
    %v1886 = vmax.f32 %v1882, 0.0
    %1887 = vst [vmem:[#allocation8] sm:$0xff] %v1883
    %1888 = vst [vmem:[#allocation8 + $0x8] sm:$0xff] %v1884
    %1889 = vst [vmem:[#allocation8 + $0x10] sm:$0xff] %v1885
    %1890 = vst [vmem:[#allocation8 + $0x18] sm:$0xff] %v1886
    // Predicated region
    $region54: #{tpu_custom_call.1} parent=1 // pred_check
      _
    $region55: #{tpu_custom_call.1} parent=1 // pred_check_branch
      %1892 = sbr.rel (0) target = $region57
    $region56: #{tpu_custom_call.1} parent=1 // pred_region
      %s1894 = ssub.s32 512, 512
      %1895 = vsyncadd [#allocation5], %s1894
      %s1896 = sshll.u32 [#allocation8], 4
      %s1897 = int_to_ptr.vmem [resolvable:$true] %s1896
      %1902 = dma.vmem_to_hbm [thread:$0]  %s1897, 512, %s11, [#allocation5], 128, 128, 8
    $region57: #{tpu_custom_call.1} parent=1 // pred_fallthru
      _
    // Predicated region
    $region58: #{tpu_custom_call.1} parent=1 // pred_check
      _
    $region59: #{tpu_custom_call.1} parent=1 // pred_check_branch
      %1904 = sbr.rel (0) target = $region61
    $region60: #{tpu_custom_call.1} parent=1 // pred_region
      %1905 = dma.done [#allocation5], 512
    $region61: #{tpu_custom_call.1} parent=1 // pred_fallthru
      _
    %1906 = vsyncpa [#allocation4], 1
    %1907 = vsyncpa [#allocation7], 1
    %1908 = vsyncpa [#allocation5], 1

// kernel: tpu_custom_call.1
$region0: #{tpu_custom_call.1}
  #allocation0 [shape = 'u32[]', space=smem, size = 0x4, offset = 0x4, fixed_abs, tag = 'smem constant byte address 0x4 - core index']
  #allocation1 [shape = 'u32[144,128]{1,0:T(1,128)}', space=vmem, size = 0x12000, scoped, tag = 'internal scratch']
  #allocation2 [shape = 'bf16[2,18,144]{2,1,0:T(8,128)(2,1)}', space=vmem, size = 0x6000, scoped, tag = 'scratch operand']
  %s0 = inlined_call_operand.vmem [shape: bf16[2,18,72], index: 0, kind: input, shape index: {}]
  %s1 = inlined_call_operand.hbm [shape: bf16[3,72,272], index: 1, kind: input, shape index: {}]
  %s2 = inlined_call_operand.vmem [shape: f32[2,144], index: 2, kind: input, shape index: {}]
  %s3 = inlined_call_operand.hbm [shape: bf16[3,144,128], index: 3, kind: input, shape index: {}]
  %s4 = inlined_call_operand.vmem [shape: f32[2,128], index: 4, kind: input, shape index: {}]
  %s5 = inlined_call_operand.vmem [shape: f32[128,8], index: 5, kind: input, shape index: {}]
  %s6 = inlined_call_operand.vmem [shape: f32[8,128], index: 6, kind: input, shape index: {}]
  %s7 = inlined_call_operand.vmem [shape: f32[8,4], index: 7, kind: input, shape index: {}]
  %s8 = inlined_call_operand.vmem [shape: f32[1,4], index: 8, kind: input, shape index: {}]
  %s9 = inlined_call_operand.vmem [shape: f32[4,8], index: 9, kind: input, shape index: {}]
  %s10 = inlined_call_operand.vmem [shape: f32[1,8], index: 10, kind: input, shape index: {}]
  %s11 = inlined_call_operand.hbm [shape: f32[2,16,128], index: 11, kind: output, shape index: {}]
  %s12 = sld [smem:[#allocation0]]
  $region62: #{tpu_custom_call.1} parent=0
    _
  %s14 = ssub.s32 1, %s12
  %s15 = scalar_select 0, %s14, %s12
  $region1: #{tpu_custom_call.1} parent=0
    #allocation3 [shape = 'u8[165888]{0}', space=vmem, size = 0x28800, scoped, tag = 'input window, operand 1, single buffered']
    #allocation4 [shape = 's32[1]{0}', space=sflag, size = 0x4, scoped, tag = 'scoped memory for tpu_custom_call.1']
    #allocation5 [shape = 's32[1]{0}', space=sflag, size = 0x4, scoped, tag = 'scoped memory for tpu_custom_call.1']
    #allocation6 [shape = 'u8[110592]{0}', space=vmem, size = 0x1b000, scoped, tag = 'input window, operand 3, single buffered']
    #allocation7 [shape = 's32[1]{0}', space=sflag, size = 0x4, scoped, tag = 'scoped memory for tpu_custom_call.1']
    #allocation8 [shape = 'u8[16384]{0}', space=vmem, size = 0x4000, scoped, tag = 'output window, operand 0, single buffered']
    %16 = vsyncpa [#allocation4], 0
    %17 = vsyncpa [#allocation7], 0
    %18 = vsyncpa [#allocation5], 0
    // Predicated region
    $region2: #{tpu_custom_call.1} parent=1 // pred_check
      _
    $region3: #{tpu_custom_call.1} parent=1 // pred_check_branch
      %20 = sbr.rel (0) target = $region5
    $region4: #{tpu_custom_call.1} parent=1 // pred_region
      _
    $region5: #{tpu_custom_call.1} parent=1 // pred_fallthru
      _
    // Predicated region
    $region6: #{tpu_custom_call.1} parent=1 // pred_check
      _
    $region7: #{tpu_custom_call.1} parent=1 // pred_check_branch
      %22 = sbr.rel (0) target = $region9
    $region8: #{tpu_custom_call.1} parent=1 // pred_region
      %s24 = ssub.s32 5184, 5184
      %25 = vsyncadd [#allocation4], %s24
      %s26 = sshll.u32 [#allocation3], 4
      %s27 = int_to_ptr.vmem [resolvable:$true] %s26
      %32 = dma.hbm_to_vmem [thread:$0]  %s1, 5184, %s27, [#allocation4], 192, 192, 12
    $region9: #{tpu_custom_call.1} parent=1 // pred_fallthru
      _
    // Predicated region
    $region10: #{tpu_custom_call.1} parent=1 // pred_check
      _
    $region11: #{tpu_custom_call.1} parent=1 // pred_check_branch
      %34 = sbr.rel (0) target = $region13
    $region12: #{tpu_custom_call.1} parent=1 // pred_region
      _
    $region13: #{tpu_custom_call.1} parent=1 // pred_fallthru
      _
    // Predicated region
    $region14: #{tpu_custom_call.1} parent=1 // pred_check
      _
    $region15: #{tpu_custom_call.1} parent=1 // pred_check_branch
      %36 = sbr.rel (0) target = $region17
    $region16: #{tpu_custom_call.1} parent=1 // pred_region
      %s38 = ssub.s32 3456, 3456
      %39 = vsyncadd [#allocation7], %s38
      %s40 = sshll.u32 [#allocation6], 4
      %s41 = int_to_ptr.vmem [resolvable:$true] %s40
      %46 = dma.hbm_to_vmem [thread:$0]  %s3, 3456, %s41, [#allocation7], 64, 64, 4
    $region17: #{tpu_custom_call.1} parent=1 // pred_fallthru
      _
    // Predicated region
    $region18: #{tpu_custom_call.1} parent=1 // pred_check
      _
    $region19: #{tpu_custom_call.1} parent=1 // pred_check_branch
      %48 = sbr.rel (0) target = $region21
    $region20: #{tpu_custom_call.1} parent=1 // pred_region
      _
    $region21: #{tpu_custom_call.1} parent=1 // pred_fallthru
      _
    // Predicated region
    $region22: #{tpu_custom_call.1} parent=1 // pred_check
      _
    $region23: #{tpu_custom_call.1} parent=1 // pred_check_branch
      %50 = sbr.rel (0) target = $region25
    $region24: #{tpu_custom_call.1} parent=1 // pred_region
      _
    $region25: #{tpu_custom_call.1} parent=1 // pred_fallthru
      _
    // Predicated region
    $region26: #{tpu_custom_call.1} parent=1 // pred_check
      _
    $region27: #{tpu_custom_call.1} parent=1 // pred_check_branch
      %52 = sbr.rel (0) target = $region29
    $region28: #{tpu_custom_call.1} parent=1 // pred_region
      _
    $region29: #{tpu_custom_call.1} parent=1 // pred_fallthru
      _
    // Predicated region
    $region30: #{tpu_custom_call.1} parent=1 // pred_check
      _
    $region31: #{tpu_custom_call.1} parent=1 // pred_check_branch
      %54 = sbr.rel (0) target = $region33
    $region32: #{tpu_custom_call.1} parent=1 // pred_region
      _
    $region33: #{tpu_custom_call.1} parent=1 // pred_fallthru
      _
    // Predicated region
    $region34: #{tpu_custom_call.1} parent=1 // pred_check
      _
    $region35: #{tpu_custom_call.1} parent=1 // pred_check_branch
      %56 = sbr.rel (0) target = $region37
    $region36: #{tpu_custom_call.1} parent=1 // pred_region
      _
    $region37: #{tpu_custom_call.1} parent=1 // pred_fallthru
      _
    // Predicated region
    $region38: #{tpu_custom_call.1} parent=1 // pred_check
      _
    $region39: #{tpu_custom_call.1} parent=1 // pred_check_branch
      %58 = sbr.rel (0) target = $region41
    $region40: #{tpu_custom_call.1} parent=1 // pred_region
      _
    $region41: #{tpu_custom_call.1} parent=1 // pred_fallthru
      _
    // Predicated region
    $region42: #{tpu_custom_call.1} parent=1 // pred_check
      _
    $region43: #{tpu_custom_call.1} parent=1 // pred_check_branch
      %60 = sbr.rel (0) target = $region45
    $region44: #{tpu_custom_call.1} parent=1 // pred_region
      _
    $region45: #{tpu_custom_call.1} parent=1 // pred_fallthru
      _
    // Predicated region
    $region46: #{tpu_custom_call.1} parent=1 // pred_check
      _
    $region47: #{tpu_custom_call.1} parent=1 // pred_check_branch
      %62 = sbr.rel (0) target = $region49
    $region48: #{tpu_custom_call.1} parent=1 // pred_region
      %63 = dma.done [#allocation4], 5184
    $region49: #{tpu_custom_call.1} parent=1 // pred_fallthru
      _
    // Predicated region
    $region50: #{tpu_custom_call.1} parent=1 // pred_check
      _
    $region51: #{tpu_custom_call.1} parent=1 // pred_check_branch
      %65 = sbr.rel (0) target = $region53
    $region52: #{tpu_custom_call.1} parent=1 // pred_region
      %66 = dma.done [#allocation7], 3456
    $region53: #{tpu_custom_call.1} parent=1 // pred_fallthru
      _
    %v68 = vld [vmem:[%s0] sm:$0xf]
    %v69 = vld [vmem:[%s0 + $0x4] sm:$0xf]
    %v70 = vld [vmem:[%s0 + $0xc] sm:$0xf]
    %v71 = vld [vmem:[%s0 + $0x10] sm:$0xf]
    %v72 = vld [vmem:[#allocation3] sm:$0xff]
    %v73 = vld [vmem:[#allocation3 + $0x8] sm:$0xf]
    %v74 = vld [vmem:[#allocation3 + $0xc] sm:$0xff]
    %v75 = vld [vmem:[#allocation3 + $0x14] sm:$0xf]
    %v76 = vld [vmem:[#allocation3 + $0x18] sm:$0xff]
    %v77 = vld [vmem:[#allocation3 + $0x20] sm:$0xf]
    %v78 = vld [vmem:[#allocation3 + $0x24] sm:$0xff]
    %v79 = vld [vmem:[#allocation3 + $0x2c] sm:$0xf]
    %v80 = vld [vmem:[#allocation3 + $0x30] sm:$0xff]
    %v81 = vld [vmem:[#allocation3 + $0x38] sm:$0xf]
    %v82 = vld [vmem:[#allocation3 + $0x3c] sm:$0xff]
    %v83 = vld [vmem:[#allocation3 + $0x44] sm:$0xf]
    %v84 = vld [vmem:[#allocation3 + $0x48] sm:$0xff]
    %v85 = vld [vmem:[#allocation3 + $0x50] sm:$0xf]
    %v86 = vld [vmem:[#allocation3 + $0x54] sm:$0xff]
    %v87 = vld [vmem:[#allocation3 + $0x5c] sm:$0xf]
    %v88 = vld [vmem:[#allocation3 + $0x60] sm:$0xff]
    %v89 = vld [vmem:[#allocation3 + $0x68] sm:$0xf]
    %v90 = vld [vmem:[%s0 + $0x8] sm:$0x1]
    %v91 = vld [vmem:[%s0 + $0x14] sm:$0x1]
    %vm92 = vsmask.f32 3328
    %vm93 = vsmask.f32 7440
    %vm94 = vmor %vm92, %vm93
    %v96 = vshrl.u32 %v68, 16
    %v98 = vrot.slane %v96, 4
    %v99 = vshll.u32 %v68, 16
    %v101 = vrot.slane %v99, 5
    %v102 = vor.u32 %v98, %v101
    %v103 = vrot.slane %v102, 4
    %v105 = vshll.u32 %v69, 16
    %v107 = vrot.slane %v105, 5
    %v108 = vsel %vm94, %v103, %v107
    %v109 = vshrl.u32 %v69, 16
    %v111 = vrot.slane %v109, 4
    %v112 = vor.u32 %v111, %v107
    %v113 = vrot.slane %v112, 4
    %v115 = vshll.u32 %v90, 16
    %v117 = vrot.slane %v115, 5
    %v118 = vsel %vm94, %v113, %v117
    %v120 = vshrl.u32 %v70, 16
    %v122 = vrot.slane %v120, 4
    %v123 = vshll.u32 %v70, 16
    %v125 = vrot.slane %v123, 5
    %v126 = vor.u32 %v122, %v125
    %v127 = vrot.slane %v126, 4
    %v129 = vshll.u32 %v71, 16
    %v131 = vrot.slane %v129, 5
    %v132 = vsel %vm94, %v127, %v131
    %v133 = vshrl.u32 %v71, 16
    %v135 = vrot.slane %v133, 4
    %v136 = vor.u32 %v135, %v131
    %v137 = vrot.slane %v136, 4
    %v139 = vshll.u32 %v91, 16
    %v141 = vrot.slane %v139, 5
    %v142 = vsel %vm94, %v137, %v141
    %s143 = scalar_lea.vmem [#allocation3], 108
    %v144 = vld [vmem:[%s143] sm:$0xff]
    %v145 = vld [vmem:[%s143 + $0x8] sm:$0xf]
    %v146 = vld [vmem:[%s143 + $0xc] sm:$0xff]
    %v147 = vld [vmem:[%s143 + $0x14] sm:$0xf]
    %v148 = vld [vmem:[%s143 + $0x18] sm:$0xff]
    %v149 = vld [vmem:[%s143 + $0x20] sm:$0xf]
    %v150 = vld [vmem:[%s143 + $0x24] sm:$0xff]
    %v151 = vld [vmem:[%s143 + $0x2c] sm:$0xf]
    %v152 = vld [vmem:[%s143 + $0x30] sm:$0xff]
    %v153 = vld [vmem:[%s143 + $0x38] sm:$0xf]
    %v154 = vld [vmem:[%s143 + $0x3c] sm:$0xff]
    %v155 = vld [vmem:[%s143 + $0x44] sm:$0xf]
    %v156 = vld [vmem:[%s143 + $0x48] sm:$0xff]
    %v157 = vld [vmem:[%s143 + $0x50] sm:$0xf]
    %v158 = vld [vmem:[%s143 + $0x54] sm:$0xff]
    %v159 = vld [vmem:[%s143 + $0x5c] sm:$0xf]
    %v160 = vld [vmem:[%s143 + $0x60] sm:$0xff]
    %v161 = vld [vmem:[%s143 + $0x68] sm:$0xf]
    %v162 = vunpack.c.l.b16 %v108
    %v163 = vunpack.c.l.b16 %v118
    %v164 = vunpack.c.l.b16 %v132
    %v165 = vunpack.c.l.b16 %v142
    %v166 = vpack.c.b16 %v163, %v162
    %v167 = vpack.c.b16 %v165, %v164
    %v186 = vunpack.c.l.b16 %v144
    %v187 = vunpack.c.h.b16 %v144
    %v188 = vunpack.c.l.b16 %v145
    %v189 = vunpack.c.l.b16 %v146
    %v190 = vunpack.c.h.b16 %v146
    %v191 = vunpack.c.l.b16 %v147
    %v192 = vunpack.c.l.b16 %v148
    %v193 = vunpack.c.h.b16 %v148
    %v194 = vunpack.c.l.b16 %v149
    %v195 = vunpack.c.l.b16 %v150
    %v196 = vunpack.c.h.b16 %v150
    %v197 = vunpack.c.l.b16 %v151
    %v198 = vunpack.c.l.b16 %v152
    %v199 = vunpack.c.h.b16 %v152
    %v200 = vunpack.c.l.b16 %v153
    %v201 = vunpack.c.l.b16 %v154
    %v202 = vunpack.c.h.b16 %v154
    %v203 = vunpack.c.l.b16 %v155
    %v204 = vunpack.c.l.b16 %v156
    %v205 = vunpack.c.h.b16 %v156
    %v206 = vunpack.c.l.b16 %v157
    %v207 = vunpack.c.l.b16 %v158
    %v208 = vunpack.c.h.b16 %v158
    %v209 = vunpack.c.l.b16 %v159
    %v210 = vunpack.c.l.b16 %v160
    %v211 = vunpack.c.h.b16 %v160
    %v212 = vunpack.c.l.b16 %v161
    %v213 = vpack.c.b16 %v189, %v186
    %v214 = vpack.c.b16 %v190, %v187
    %v215 = vpack.c.b16 %v191, %v188
    %v216 = vpack.c.b16 %v195, %v192
    %v217 = vpack.c.b16 %v196, %v193
    %v218 = vpack.c.b16 %v197, %v194
    %v219 = vpack.c.b16 %v201, %v198
    %v220 = vpack.c.b16 %v202, %v199
    %v221 = vpack.c.b16 %v203, %v200
    %v222 = vpack.c.b16 %v207, %v204
    %v223 = vpack.c.b16 %v208, %v205
    %v224 = vpack.c.b16 %v209, %v206
    %v225 = vpack.c.b16 %v210, %v210
    %v226 = vpack.c.b16 %v211, %v211
    %v227 = vpack.c.b16 %v212, %v212
    %vm240 = vcmask 588800
    %v242 = vsel %vm240, %v166, 0
    %v245 = vsel %vm240, %v167, 0
    %vm247 = vcmask 1043456
    %v249 = vsel %vm247, %v225, 0
    %v252 = vsel %vm247, %v226, 0
    %v255 = vsel %vm247, %v227, 0
    %257 = vmatprep.subr.bf16.mxu0 %v214
    %258 = vmatpush1.bf16.msra.mxu0 %v213
    %259 = vmatprep.subr.bf16.mxu0 %v217
    %260 = vmatpush1.bf16.msra.mxu0 %v216
    %261 = vmatprep.subr.bf16.mxu0 %v220
    %262 = vmatpush1.bf16.msra.mxu0 %v219
    %263 = vmatprep.subr.bf16.mxu0 %v223
    %264 = vmatpush1.bf16.msra.mxu0 %v222
    %265 = vmatprep.subr.bf16.mxu0 %v252
    %266 = vmatpush1.bf16.msra.mxu0 %v249
    %267 = vmatprep.subr.bf16.mxu0 0
    %268 = vmatpush1.bf16.msra.mxu0 0
    %269 = vmatprep.subr.bf16.mxu0 0
    %270 = vmatpush1.bf16.msra.mxu0 0
    %271 = vmatprep.subr.bf16.mxu0 0
    %272 = vmatpush1.bf16.msra.mxu0 0
    %273 = vmatprep.subr.bf16.mxu0 0
    %274 = vmatpush1.bf16.msra.mxu0 0
    %275 = vmatprep.subr.bf16.mxu0 0
    %276 = vmatpush1.bf16.msra.mxu0 0
    %277 = vmatprep.subr.bf16.mxu0 0
    %278 = vmatpush1.bf16.msra.mxu0 0
    %279 = vmatprep.subr.bf16.mxu0 0
    %280 = vmatpush1.bf16.msra.mxu0 0
    %281 = vmatprep.subr.bf16.mxu0 0
    %282 = vmatpush1.bf16.msra.mxu0 0
    %283 = vmatprep.subr.bf16.mxu0 0
    %284 = vmatpush1.bf16.msra.mxu0 0
    %285 = vmatprep.subr.bf16.mxu0 0
    %286 = vmatpush1.bf16.msra.mxu0 0
    %287 = vmatprep.subr.bf16.mxu0 0
    %288 = vmatpush1.bf16.msra.mxu0 0
    %289 = vmatprep.mubr.bf16.mxu0 0
    %290 = vmatmul.mubr.bf16.gmra.mrb[0].mxu0 %v242
    %v291 = vpop.f32.mrb[0].mxu0
    %v292 = vadd.f32 0.0, %v291
    %v293 = vpop.f32.mrb[0].mxu0
    %v294 = vadd.f32 0.0, %v293
    %v295 = vpop.f32.mrb[0].mxu0
    %v296 = vadd.f32 0.0, %v295
    %v297 = vpop.f32.mrb[0].mxu0
    %v298 = vadd.f32 0.0, %v297
    %299 = vmatprep.mubr.bf16.mxu0 0
    %300 = vmatmul.mubr.bf16.gmra.mrb[0].mxu0 %v245
    %v301 = vpop.f32.mrb[0].mxu0
    %v302 = vadd.f32 0.0, %v301
    %v303 = vpop.f32.mrb[0].mxu0
    %v304 = vadd.f32 0.0, %v303
    %v305 = vpop.f32.mrb[0].mxu0
    %v306 = vadd.f32 0.0, %v305
    %v307 = vpop.f32.mrb[0].mxu0
    %v308 = vadd.f32 0.0, %v307
    %309 = vdwg.mxu0
    %310 = vmatprep.subr.bf16.mxu0 0
    %311 = vmatpush1.bf16.msra.mxu0 %v215
    %312 = vmatprep.subr.bf16.mxu0 0
    %313 = vmatpush1.bf16.msra.mxu0 %v218
    %314 = vmatprep.subr.bf16.mxu0 0
    %315 = vmatpush1.bf16.msra.mxu0 %v221
    %316 = vmatprep.subr.bf16.mxu0 0
    %317 = vmatpush1.bf16.msra.mxu0 %v224
    %318 = vmatprep.subr.bf16.mxu0 0
    %319 = vmatpush1.bf16.msra.mxu0 %v255
    %320 = vmatprep.subr.bf16.mxu0 0
    %321 = vmatpush1.bf16.msra.mxu0 0
    %322 = vmatprep.subr.bf16.mxu0 0
    %323 = vmatpush1.bf16.msra.mxu0 0
    %324 = vmatprep.subr.bf16.mxu0 0
    %325 = vmatpush1.bf16.msra.mxu0 0
    %326 = vmatprep.subr.bf16.mxu0 0
    %327 = vmatpush1.bf16.msra.mxu0 0
    %328 = vmatprep.subr.bf16.mxu0 0
    %329 = vmatpush1.bf16.msra.mxu0 0
    %330 = vmatprep.subr.bf16.mxu0 0
    %331 = vmatpush1.bf16.msra.mxu0 0
    %332 = vmatprep.subr.bf16.mxu0 0
    %333 = vmatpush1.bf16.msra.mxu0 0
    %334 = vmatprep.subr.bf16.mxu0 0
    %335 = vmatpush1.bf16.msra.mxu0 0
    %336 = vmatprep.subr.bf16.mxu0 0
    %337 = vmatpush1.bf16.msra.mxu0 0
    %338 = vmatprep.subr.bf16.mxu0 0
    %339 = vmatpush1.bf16.msra.mxu0 0
    %340 = vmatprep.subr.bf16.mxu0 0
    %341 = vmatpush1.bf16.msra.mxu0 0
    %342 = vmatprep.mubr.bf16.mxu0 0
    %343 = vmatmul.mubr.bf16.gmra.mrb[0].mxu0 %v242
    %v344 = vpop.f32.mrb[0].mxu0
    %v345 = vadd.f32 0.0, %v344
    %v346 = vpop.f32.mrb[0].mxu0
    %v347 = vpop.f32.mrb[0].mxu0
    %v348 = vadd.f32 0.0, %v347
    %v349 = vpop.f32.mrb[0].mxu0
    %350 = vmatprep.mubr.bf16.mxu0 0
    %351 = vmatmul.mubr.bf16.gmra.mrb[0].mxu0 %v245
    %v352 = vpop.f32.mrb[0].mxu0
    %v353 = vadd.f32 0.0, %v352
    %v354 = vpop.f32.mrb[0].mxu0
    %v355 = vpop.f32.mrb[0].mxu0
    %v356 = vadd.f32 0.0, %v355
    %v357 = vpop.f32.mrb[0].mxu0
    %358 = vdwg.mxu0
    %v363 = vunpack.c.l.b16 %v68
    %v364 = vunpack.c.l.b16 %v69
    %v365 = vunpack.c.l.b16 %v70
    %v366 = vunpack.c.l.b16 %v71
    %v367 = vpack.c.b16 %v364, %v363
    %v368 = vpack.c.b16 %v366, %v365
    %v387 = vunpack.c.l.b16 %v72
    %v388 = vunpack.c.h.b16 %v72
    %v389 = vunpack.c.l.b16 %v73
    %v390 = vunpack.c.l.b16 %v74
    %v391 = vunpack.c.h.b16 %v74
    %v392 = vunpack.c.l.b16 %v75
    %v393 = vunpack.c.l.b16 %v76
    %v394 = vunpack.c.h.b16 %v76
    %v395 = vunpack.c.l.b16 %v77
    %v396 = vunpack.c.l.b16 %v78
    %v397 = vunpack.c.h.b16 %v78
    %v398 = vunpack.c.l.b16 %v79
    %v399 = vunpack.c.l.b16 %v80
    %v400 = vunpack.c.h.b16 %v80
    %v401 = vunpack.c.l.b16 %v81
    %v402 = vunpack.c.l.b16 %v82
    %v403 = vunpack.c.h.b16 %v82
    %v404 = vunpack.c.l.b16 %v83
    %v405 = vunpack.c.l.b16 %v84
    %v406 = vunpack.c.h.b16 %v84
    %v407 = vunpack.c.l.b16 %v85
    %v408 = vunpack.c.l.b16 %v86
    %v409 = vunpack.c.h.b16 %v86
    %v410 = vunpack.c.l.b16 %v87
    %v411 = vunpack.c.l.b16 %v88
    %v412 = vunpack.c.h.b16 %v88
    %v413 = vunpack.c.l.b16 %v89
    %v414 = vpack.c.b16 %v390, %v387
    %v415 = vpack.c.b16 %v391, %v388
    %v416 = vpack.c.b16 %v392, %v389
    %v417 = vpack.c.b16 %v396, %v393
    %v418 = vpack.c.b16 %v397, %v394
    %v419 = vpack.c.b16 %v398, %v395
    %v420 = vpack.c.b16 %v402, %v399
    %v421 = vpack.c.b16 %v403, %v400
    %v422 = vpack.c.b16 %v404, %v401
    %v423 = vpack.c.b16 %v408, %v405
    %v424 = vpack.c.b16 %v409, %v406
    %v425 = vpack.c.b16 %v410, %v407
    %v426 = vpack.c.b16 %v411, %v411
    %v427 = vpack.c.b16 %v412, %v412
    %v428 = vpack.c.b16 %v413, %v413
    %v442 = vsel %vm240, %v367, 0
    %v445 = vsel %vm240, %v368, 0
    %v448 = vsel %vm247, %v426, 0
    %v451 = vsel %vm247, %v427, 0
    %v454 = vsel %vm247, %v428, 0
    %456 = vmatprep.subr.bf16.mxu0 %v415
    %457 = vmatpush1.bf16.msra.mxu0 %v414
    %458 = vmatprep.subr.bf16.mxu0 %v418
    %459 = vmatpush1.bf16.msra.mxu0 %v417
    %460 = vmatprep.subr.bf16.mxu0 %v421
    %461 = vmatpush1.bf16.msra.mxu0 %v420
    %462 = vmatprep.subr.bf16.mxu0 %v424
    %463 = vmatpush1.bf16.msra.mxu0 %v423
    %464 = vmatprep.subr.bf16.mxu0 %v451
    %465 = vmatpush1.bf16.msra.mxu0 %v448
    %466 = vmatprep.subr.bf16.mxu0 0
    %467 = vmatpush1.bf16.msra.mxu0 0
    %468 = vmatprep.subr.bf16.mxu0 0
    %469 = vmatpush1.bf16.msra.mxu0 0
    %470 = vmatprep.subr.bf16.mxu0 0
    %471 = vmatpush1.bf16.msra.mxu0 0
    %472 = vmatprep.subr.bf16.mxu0 0
    %473 = vmatpush1.bf16.msra.mxu0 0
    %474 = vmatprep.subr.bf16.mxu0 0
    %475 = vmatpush1.bf16.msra.mxu0 0
    %476 = vmatprep.subr.bf16.mxu0 0
    %477 = vmatpush1.bf16.msra.mxu0 0
    %478 = vmatprep.subr.bf16.mxu0 0
    %479 = vmatpush1.bf16.msra.mxu0 0
    %480 = vmatprep.subr.bf16.mxu0 0
    %481 = vmatpush1.bf16.msra.mxu0 0
    %482 = vmatprep.subr.bf16.mxu0 0
    %483 = vmatpush1.bf16.msra.mxu0 0
    %484 = vmatprep.subr.bf16.mxu0 0
    %485 = vmatpush1.bf16.msra.mxu0 0
    %486 = vmatprep.subr.bf16.mxu0 0
    %487 = vmatpush1.bf16.msra.mxu0 0
    %488 = vmatprep.mubr.bf16.mxu0 0
    %489 = vmatmul.mubr.bf16.gmra.mrb[0].mxu0 %v442
    %v490 = vpop.f32.mrb[0].mxu0
    %v491 = vadd.f32 %v292, %v490
    %v492 = vpop.f32.mrb[0].mxu0
    %v493 = vadd.f32 %v294, %v492
    %v494 = vpop.f32.mrb[0].mxu0
    %v495 = vadd.f32 %v296, %v494
    %v496 = vpop.f32.mrb[0].mxu0
    %v497 = vadd.f32 %v298, %v496
    %498 = vmatprep.mubr.bf16.mxu0 0
    %499 = vmatmul.mubr.bf16.gmra.mrb[0].mxu0 %v445
    %v500 = vpop.f32.mrb[0].mxu0
    %v501 = vadd.f32 %v302, %v500
    %v502 = vpop.f32.mrb[0].mxu0
    %v503 = vadd.f32 %v304, %v502
    %v504 = vpop.f32.mrb[0].mxu0
    %v505 = vadd.f32 %v306, %v504
    %v506 = vpop.f32.mrb[0].mxu0
    %v507 = vadd.f32 %v308, %v506
    %508 = vdwg.mxu0
    %509 = vmatprep.subr.bf16.mxu0 0
    %510 = vmatpush1.bf16.msra.mxu0 %v416
    %511 = vmatprep.subr.bf16.mxu0 0
    %512 = vmatpush1.bf16.msra.mxu0 %v419
    %513 = vmatprep.subr.bf16.mxu0 0
    %514 = vmatpush1.bf16.msra.mxu0 %v422
    %515 = vmatprep.subr.bf16.mxu0 0
    %516 = vmatpush1.bf16.msra.mxu0 %v425
    %517 = vmatprep.subr.bf16.mxu0 0
    %518 = vmatpush1.bf16.msra.mxu0 %v454
    %519 = vmatprep.subr.bf16.mxu0 0
    %520 = vmatpush1.bf16.msra.mxu0 0
    %521 = vmatprep.subr.bf16.mxu0 0
    %522 = vmatpush1.bf16.msra.mxu0 0
    %523 = vmatprep.subr.bf16.mxu0 0
    %524 = vmatpush1.bf16.msra.mxu0 0
    %525 = vmatprep.subr.bf16.mxu0 0
    %526 = vmatpush1.bf16.msra.mxu0 0
    %527 = vmatprep.subr.bf16.mxu0 0
    %528 = vmatpush1.bf16.msra.mxu0 0
    %529 = vmatprep.subr.bf16.mxu0 0
    %530 = vmatpush1.bf16.msra.mxu0 0
    %531 = vmatprep.subr.bf16.mxu0 0
    %532 = vmatpush1.bf16.msra.mxu0 0
    %533 = vmatprep.subr.bf16.mxu0 0
    %534 = vmatpush1.bf16.msra.mxu0 0
    %535 = vmatprep.subr.bf16.mxu0 0
    %536 = vmatpush1.bf16.msra.mxu0 0
    %537 = vmatprep.subr.bf16.mxu0 0
    %538 = vmatpush1.bf16.msra.mxu0 0
    %539 = vmatprep.subr.bf16.mxu0 0
    %540 = vmatpush1.bf16.msra.mxu0 0
    %541 = vmatprep.mubr.bf16.mxu0 0
    %542 = vmatmul.mubr.bf16.gmra.mrb[0].mxu0 %v442
    %v543 = vpop.f32.mrb[0].mxu0
    %v544 = vadd.f32 %v345, %v543
    %v545 = vpop.f32.mrb[0].mxu0
    %v546 = vpop.f32.mrb[0].mxu0
    %v547 = vadd.f32 %v348, %v546
    %v548 = vpop.f32.mrb[0].mxu0
    %549 = vmatprep.mubr.bf16.mxu0 0
    %550 = vmatmul.mubr.bf16.gmra.mrb[0].mxu0 %v445
    %v551 = vpop.f32.mrb[0].mxu0
    %v552 = vadd.f32 %v353, %v551
    %v553 = vpop.f32.mrb[0].mxu0
    %v554 = vpop.f32.mrb[0].mxu0
    %v555 = vadd.f32 %v356, %v554
    %v556 = vpop.f32.mrb[0].mxu0
    %557 = vdwg.mxu0
    %v558 = vld [vmem:[%s0] sm:$0xe]
    %v559 = vld [vmem:[%s0 + $0xc] sm:$0xe]
    %vm564 = vcmask 1042432
    %vm565 = vcmask 1046532
    %vm566 = vmor %vm564, %vm565
    %v567 = vrot.slane %v558, 5
    %v568 = vrot.slane %v567, 4
    %v569 = vrot.slane %v69, 5
    %v570 = vsel %vm566, %v568, %v569
    %v571 = vrot.slane %v569, 4
    %v572 = vrot.slane %v90, 5
    %v573 = vsel %vm566, %v571, %v572
    %v574 = vrot.slane %v559, 5
    %v575 = vrot.slane %v574, 4
    %v576 = vrot.slane %v71, 5
    %v577 = vsel %vm566, %v575, %v576
    %v578 = vrot.slane %v576, 4
    %v579 = vrot.slane %v91, 5
    %v580 = vsel %vm566, %v578, %v579
    %s581 = scalar_lea.vmem [#allocation3], 216
    %v582 = vld [vmem:[%s581] sm:$0xff]
    %v583 = vld [vmem:[%s581 + $0x8] sm:$0xf]
    %v584 = vld [vmem:[%s581 + $0xc] sm:$0xff]
    %v585 = vld [vmem:[%s581 + $0x14] sm:$0xf]
    %v586 = vld [vmem:[%s581 + $0x18] sm:$0xff]
    %v587 = vld [vmem:[%s581 + $0x20] sm:$0xf]
    %v588 = vld [vmem:[%s581 + $0x24] sm:$0xff]
    %v589 = vld [vmem:[%s581 + $0x2c] sm:$0xf]
    %v590 = vld [vmem:[%s581 + $0x30] sm:$0xff]
    %v591 = vld [vmem:[%s581 + $0x38] sm:$0xf]
    %v592 = vld [vmem:[%s581 + $0x3c] sm:$0xff]
    %v593 = vld [vmem:[%s581 + $0x44] sm:$0xf]
    %v594 = vld [vmem:[%s581 + $0x48] sm:$0xff]
    %v595 = vld [vmem:[%s581 + $0x50] sm:$0xf]
    %v596 = vld [vmem:[%s581 + $0x54] sm:$0xff]
    %v597 = vld [vmem:[%s581 + $0x5c] sm:$0xf]
    %v598 = vld [vmem:[%s581 + $0x60] sm:$0xff]
    %v599 = vld [vmem:[%s581 + $0x68] sm:$0xf]
    %v600 = vunpack.c.l.b16 %v570
    %v601 = vunpack.c.l.b16 %v573
    %v602 = vunpack.c.l.b16 %v577
    %v603 = vunpack.c.l.b16 %v580
    %v604 = vpack.c.b16 %v601, %v600
    %v605 = vpack.c.b16 %v603, %v602
    %v624 = vunpack.c.l.b16 %v582
    %v625 = vunpack.c.h.b16 %v582
    %v626 = vunpack.c.l.b16 %v583
    %v627 = vunpack.c.l.b16 %v584
    %v628 = vunpack.c.h.b16 %v584
    %v629 = vunpack.c.l.b16 %v585
    %v630 = vunpack.c.l.b16 %v586
    %v631 = vunpack.c.h.b16 %v586
    %v632 = vunpack.c.l.b16 %v587
    %v633 = vunpack.c.l.b16 %v588
    %v634 = vunpack.c.h.b16 %v588
    %v635 = vunpack.c.l.b16 %v589
    %v636 = vunpack.c.l.b16 %v590
    %v637 = vunpack.c.h.b16 %v590
    %v638 = vunpack.c.l.b16 %v591
    %v639 = vunpack.c.l.b16 %v592
    %v640 = vunpack.c.h.b16 %v592
    %v641 = vunpack.c.l.b16 %v593
    %v642 = vunpack.c.l.b16 %v594
    %v643 = vunpack.c.h.b16 %v594
    %v644 = vunpack.c.l.b16 %v595
    %v645 = vunpack.c.l.b16 %v596
    %v646 = vunpack.c.h.b16 %v596
    %v647 = vunpack.c.l.b16 %v597
    %v648 = vunpack.c.l.b16 %v598
    %v649 = vunpack.c.h.b16 %v598
    %v650 = vunpack.c.l.b16 %v599
    %v651 = vpack.c.b16 %v627, %v624
    %v652 = vpack.c.b16 %v628, %v625
    %v653 = vpack.c.b16 %v629, %v626
    %v654 = vpack.c.b16 %v633, %v630
    %v655 = vpack.c.b16 %v634, %v631
    %v656 = vpack.c.b16 %v635, %v632
    %v657 = vpack.c.b16 %v639, %v636
    %v658 = vpack.c.b16 %v640, %v637
    %v659 = vpack.c.b16 %v641, %v638
    %v660 = vpack.c.b16 %v645, %v642
    %v661 = vpack.c.b16 %v646, %v643
    %v662 = vpack.c.b16 %v647, %v644
    %v663 = vpack.c.b16 %v648, %v648
    %v664 = vpack.c.b16 %v649, %v649
    %v665 = vpack.c.b16 %v650, %v650
    %v679 = vsel %vm240, %v604, 0
    %v682 = vsel %vm240, %v605, 0
    %v685 = vsel %vm247, %v663, 0
    %v688 = vsel %vm247, %v664, 0
    %v691 = vsel %vm247, %v665, 0
    %693 = vmatprep.subr.bf16.mxu0 %v652
    %694 = vmatpush1.bf16.msra.mxu0 %v651
    %695 = vmatprep.subr.bf16.mxu0 %v655
    %696 = vmatpush1.bf16.msra.mxu0 %v654
    %697 = vmatprep.subr.bf16.mxu0 %v658
    %698 = vmatpush1.bf16.msra.mxu0 %v657
    %699 = vmatprep.subr.bf16.mxu0 %v661
    %700 = vmatpush1.bf16.msra.mxu0 %v660
    %701 = vmatprep.subr.bf16.mxu0 %v688
    %702 = vmatpush1.bf16.msra.mxu0 %v685
    %703 = vmatprep.subr.bf16.mxu0 0
    %704 = vmatpush1.bf16.msra.mxu0 0
    %705 = vmatprep.subr.bf16.mxu0 0
    %706 = vmatpush1.bf16.msra.mxu0 0
    %707 = vmatprep.subr.bf16.mxu0 0
    %708 = vmatpush1.bf16.msra.mxu0 0
    %709 = vmatprep.subr.bf16.mxu0 0
    %710 = vmatpush1.bf16.msra.mxu0 0
    %711 = vmatprep.subr.bf16.mxu0 0
    %712 = vmatpush1.bf16.msra.mxu0 0
    %713 = vmatprep.subr.bf16.mxu0 0
    %714 = vmatpush1.bf16.msra.mxu0 0
    %715 = vmatprep.subr.bf16.mxu0 0
    %716 = vmatpush1.bf16.msra.mxu0 0
    %717 = vmatprep.subr.bf16.mxu0 0
    %718 = vmatpush1.bf16.msra.mxu0 0
    %719 = vmatprep.subr.bf16.mxu0 0
    %720 = vmatpush1.bf16.msra.mxu0 0
    %721 = vmatprep.subr.bf16.mxu0 0
    %722 = vmatpush1.bf16.msra.mxu0 0
    %723 = vmatprep.subr.bf16.mxu0 0
    %724 = vmatpush1.bf16.msra.mxu0 0
    %725 = vmatprep.mubr.bf16.mxu0 0
    %726 = vmatmul.mubr.bf16.gmra.mrb[0].mxu0 %v679
    %v727 = vpop.f32.mrb[0].mxu0
    %v728 = vadd.f32 0.0, %v727
    %v729 = vpop.f32.mrb[0].mxu0
    %v730 = vadd.f32 0.0, %v729
    %v731 = vpop.f32.mrb[0].mxu0
    %v732 = vadd.f32 0.0, %v731
    %v733 = vpop.f32.mrb[0].mxu0
    %v734 = vadd.f32 0.0, %v733
    %735 = vmatprep.mubr.bf16.mxu0 0
    %736 = vmatmul.mubr.bf16.gmra.mrb[0].mxu0 %v682
    %v737 = vpop.f32.mrb[0].mxu0
    %v738 = vadd.f32 0.0, %v737
    %v739 = vpop.f32.mrb[0].mxu0
    %v740 = vadd.f32 0.0, %v739
    %v741 = vpop.f32.mrb[0].mxu0
    %v742 = vadd.f32 0.0, %v741
    %v743 = vpop.f32.mrb[0].mxu0
    %v744 = vadd.f32 0.0, %v743
    %745 = vdwg.mxu0
    %746 = vmatprep.subr.bf16.mxu0 0
    %747 = vmatpush1.bf16.msra.mxu0 %v653
    %748 = vmatprep.subr.bf16.mxu0 0
    %749 = vmatpush1.bf16.msra.mxu0 %v656
    %750 = vmatprep.subr.bf16.mxu0 0
    %751 = vmatpush1.bf16.msra.mxu0 %v659
    %752 = vmatprep.subr.bf16.mxu0 0
    %753 = vmatpush1.bf16.msra.mxu0 %v662
    %754 = vmatprep.subr.bf16.mxu0 0
    %755 = vmatpush1.bf16.msra.mxu0 %v691
    %756 = vmatprep.subr.bf16.mxu0 0
    %757 = vmatpush1.bf16.msra.mxu0 0
    %758 = vmatprep.subr.bf16.mxu0 0
    %759 = vmatpush1.bf16.msra.mxu0 0
    %760 = vmatprep.subr.bf16.mxu0 0
    %761 = vmatpush1.bf16.msra.mxu0 0
    %762 = vmatprep.subr.bf16.mxu0 0
    %763 = vmatpush1.bf16.msra.mxu0 0
    %764 = vmatprep.subr.bf16.mxu0 0
    %765 = vmatpush1.bf16.msra.mxu0 0
    %766 = vmatprep.subr.bf16.mxu0 0
    %767 = vmatpush1.bf16.msra.mxu0 0
    %768 = vmatprep.subr.bf16.mxu0 0
    %769 = vmatpush1.bf16.msra.mxu0 0
    %770 = vmatprep.subr.bf16.mxu0 0
    %771 = vmatpush1.bf16.msra.mxu0 0
    %772 = vmatprep.subr.bf16.mxu0 0
    %773 = vmatpush1.bf16.msra.mxu0 0
    %774 = vmatprep.subr.bf16.mxu0 0
    %775 = vmatpush1.bf16.msra.mxu0 0
    %776 = vmatprep.subr.bf16.mxu0 0
    %777 = vmatpush1.bf16.msra.mxu0 0
    %778 = vmatprep.mubr.bf16.mxu0 0
    %779 = vmatmul.mubr.bf16.gmra.mrb[0].mxu0 %v679
    %v780 = vpop.f32.mrb[0].mxu0
    %v781 = vadd.f32 0.0, %v780
    %v782 = vpop.f32.mrb[0].mxu0
    %v783 = vpop.f32.mrb[0].mxu0
    %v784 = vadd.f32 0.0, %v783
    %v785 = vpop.f32.mrb[0].mxu0
    %786 = vmatprep.mubr.bf16.mxu0 0
    %787 = vmatmul.mubr.bf16.gmra.mrb[0].mxu0 %v682
    %v788 = vpop.f32.mrb[0].mxu0
    %v789 = vadd.f32 0.0, %v788
    %v790 = vpop.f32.mrb[0].mxu0
    %v791 = vpop.f32.mrb[0].mxu0
    %v792 = vadd.f32 0.0, %v791
    %v793 = vpop.f32.mrb[0].mxu0
    %794 = vdwg.mxu0
    %v795 = vadd.f32 %v491, %v728
    %v796 = vadd.f32 %v493, %v730
    %v797 = vadd.f32 %v544, %v781
    %v798 = vadd.f32 %v495, %v732
    %v799 = vadd.f32 %v497, %v734
    %v800 = vadd.f32 %v547, %v784
    %v801 = vadd.f32 %v501, %v738
    %v802 = vadd.f32 %v503, %v740
    %v803 = vadd.f32 %v552, %v789
    %v804 = vadd.f32 %v505, %v742
    %v805 = vadd.f32 %v507, %v744
    %v806 = vadd.f32 %v555, %v792
    %v807 = vld [vmem:[%s2] ss:$2 sm:$0x3]
    %v809 = vlaneseq
    %v810 = vshrl.u32 %v809, 7
    %v811 = vsub.s32 0, %v810
    %v812 = vrot.slane %v807, %v811
    %v813 = vlaneseq
    %v814 = vshrl.u32 %v813, 7
    %v815 = vsub.s32 1, %v814
    %v816 = vrot.slane %v807, %v815
    %v819 = vmul.f32 %v796, %v812
    %v820 = vmul.f32 %v797, %v816
    %v821 = vmul.f32 %v799, %v812
    %v822 = vmul.f32 %v800, %v816
    %v823 = vmul.f32 %v802, %v812
    %v824 = vmul.f32 %v803, %v816
    %v825 = vmul.f32 %v805, %v812
    %v826 = vmul.f32 %v806, %v816
    %s827 = scalar_lea.vmem %s2, 1
    %v828 = vld [vmem:[%s827] ss:$2 sm:$0x3]
    %v830 = vlaneseq
    %v831 = vshrl.u32 %v830, 7
    %v832 = vsub.s32 0, %v831
    %v833 = vrot.slane %v828, %v832
    %v834 = vlaneseq
    %v835 = vshrl.u32 %v834, 7
    %v836 = vsub.s32 1, %v835
    %v837 = vrot.slane %v828, %v836
    %v840 = vadd.f32 %v819, %v833
    %v841 = vadd.f32 %v820, %v837
    %v842 = vadd.f32 %v821, %v833
    %v843 = vadd.f32 %v822, %v837
    %v844 = vadd.f32 %v823, %v833
    %v845 = vadd.f32 %v824, %v837
    %v846 = vadd.f32 %v825, %v833
    %v847 = vadd.f32 %v826, %v837
    %v848 = vmax.f32 %v840, 0.0
    %v849 = vmax.f32 %v841, 0.0
    %v850 = vmax.f32 %v842, 0.0
    %v851 = vmax.f32 %v843, 0.0
    %v852 = vmax.f32 %v844, 0.0
    %v853 = vmax.f32 %v845, 0.0
    %v854 = vmax.f32 %v846, 0.0
    %v855 = vmax.f32 %v847, 0.0
    %vm856 = vcmask 1040384
    %vm857 = vsmask.f32 256
    %vm858 = vmand %vm856, %vm857
    %vm859 = vcmask 126980
    %vm860 = vsmask.f32 4352
    %vm861 = vmand %vm859, %vm860
    %vm862 = vmor %vm861, %vm858
    %v863 = vld [vmem:[#allocation2] sm:$0x11]
    %v864 = vsel %vm862, 0, %v863
    %865 = vst [vmem:[#allocation2] sm:$0x11] %v864
    %v866 = vld [vmem:[#allocation2 + $0x18] sm:$0x11]
    %v867 = vsel %vm862, 0, %v866
    %868 = vst [vmem:[#allocation2 + $0x18] sm:$0x11] %v867
    %vm869 = vsmask.f32 7938
    %vm870 = vmand %vm856, %vm869
    %vm871 = vsmask.f32 7954
    %vm872 = vmand %vm859, %vm871
    %vm873 = vmor %vm872, %vm870
    %v874 = vld [vmem:[#allocation2 + $0x10] sm:$0x11]
    %v875 = vsel %vm873, 0, %v874
    %876 = vst [vmem:[#allocation2 + $0x10] sm:$0x11] %v875
    %v877 = vld [vmem:[#allocation2 + $0x28] sm:$0x11]
    %v878 = vsel %vm873, 0, %v877
    %879 = vst [vmem:[#allocation2 + $0x28] sm:$0x11] %v878
    %v880 = vpack.c.bf16 %v850, %v848
    %v881 = vpack.c.bf16 %v851, %v849
    %v882 = vpack.c.bf16 %v854, %v852
    %v883 = vpack.c.bf16 %v855, %v853
    %v888 = vunpack.c.l.b16 %v880
    %v889 = vunpack.c.l.b16 %v881
    %v890 = vunpack.c.h.b16 %v880
    %v891 = vunpack.c.h.b16 %v881
    %v892 = vunpack.c.l.b16 %v882
    %v893 = vunpack.c.l.b16 %v883
    %v894 = vunpack.c.h.b16 %v882
    %v895 = vunpack.c.h.b16 %v883
    %v896 = vpack.c.b16 %v889, %v888
    %v897 = vpack.c.b16 %v891, %v890
    %v898 = vpack.c.b16 %v893, %v892
    %v899 = vpack.c.b16 %v895, %v894
    %vm900 = vsmask.f32 4368
    %vm901 = vmor %vm857, %vm900
    %v903 = vshrl.u32 %v896, 16
    %v905 = vrot.slane %v903, 7
    %v906 = vshll.u32 %v896, 16
    %v908 = vor.u32 %v905, %v906
    %v909 = vrot.slane %v905, 4
    %v911 = vshrl.u32 %v897, 16
    %v913 = vrot.slane %v911, 7
    %v914 = vshll.u32 %v897, 16
    %v916 = vor.u32 %v913, %v914
    %v917 = vsel %vm901, %v909, %v916
    %v918 = vrot.slane %v913, 4
    %v920 = vshrl.u32 %v898, 16
    %v922 = vrot.slane %v920, 7
    %v923 = vshll.u32 %v898, 16
    %v925 = vor.u32 %v922, %v923
    %v926 = vrot.slane %v922, 4
    %v928 = vshrl.u32 %v899, 16
    %v930 = vrot.slane %v928, 7
    %v931 = vshll.u32 %v899, 16
    %v933 = vor.u32 %v930, %v931
    %v934 = vsel %vm901, %v926, %v933
    %v935 = vrot.slane %v930, 4
    %vm942 = vcmask 1043456
    %vm943 = vmand %vm942, %vm869
    %vm944 = vcmask 130052
    %vm945 = vmand %vm944, %vm871
    %vm946 = vmor %vm945, %vm943
    %v947 = vld [vmem:[#allocation2] sm:$0xff]
    %v948 = vsel %vm946, %v908, %v947
    %949 = vst [vmem:[#allocation2] sm:$0xff] %v948
    %vm950 = vcmask 130052
    %vm951 = vmor %vm950, %vm247
    %952 = vst.msk [vmem:[#allocation2 + $0x8] sm:$0xff] %vm951, %v917
    %v953 = vld [vmem:[#allocation2 + $0x10] sm:$0x11]
    %v954 = vsel %vm862, %v918, %v953
    %955 = vst [vmem:[#allocation2 + $0x10] sm:$0x11] %v954
    %v956 = vld [vmem:[#allocation2 + $0x18] sm:$0xff]
    %v957 = vsel %vm946, %v925, %v956
    %958 = vst [vmem:[#allocation2 + $0x18] sm:$0xff] %v957
    %959 = vst.msk [vmem:[#allocation2 + $0x20] sm:$0xff] %vm951, %v934
    %v960 = vld [vmem:[#allocation2 + $0x28] sm:$0x11]
    %v961 = vsel %vm862, %v935, %v960
    %962 = vst [vmem:[#allocation2 + $0x28] sm:$0x11] %v961
    %v963 = vld [vmem:[#allocation2] sm:$0xff]
    %v964 = vld [vmem:[#allocation2 + $0x8] sm:$0xff]
    %v965 = vld [vmem:[#allocation2 + $0x18] sm:$0xff]
    %v966 = vld [vmem:[#allocation2 + $0x20] sm:$0xff]
    %v967 = vld [vmem:[#allocation6] sm:$0xf]
    %v968 = vld [vmem:[#allocation6 + $0x4] sm:$0xf]
    %v969 = vld [vmem:[#allocation6 + $0x8] sm:$0xf]
    %v970 = vld [vmem:[#allocation6 + $0xc] sm:$0xf]
    %v971 = vld [vmem:[#allocation6 + $0x10] sm:$0xf]
    %v972 = vld [vmem:[#allocation6 + $0x14] sm:$0xf]
    %v973 = vld [vmem:[#allocation6 + $0x18] sm:$0xf]
    %v974 = vld [vmem:[#allocation6 + $0x1c] sm:$0xf]
    %v975 = vld [vmem:[#allocation6 + $0x20] sm:$0xf]
    %v976 = vld [vmem:[#allocation6 + $0x24] sm:$0xf]
    %v977 = vld [vmem:[#allocation6 + $0x28] sm:$0xf]
    %v978 = vld [vmem:[#allocation6 + $0x2c] sm:$0xf]
    %v979 = vld [vmem:[#allocation6 + $0x30] sm:$0xf]
    %v980 = vld [vmem:[#allocation6 + $0x34] sm:$0xf]
    %v981 = vld [vmem:[#allocation6 + $0x38] sm:$0xf]
    %v982 = vld [vmem:[#allocation6 + $0x3c] sm:$0xf]
    %v983 = vld [vmem:[#allocation6 + $0x40] sm:$0xf]
    %v984 = vld [vmem:[#allocation6 + $0x44] sm:$0xf]
    %v985 = vld [vmem:[#allocation2 + $0x10] sm:$0x11]
    %v986 = vld [vmem:[#allocation2 + $0x28] sm:$0x11]
    %v988 = vshrl.u32 %v963, 16
    %v990 = vrot.slane %v988, 4
    %v991 = vshll.u32 %v963, 16
    %v993 = vrot.slane %v991, 5
    %v994 = vor.u32 %v990, %v993
    %v995 = vrot.slane %v994, 4
    %v997 = vshll.u32 %v964, 16
    %v999 = vrot.slane %v997, 5
    %v1000 = vsel %vm94, %v995, %v999
    %v1001 = vshrl.u32 %v964, 16
    %v1003 = vrot.slane %v1001, 4
    %v1004 = vor.u32 %v1003, %v999
    %v1005 = vrot.slane %v1004, 4
    %v1007 = vshll.u32 %v985, 16
    %v1009 = vrot.slane %v1007, 5
    %v1010 = vsel %vm94, %v1005, %v1009
    %v1012 = vshrl.u32 %v965, 16
    %v1014 = vrot.slane %v1012, 4
    %v1015 = vshll.u32 %v965, 16
    %v1017 = vrot.slane %v1015, 5
    %v1018 = vor.u32 %v1014, %v1017
    %v1019 = vrot.slane %v1018, 4
    %v1021 = vshll.u32 %v966, 16
    %v1023 = vrot.slane %v1021, 5
    %v1024 = vsel %vm94, %v1019, %v1023
    %v1025 = vshrl.u32 %v966, 16
    %v1027 = vrot.slane %v1025, 4
    %v1028 = vor.u32 %v1027, %v1023
    %v1029 = vrot.slane %v1028, 4
    %v1031 = vshll.u32 %v986, 16
    %v1033 = vrot.slane %v1031, 5
    %v1034 = vsel %vm94, %v1029, %v1033
    %s1035 = scalar_lea.vmem [#allocation6], 72
    %v1036 = vld [vmem:[%s1035] sm:$0xf]
    %v1037 = vld [vmem:[%s1035 + $0x4] sm:$0xf]
    %v1038 = vld [vmem:[%s1035 + $0x8] sm:$0xf]
    %v1039 = vld [vmem:[%s1035 + $0xc] sm:$0xf]
    %v1040 = vld [vmem:[%s1035 + $0x10] sm:$0xf]
    %v1041 = vld [vmem:[%s1035 + $0x14] sm:$0xf]
    %v1042 = vld [vmem:[%s1035 + $0x18] sm:$0xf]
    %v1043 = vld [vmem:[%s1035 + $0x1c] sm:$0xf]
    %v1044 = vld [vmem:[%s1035 + $0x20] sm:$0xf]
    %v1045 = vld [vmem:[%s1035 + $0x24] sm:$0xf]
    %v1046 = vld [vmem:[%s1035 + $0x28] sm:$0xf]
    %v1047 = vld [vmem:[%s1035 + $0x2c] sm:$0xf]
    %v1048 = vld [vmem:[%s1035 + $0x30] sm:$0xf]
    %v1049 = vld [vmem:[%s1035 + $0x34] sm:$0xf]
    %v1050 = vld [vmem:[%s1035 + $0x38] sm:$0xf]
    %v1051 = vld [vmem:[%s1035 + $0x3c] sm:$0xf]
    %v1052 = vld [vmem:[%s1035 + $0x40] sm:$0xf]
    %v1053 = vld [vmem:[%s1035 + $0x44] sm:$0xf]
    %v1054 = vunpack.c.l.b16 %v1000
    %v1055 = vunpack.c.h.b16 %v1000
    %v1056 = vunpack.c.l.b16 %v1010
    %v1057 = vunpack.c.h.b16 %v1010
    %v1058 = vunpack.c.l.b16 %v1024
    %v1059 = vunpack.c.h.b16 %v1024
    %v1060 = vunpack.c.l.b16 %v1034
    %v1061 = vunpack.c.h.b16 %v1034
    %v1062 = vpack.c.b16 %v1056, %v1054
    %v1063 = vpack.c.b16 %v1057, %v1055
    %v1064 = vpack.c.b16 %v1060, %v1058
    %v1065 = vpack.c.b16 %v1061, %v1059
    %v1086 = vunpack.c.l.b16 %v1036
    %v1087 = vunpack.c.l.b16 %v1037
    %v1088 = vunpack.c.l.b16 %v1038
    %v1089 = vunpack.c.l.b16 %v1039
    %v1090 = vunpack.c.l.b16 %v1040
    %v1091 = vunpack.c.l.b16 %v1041
    %v1092 = vunpack.c.l.b16 %v1042
    %v1093 = vunpack.c.l.b16 %v1043
    %v1094 = vunpack.c.l.b16 %v1044
    %v1095 = vunpack.c.l.b16 %v1045
    %v1096 = vunpack.c.l.b16 %v1046
    %v1097 = vunpack.c.l.b16 %v1047
    %v1098 = vunpack.c.l.b16 %v1048
    %v1099 = vunpack.c.l.b16 %v1049
    %v1100 = vunpack.c.l.b16 %v1050
    %v1101 = vunpack.c.l.b16 %v1051
    %v1102 = vunpack.c.l.b16 %v1052
    %v1103 = vunpack.c.l.b16 %v1053
    %v1104 = vpack.c.b16 %v1087, %v1086
    %v1105 = vpack.c.b16 %v1089, %v1088
    %v1106 = vpack.c.b16 %v1091, %v1090
    %v1107 = vpack.c.b16 %v1093, %v1092
    %v1108 = vpack.c.b16 %v1095, %v1094
    %v1109 = vpack.c.b16 %v1097, %v1096
    %v1110 = vpack.c.b16 %v1099, %v1098
    %v1111 = vpack.c.b16 %v1101, %v1100
    %v1112 = vpack.c.b16 %v1103, %v1102
    %vm1122 = vcmask 130048
    %v1124 = vsel %vm1122, %v1063, 0
    %v1127 = vsel %vm1122, %v1065, 0
    %1129 = vmatprep.subr.bf16.mxu0 0
    %1130 = vmatpush1.bf16.msra.mxu0 %v1104
    %1131 = vmatprep.subr.bf16.mxu0 0
    %1132 = vmatpush1.bf16.msra.mxu0 %v1105
    %1133 = vmatprep.subr.bf16.mxu0 0
    %1134 = vmatpush1.bf16.msra.mxu0 %v1106
    %1135 = vmatprep.subr.bf16.mxu0 0
    %1136 = vmatpush1.bf16.msra.mxu0 %v1107
    %1137 = vmatprep.subr.bf16.mxu0 0
    %1138 = vmatpush1.bf16.msra.mxu0 %v1108
    %1139 = vmatprep.subr.bf16.mxu0 0
    %1140 = vmatpush1.bf16.msra.mxu0 %v1109
    %1141 = vmatprep.subr.bf16.mxu0 0
    %1142 = vmatpush1.bf16.msra.mxu0 %v1110
    %1143 = vmatprep.subr.bf16.mxu0 0
    %1144 = vmatpush1.bf16.msra.mxu0 %v1111
    %1145 = vmatprep.subr.bf16.mxu0 0
    %1146 = vmatpush1.bf16.msra.mxu0 %v1112
    %1147 = vmatprep.subr.bf16.mxu0 0
    %1148 = vmatpush1.bf16.msra.mxu0 0
    %1149 = vmatprep.subr.bf16.mxu0 0
    %1150 = vmatpush1.bf16.msra.mxu0 0
    %1151 = vmatprep.subr.bf16.mxu0 0
    %1152 = vmatpush1.bf16.msra.mxu0 0
    %1153 = vmatprep.subr.bf16.mxu0 0
    %1154 = vmatpush1.bf16.msra.mxu0 0
    %1155 = vmatprep.subr.bf16.mxu0 0
    %1156 = vmatpush1.bf16.msra.mxu0 0
    %1157 = vmatprep.subr.bf16.mxu0 0
    %1158 = vmatpush1.bf16.msra.mxu0 0
    %1159 = vmatprep.subr.bf16.mxu0 0
    %1160 = vmatpush1.bf16.msra.mxu0 0
    %1161 = vmatprep.mubr.bf16.mxu0 %v1124
    %1162 = vmatmul.mubr.bf16.gmra.mrb[0].mxu0 %v1062
    %v1163 = vpop.f32.mrb[0].mxu0
    %v1164 = vadd.f32 0.0, %v1163
    %v1165 = vpop.f32.mrb[0].mxu0
    %v1166 = vpop.f32.mrb[0].mxu0
    %v1167 = vadd.f32 0.0, %v1166
    %v1168 = vpop.f32.mrb[0].mxu0
    %1169 = vmatprep.mubr.bf16.mxu0 %v1127
    %1170 = vmatmul.mubr.bf16.gmra.mrb[0].mxu0 %v1064
    %v1171 = vpop.f32.mrb[0].mxu0
    %v1172 = vadd.f32 0.0, %v1171
    %v1173 = vpop.f32.mrb[0].mxu0
    %v1174 = vpop.f32.mrb[0].mxu0
    %v1175 = vadd.f32 0.0, %v1174
    %v1176 = vpop.f32.mrb[0].mxu0
    %1177 = vdwg.mxu0
    %v1182 = vunpack.c.l.b16 %v963
    %v1183 = vunpack.c.h.b16 %v963
    %v1184 = vunpack.c.l.b16 %v964
    %v1185 = vunpack.c.h.b16 %v964
    %v1186 = vunpack.c.l.b16 %v965
    %v1187 = vunpack.c.h.b16 %v965
    %v1188 = vunpack.c.l.b16 %v966
    %v1189 = vunpack.c.h.b16 %v966
    %v1190 = vpack.c.b16 %v1184, %v1182
    %v1191 = vpack.c.b16 %v1185, %v1183
    %v1192 = vpack.c.b16 %v1188, %v1186
    %v1193 = vpack.c.b16 %v1189, %v1187
    %v1214 = vunpack.c.l.b16 %v967
    %v1215 = vunpack.c.l.b16 %v968
    %v1216 = vunpack.c.l.b16 %v969
    %v1217 = vunpack.c.l.b16 %v970
    %v1218 = vunpack.c.l.b16 %v971
    %v1219 = vunpack.c.l.b16 %v972
    %v1220 = vunpack.c.l.b16 %v973
    %v1221 = vunpack.c.l.b16 %v974
    %v1222 = vunpack.c.l.b16 %v975
    %v1223 = vunpack.c.l.b16 %v976
    %v1224 = vunpack.c.l.b16 %v977
    %v1225 = vunpack.c.l.b16 %v978
    %v1226 = vunpack.c.l.b16 %v979
    %v1227 = vunpack.c.l.b16 %v980
    %v1228 = vunpack.c.l.b16 %v981
    %v1229 = vunpack.c.l.b16 %v982
    %v1230 = vunpack.c.l.b16 %v983
    %v1231 = vunpack.c.l.b16 %v984
    %v1232 = vpack.c.b16 %v1215, %v1214
    %v1233 = vpack.c.b16 %v1217, %v1216
    %v1234 = vpack.c.b16 %v1219, %v1218
    %v1235 = vpack.c.b16 %v1221, %v1220
    %v1236 = vpack.c.b16 %v1223, %v1222
    %v1237 = vpack.c.b16 %v1225, %v1224
    %v1238 = vpack.c.b16 %v1227, %v1226
    %v1239 = vpack.c.b16 %v1229, %v1228
    %v1240 = vpack.c.b16 %v1231, %v1230
    %v1251 = vsel %vm1122, %v1191, 0
    %v1254 = vsel %vm1122, %v1193, 0
    %1256 = vmatprep.subr.bf16.mxu0 0
    %1257 = vmatpush1.bf16.msra.mxu0 %v1232
    %1258 = vmatprep.subr.bf16.mxu0 0
    %1259 = vmatpush1.bf16.msra.mxu0 %v1233
    %1260 = vmatprep.subr.bf16.mxu0 0
    %1261 = vmatpush1.bf16.msra.mxu0 %v1234
    %1262 = vmatprep.subr.bf16.mxu0 0
    %1263 = vmatpush1.bf16.msra.mxu0 %v1235
    %1264 = vmatprep.subr.bf16.mxu0 0
    %1265 = vmatpush1.bf16.msra.mxu0 %v1236
    %1266 = vmatprep.subr.bf16.mxu0 0
    %1267 = vmatpush1.bf16.msra.mxu0 %v1237
    %1268 = vmatprep.subr.bf16.mxu0 0
    %1269 = vmatpush1.bf16.msra.mxu0 %v1238
    %1270 = vmatprep.subr.bf16.mxu0 0
    %1271 = vmatpush1.bf16.msra.mxu0 %v1239
    %1272 = vmatprep.subr.bf16.mxu0 0
    %1273 = vmatpush1.bf16.msra.mxu0 %v1240
    %1274 = vmatprep.subr.bf16.mxu0 0
    %1275 = vmatpush1.bf16.msra.mxu0 0
    %1276 = vmatprep.subr.bf16.mxu0 0
    %1277 = vmatpush1.bf16.msra.mxu0 0
    %1278 = vmatprep.subr.bf16.mxu0 0
    %1279 = vmatpush1.bf16.msra.mxu0 0
    %1280 = vmatprep.subr.bf16.mxu0 0
    %1281 = vmatpush1.bf16.msra.mxu0 0
    %1282 = vmatprep.subr.bf16.mxu0 0
    %1283 = vmatpush1.bf16.msra.mxu0 0
    %1284 = vmatprep.subr.bf16.mxu0 0
    %1285 = vmatpush1.bf16.msra.mxu0 0
    %1286 = vmatprep.subr.bf16.mxu0 0
    %1287 = vmatpush1.bf16.msra.mxu0 0
    %1288 = vmatprep.mubr.bf16.mxu0 %v1251
    %1289 = vmatmul.mubr.bf16.gmra.mrb[0].mxu0 %v1190
    %v1290 = vpop.f32.mrb[0].mxu0
    %v1291 = vadd.f32 %v1164, %v1290
    %v1292 = vpop.f32.mrb[0].mxu0
    %v1293 = vpop.f32.mrb[0].mxu0
    %v1294 = vadd.f32 %v1167, %v1293
    %v1295 = vpop.f32.mrb[0].mxu0
    %1296 = vmatprep.mubr.bf16.mxu0 %v1254
    %1297 = vmatmul.mubr.bf16.gmra.mrb[0].mxu0 %v1192
    %v1298 = vpop.f32.mrb[0].mxu0
    %v1299 = vadd.f32 %v1172, %v1298
    %v1300 = vpop.f32.mrb[0].mxu0
    %v1301 = vpop.f32.mrb[0].mxu0
    %v1302 = vadd.f32 %v1175, %v1301
    %v1303 = vpop.f32.mrb[0].mxu0
    %1304 = vdwg.mxu0
    %v1305 = vld [vmem:[#allocation2] sm:$0xee]
    %v1306 = vld [vmem:[#allocation2 + $0x18] sm:$0xee]
    %v1311 = vrot.slane %v1305, 5
    %v1312 = vrot.slane %v1311, 4
    %v1313 = vrot.slane %v964, 5
    %v1314 = vsel %vm566, %v1312, %v1313
    %v1315 = vrot.slane %v1313, 4
    %v1316 = vrot.slane %v985, 5
    %v1317 = vsel %vm566, %v1315, %v1316
    %v1318 = vrot.slane %v1306, 5
    %v1319 = vrot.slane %v1318, 4
    %v1320 = vrot.slane %v966, 5
    %v1321 = vsel %vm566, %v1319, %v1320
    %v1322 = vrot.slane %v1320, 4
    %v1323 = vrot.slane %v986, 5
    %v1324 = vsel %vm566, %v1322, %v1323
    %s1325 = scalar_lea.vmem [#allocation6], 144
    %v1326 = vld [vmem:[%s1325] sm:$0xf]
    %v1327 = vld [vmem:[%s1325 + $0x4] sm:$0xf]
    %v1328 = vld [vmem:[%s1325 + $0x8] sm:$0xf]
    %v1329 = vld [vmem:[%s1325 + $0xc] sm:$0xf]
    %v1330 = vld [vmem:[%s1325 + $0x10] sm:$0xf]
    %v1331 = vld [vmem:[%s1325 + $0x14] sm:$0xf]
    %v1332 = vld [vmem:[%s1325 + $0x18] sm:$0xf]
    %v1333 = vld [vmem:[%s1325 + $0x1c] sm:$0xf]
    %v1334 = vld [vmem:[%s1325 + $0x20] sm:$0xf]
    %v1335 = vld [vmem:[%s1325 + $0x24] sm:$0xf]
    %v1336 = vld [vmem:[%s1325 + $0x28] sm:$0xf]
    %v1337 = vld [vmem:[%s1325 + $0x2c] sm:$0xf]
    %v1338 = vld [vmem:[%s1325 + $0x30] sm:$0xf]
    %v1339 = vld [vmem:[%s1325 + $0x34] sm:$0xf]
    %v1340 = vld [vmem:[%s1325 + $0x38] sm:$0xf]
    %v1341 = vld [vmem:[%s1325 + $0x3c] sm:$0xf]
    %v1342 = vld [vmem:[%s1325 + $0x40] sm:$0xf]
    %v1343 = vld [vmem:[%s1325 + $0x44] sm:$0xf]
    %v1344 = vunpack.c.l.b16 %v1314
    %v1345 = vunpack.c.h.b16 %v1314
    %v1346 = vunpack.c.l.b16 %v1317
    %v1347 = vunpack.c.h.b16 %v1317
    %v1348 = vunpack.c.l.b16 %v1321
    %v1349 = vunpack.c.h.b16 %v1321
    %v1350 = vunpack.c.l.b16 %v1324
    %v1351 = vunpack.c.h.b16 %v1324
    %v1352 = vpack.c.b16 %v1346, %v1344
    %v1353 = vpack.c.b16 %v1347, %v1345
    %v1354 = vpack.c.b16 %v1350, %v1348
    %v1355 = vpack.c.b16 %v1351, %v1349
    %v1376 = vunpack.c.l.b16 %v1326
    %v1377 = vunpack.c.l.b16 %v1327
    %v1378 = vunpack.c.l.b16 %v1328
    %v1379 = vunpack.c.l.b16 %v1329
    %v1380 = vunpack.c.l.b16 %v1330
    %v1381 = vunpack.c.l.b16 %v1331
    %v1382 = vunpack.c.l.b16 %v1332
    %v1383 = vunpack.c.l.b16 %v1333
    %v1384 = vunpack.c.l.b16 %v1334
    %v1385 = vunpack.c.l.b16 %v1335
    %v1386 = vunpack.c.l.b16 %v1336
    %v1387 = vunpack.c.l.b16 %v1337
    %v1388 = vunpack.c.l.b16 %v1338
    %v1389 = vunpack.c.l.b16 %v1339
    %v1390 = vunpack.c.l.b16 %v1340
    %v1391 = vunpack.c.l.b16 %v1341
    %v1392 = vunpack.c.l.b16 %v1342
    %v1393 = vunpack.c.l.b16 %v1343
    %v1394 = vpack.c.b16 %v1377, %v1376
    %v1395 = vpack.c.b16 %v1379, %v1378
    %v1396 = vpack.c.b16 %v1381, %v1380
    %v1397 = vpack.c.b16 %v1383, %v1382
    %v1398 = vpack.c.b16 %v1385, %v1384
    %v1399 = vpack.c.b16 %v1387, %v1386
    %v1400 = vpack.c.b16 %v1389, %v1388
    %v1401 = vpack.c.b16 %v1391, %v1390
    %v1402 = vpack.c.b16 %v1393, %v1392
    %v1413 = vsel %vm1122, %v1353, 0
    %v1416 = vsel %vm1122, %v1355, 0
    %1418 = vmatprep.subr.bf16.mxu0 0
    %1419 = vmatpush1.bf16.msra.mxu0 %v1394
    %1420 = vmatprep.subr.bf16.mxu0 0
    %1421 = vmatpush1.bf16.msra.mxu0 %v1395
    %1422 = vmatprep.subr.bf16.mxu0 0
    %1423 = vmatpush1.bf16.msra.mxu0 %v1396
    %1424 = vmatprep.subr.bf16.mxu0 0
    %1425 = vmatpush1.bf16.msra.mxu0 %v1397
    %1426 = vmatprep.subr.bf16.mxu0 0
    %1427 = vmatpush1.bf16.msra.mxu0 %v1398
    %1428 = vmatprep.subr.bf16.mxu0 0
    %1429 = vmatpush1.bf16.msra.mxu0 %v1399
    %1430 = vmatprep.subr.bf16.mxu0 0
    %1431 = vmatpush1.bf16.msra.mxu0 %v1400
    %1432 = vmatprep.subr.bf16.mxu0 0
    %1433 = vmatpush1.bf16.msra.mxu0 %v1401
    %1434 = vmatprep.subr.bf16.mxu0 0
    %1435 = vmatpush1.bf16.msra.mxu0 %v1402
    %1436 = vmatprep.subr.bf16.mxu0 0
    %1437 = vmatpush1.bf16.msra.mxu0 0
    %1438 = vmatprep.subr.bf16.mxu0 0
    %1439 = vmatpush1.bf16.msra.mxu0 0
    %1440 = vmatprep.subr.bf16.mxu0 0
    %1441 = vmatpush1.bf16.msra.mxu0 0
    %1442 = vmatprep.subr.bf16.mxu0 0
    %1443 = vmatpush1.bf16.msra.mxu0 0
    %1444 = vmatprep.subr.bf16.mxu0 0
    %1445 = vmatpush1.bf16.msra.mxu0 0
    %1446 = vmatprep.subr.bf16.mxu0 0
    %1447 = vmatpush1.bf16.msra.mxu0 0
    %1448 = vmatprep.subr.bf16.mxu0 0
    %1449 = vmatpush1.bf16.msra.mxu0 0
    %1450 = vmatprep.mubr.bf16.mxu0 %v1413
    %1451 = vmatmul.mubr.bf16.gmra.mrb[0].mxu0 %v1352
    %v1452 = vpop.f32.mrb[0].mxu0
    %v1453 = vadd.f32 0.0, %v1452
    %v1454 = vpop.f32.mrb[0].mxu0
    %v1455 = vpop.f32.mrb[0].mxu0
    %v1456 = vadd.f32 0.0, %v1455
    %v1457 = vpop.f32.mrb[0].mxu0
    %1458 = vmatprep.mubr.bf16.mxu0 %v1416
    %1459 = vmatmul.mubr.bf16.gmra.mrb[0].mxu0 %v1354
    %v1460 = vpop.f32.mrb[0].mxu0
    %v1461 = vadd.f32 0.0, %v1460
    %v1462 = vpop.f32.mrb[0].mxu0
    %v1463 = vpop.f32.mrb[0].mxu0
    %v1464 = vadd.f32 0.0, %v1463
    %v1465 = vpop.f32.mrb[0].mxu0
    %1466 = vdwg.mxu0
    %v1467 = vadd.f32 %v1291, %v1453
    %v1468 = vadd.f32 %v1294, %v1456
    %v1469 = vadd.f32 %v1299, %v1461
    %v1470 = vadd.f32 %v1302, %v1464
    %v1471 = vld [vmem:[%s4] sm:$0x1]
    %v1472 = vlaneseq
    %v1473 = vshrl.u32 %v1472, 7
    %v1474 = vsub.s32 0, %v1473
    %v1475 = vrot.slane %v1471, %v1474
    %v1476 = vmul.f32 %v1467, %v1475
    %v1477 = vmul.f32 %v1468, %v1475
    %v1478 = vmul.f32 %v1469, %v1475
    %v1479 = vmul.f32 %v1470, %v1475
    %v1480 = vld [vmem:[%s4 + $0x1] sm:$0x1]
    %v1481 = vlaneseq
    %v1482 = vshrl.u32 %v1481, 7
    %v1483 = vsub.s32 0, %v1482
    %v1484 = vrot.slane %v1480, %v1483
    %v1485 = vadd.f32 %v1476, %v1484
    %v1486 = vadd.f32 %v1477, %v1484
    %v1487 = vadd.f32 %v1478, %v1484
    %v1488 = vadd.f32 %v1479, %v1484
    %v1489 = vadd.f32 %v1485, %v1486
    %v1490 = vrot.slane %v1489, 4
    %v1491 = vadd.f32 %v1489, %v1490
    %v1492 = vrot.slane %v1491, 2
    %v1493 = vadd.f32 %v1491, %v1492
    %v1494 = vrot.slane %v1493, 1
    %v1495 = vadd.f32 %v1493, %v1494
    %v1496 = vadd.f32 %v1487, %v1488
    %v1497 = vrot.slane %v1496, 4
    %v1498 = vadd.f32 %v1496, %v1497
    %v1499 = vrot.slane %v1498, 2
    %v1500 = vadd.f32 %v1498, %v1499
    %v1501 = vrot.slane %v1500, 1
    %v1502 = vadd.f32 %v1500, %v1501
    %v1503 = vld [vmem:[%s5] sm:$0xff]
    %v1504 = vld [vmem:[%s5 + $0x8] sm:$0xff]
    %v1505 = vld [vmem:[%s5 + $0x10] sm:$0xff]
    %v1506 = vld [vmem:[%s5 + $0x18] sm:$0xff]
    %v1507 = vld [vmem:[%s5 + $0x20] sm:$0xff]
    %v1508 = vld [vmem:[%s5 + $0x28] sm:$0xff]
    %v1509 = vld [vmem:[%s5 + $0x30] sm:$0xff]
    %v1510 = vld [vmem:[%s5 + $0x38] sm:$0xff]
    %v1511 = vld [vmem:[%s5 + $0x40] sm:$0xff]
    %v1512 = vld [vmem:[%s5 + $0x48] sm:$0xff]
    %v1513 = vld [vmem:[%s5 + $0x50] sm:$0xff]
    %v1514 = vld [vmem:[%s5 + $0x58] sm:$0xff]
    %v1515 = vld [vmem:[%s5 + $0x60] sm:$0xff]
    %v1516 = vld [vmem:[%s5 + $0x68] sm:$0xff]
    %v1517 = vld [vmem:[%s5 + $0x70] sm:$0xff]
    %v1518 = vld [vmem:[%s5 + $0x78] sm:$0xff]
    %vm1521 = vcmask 1041409
    %v1522 = vsel %vm1521, %v1502, %v1495
    %1524 = vmatprep.subr.mxu0 0.0
    %1525 = vmatpush1.msra.mxu0 %v1503
    %1526 = vmatprep.subr.mxu0 0.0
    %1527 = vmatpush1.msra.mxu0 %v1504
    %1528 = vmatprep.subr.mxu0 0.0
    %1529 = vmatpush1.msra.mxu0 %v1505
    %1530 = vmatprep.subr.mxu0 0.0
    %1531 = vmatpush1.msra.mxu0 %v1506
    %1532 = vmatprep.subr.mxu0 0.0
    %1533 = vmatpush1.msra.mxu0 %v1507
    %1534 = vmatprep.subr.mxu0 0.0
    %1535 = vmatpush1.msra.mxu0 %v1508
    %1536 = vmatprep.subr.mxu0 0.0
    %1537 = vmatpush1.msra.mxu0 %v1509
    %1538 = vmatprep.subr.mxu0 0.0
    %1539 = vmatpush1.msra.mxu0 %v1510
    %1540 = vmatprep.subr.mxu0 0.0
    %1541 = vmatpush1.msra.mxu0 %v1511
    %1542 = vmatprep.subr.mxu0 0.0
    %1543 = vmatpush1.msra.mxu0 %v1512
    %1544 = vmatprep.subr.mxu0 0.0
    %1545 = vmatpush1.msra.mxu0 %v1513
    %1546 = vmatprep.subr.mxu0 0.0
    %1547 = vmatpush1.msra.mxu0 %v1514
    %1548 = vmatprep.subr.mxu0 0.0
    %1549 = vmatpush1.msra.mxu0 %v1515
    %1550 = vmatprep.subr.mxu0 0.0
    %1551 = vmatpush1.msra.mxu0 %v1516
    %1552 = vmatprep.subr.mxu0 0.0
    %1553 = vmatpush1.msra.mxu0 %v1517
    %1554 = vmatprep.subr.mxu0 0.0
    %1555 = vmatpush1.msra.mxu0 %v1518
    %1556 = vmatprep.subr.mxu0 0.0
    %1557 = vmatpush1.msra.mxu0 0.0
    %1558 = vmatprep.subr.mxu0 0.0
    %1559 = vmatpush1.msra.mxu0 0.0
    %1560 = vmatprep.subr.mxu0 0.0
    %1561 = vmatpush1.msra.mxu0 0.0
    %1562 = vmatprep.subr.mxu0 0.0
    %1563 = vmatpush1.msra.mxu0 0.0
    %1564 = vmatprep.subr.mxu0 0.0
    %1565 = vmatpush1.msra.mxu0 0.0
    %1566 = vmatprep.subr.mxu0 0.0
    %1567 = vmatpush1.msra.mxu0 0.0
    %1568 = vmatprep.subr.mxu0 0.0
    %1569 = vmatpush1.msra.mxu0 0.0
    %1570 = vmatprep.subr.mxu0 0.0
    %1571 = vmatpush1.msra.mxu0 0.0
    %1572 = vmatprep.subr.mxu0 0.0
    %1573 = vmatpush1.msra.mxu0 0.0
    %1574 = vmatprep.subr.mxu0 0.0
    %1575 = vmatpush1.msra.mxu0 0.0
    %1576 = vmatprep.subr.mxu0 0.0
    %1577 = vmatpush1.msra.mxu0 0.0
    %1578 = vmatprep.subr.mxu0 0.0
    %1579 = vmatpush1.msra.mxu0 0.0
    %1580 = vmatprep.subr.mxu0 0.0
    %1581 = vmatpush1.msra.mxu0 0.0
    %1582 = vmatprep.subr.mxu0 0.0
    %1583 = vmatpush1.msra.mxu0 0.0
    %1584 = vmatprep.subr.mxu0 0.0
    %1585 = vmatpush1.msra.mxu0 0.0
    %1586 = vmatprep.subr.mxu0 0.0
    %1587 = vmatpush1.msra.mxu0 0.0
    %1588 = vmatprep.mubr.f32.mxu0 0.0
    %1589 = vmatmul.mubr.f32.gmra.mrb[0].mxu0 %v1522
    %v1590 = vpop.f32.mrb[0].mxu0
    %v1591 = vadd.f32 0.0, %v1590
    %v1592 = vpop.f32.mrb[0].mxu0
    %1593 = vdwg.mxu0
    %v1594 = vld [vmem:[%s7] sm:$0xff]
    %v1595 = vld [vmem:[%s8] sm:$0x1]
    %v1597 = vlaneseq
    %v1598 = vshrl.u32 %v1597, 7
    %v1599 = vsub.s32 0, %v1598
    %v1600 = vrot.slane %v1595, %v1599
    %vm1602 = vcmask 64512
    %v1604 = vsel %vm1602, %v1591, 0
    %1606 = vmatprep.subr.mxu0 0.0
    %1607 = vmatpush1.msra.mxu0 %v1594
    %1608 = vmatprep.subr.mxu0 0.0
    %1609 = vmatpush1.msra.mxu0 0.0
    %1610 = vmatprep.subr.mxu0 0.0
    %1611 = vmatpush1.msra.mxu0 0.0
    %1612 = vmatprep.subr.mxu0 0.0
    %1613 = vmatpush1.msra.mxu0 0.0
    %1614 = vmatprep.subr.mxu0 0.0
    %1615 = vmatpush1.msra.mxu0 0.0
    %1616 = vmatprep.subr.mxu0 0.0
    %1617 = vmatpush1.msra.mxu0 0.0
    %1618 = vmatprep.subr.mxu0 0.0
    %1619 = vmatpush1.msra.mxu0 0.0
    %1620 = vmatprep.subr.mxu0 0.0
    %1621 = vmatpush1.msra.mxu0 0.0
    %1622 = vmatprep.subr.mxu0 0.0
    %1623 = vmatpush1.msra.mxu0 0.0
    %1624 = vmatprep.subr.mxu0 0.0
    %1625 = vmatpush1.msra.mxu0 0.0
    %1626 = vmatprep.subr.mxu0 0.0
    %1627 = vmatpush1.msra.mxu0 0.0
    %1628 = vmatprep.subr.mxu0 0.0
    %1629 = vmatpush1.msra.mxu0 0.0
    %1630 = vmatprep.subr.mxu0 0.0
    %1631 = vmatpush1.msra.mxu0 0.0
    %1632 = vmatprep.subr.mxu0 0.0
    %1633 = vmatpush1.msra.mxu0 0.0
    %1634 = vmatprep.subr.mxu0 0.0
    %1635 = vmatpush1.msra.mxu0 0.0
    %1636 = vmatprep.subr.mxu0 0.0
    %1637 = vmatpush1.msra.mxu0 0.0
    %1638 = vmatprep.subr.mxu0 0.0
    %1639 = vmatpush1.msra.mxu0 0.0
    %1640 = vmatprep.subr.mxu0 0.0
    %1641 = vmatpush1.msra.mxu0 0.0
    %1642 = vmatprep.subr.mxu0 0.0
    %1643 = vmatpush1.msra.mxu0 0.0
    %1644 = vmatprep.subr.mxu0 0.0
    %1645 = vmatpush1.msra.mxu0 0.0
    %1646 = vmatprep.subr.mxu0 0.0
    %1647 = vmatpush1.msra.mxu0 0.0
    %1648 = vmatprep.subr.mxu0 0.0
    %1649 = vmatpush1.msra.mxu0 0.0
    %1650 = vmatprep.subr.mxu0 0.0
    %1651 = vmatpush1.msra.mxu0 0.0
    %1652 = vmatprep.subr.mxu0 0.0
    %1653 = vmatpush1.msra.mxu0 0.0
    %1654 = vmatprep.subr.mxu0 0.0
    %1655 = vmatpush1.msra.mxu0 0.0
    %1656 = vmatprep.subr.mxu0 0.0
    %1657 = vmatpush1.msra.mxu0 0.0
    %1658 = vmatprep.subr.mxu0 0.0
    %1659 = vmatpush1.msra.mxu0 0.0
    %1660 = vmatprep.subr.mxu0 0.0
    %1661 = vmatpush1.msra.mxu0 0.0
    %1662 = vmatprep.subr.mxu0 0.0
    %1663 = vmatpush1.msra.mxu0 0.0
    %1664 = vmatprep.subr.mxu0 0.0
    %1665 = vmatpush1.msra.mxu0 0.0
    %1666 = vmatprep.subr.mxu0 0.0
    %1667 = vmatpush1.msra.mxu0 0.0
    %1668 = vmatprep.subr.mxu0 0.0
    %1669 = vmatpush1.msra.mxu0 0.0
    %1670 = vmatprep.mubr.f32.mxu0 0.0
    %1671 = vmatmul.mubr.f32.gmra.mrb[0].mxu0 %v1604
    %v1672 = vpop.f32.mrb[0].mxu0
    %v1673 = vadd.f32 %v1600, %v1672
    %v1674 = vpop.f32.mrb[0].mxu0
    %1675 = vdwg.mxu0
    %v1676 = vmax.f32 %v1673, 0.0
    %v1677 = vld [vmem:[%s9] sm:$0xf]
    %v1678 = vld [vmem:[%s10] sm:$0x1]
    %v1680 = vlaneseq
    %v1681 = vshrl.u32 %v1680, 7
    %v1682 = vsub.s32 0, %v1681
    %v1683 = vrot.slane %v1678, %v1682
    %vm1685 = vcmask 31744
    %v1687 = vsel %vm1685, %v1676, 0
    %v1690 = vsel %vm247, %v1677, 0
    %1692 = vmatprep.subr.mxu0 0.0
    %1693 = vmatpush1.msra.mxu0 %v1690
    %1694 = vmatprep.subr.mxu0 0.0
    %1695 = vmatpush1.msra.mxu0 0.0
    %1696 = vmatprep.subr.mxu0 0.0
    %1697 = vmatpush1.msra.mxu0 0.0
    %1698 = vmatprep.subr.mxu0 0.0
    %1699 = vmatpush1.msra.mxu0 0.0
    %1700 = vmatprep.subr.mxu0 0.0
    %1701 = vmatpush1.msra.mxu0 0.0
    %1702 = vmatprep.subr.mxu0 0.0
    %1703 = vmatpush1.msra.mxu0 0.0
    %1704 = vmatprep.subr.mxu0 0.0
    %1705 = vmatpush1.msra.mxu0 0.0
    %1706 = vmatprep.subr.mxu0 0.0
    %1707 = vmatpush1.msra.mxu0 0.0
    %1708 = vmatprep.subr.mxu0 0.0
    %1709 = vmatpush1.msra.mxu0 0.0
    %1710 = vmatprep.subr.mxu0 0.0
    %1711 = vmatpush1.msra.mxu0 0.0
    %1712 = vmatprep.subr.mxu0 0.0
    %1713 = vmatpush1.msra.mxu0 0.0
    %1714 = vmatprep.subr.mxu0 0.0
    %1715 = vmatpush1.msra.mxu0 0.0
    %1716 = vmatprep.subr.mxu0 0.0
    %1717 = vmatpush1.msra.mxu0 0.0
    %1718 = vmatprep.subr.mxu0 0.0
    %1719 = vmatpush1.msra.mxu0 0.0
    %1720 = vmatprep.subr.mxu0 0.0
    %1721 = vmatpush1.msra.mxu0 0.0
    %1722 = vmatprep.subr.mxu0 0.0
    %1723 = vmatpush1.msra.mxu0 0.0
    %1724 = vmatprep.subr.mxu0 0.0
    %1725 = vmatpush1.msra.mxu0 0.0
    %1726 = vmatprep.subr.mxu0 0.0
    %1727 = vmatpush1.msra.mxu0 0.0
    %1728 = vmatprep.subr.mxu0 0.0
    %1729 = vmatpush1.msra.mxu0 0.0
    %1730 = vmatprep.subr.mxu0 0.0
    %1731 = vmatpush1.msra.mxu0 0.0
    %1732 = vmatprep.subr.mxu0 0.0
    %1733 = vmatpush1.msra.mxu0 0.0
    %1734 = vmatprep.subr.mxu0 0.0
    %1735 = vmatpush1.msra.mxu0 0.0
    %1736 = vmatprep.subr.mxu0 0.0
    %1737 = vmatpush1.msra.mxu0 0.0
    %1738 = vmatprep.subr.mxu0 0.0
    %1739 = vmatpush1.msra.mxu0 0.0
    %1740 = vmatprep.subr.mxu0 0.0
    %1741 = vmatpush1.msra.mxu0 0.0
    %1742 = vmatprep.subr.mxu0 0.0
    %1743 = vmatpush1.msra.mxu0 0.0
    %1744 = vmatprep.subr.mxu0 0.0
    %1745 = vmatpush1.msra.mxu0 0.0
    %1746 = vmatprep.subr.mxu0 0.0
    %1747 = vmatpush1.msra.mxu0 0.0
    %1748 = vmatprep.subr.mxu0 0.0
    %1749 = vmatpush1.msra.mxu0 0.0
    %1750 = vmatprep.subr.mxu0 0.0
    %1751 = vmatpush1.msra.mxu0 0.0
    %1752 = vmatprep.subr.mxu0 0.0
    %1753 = vmatpush1.msra.mxu0 0.0
    %1754 = vmatprep.subr.mxu0 0.0
    %1755 = vmatpush1.msra.mxu0 0.0
    %1756 = vmatprep.mubr.f32.mxu0 0.0
    %1757 = vmatmul.mubr.f32.gmra.mrb[0].mxu0 %v1687
    %v1758 = vpop.f32.mrb[0].mxu0
    %v1759 = vadd.f32 %v1683, %v1758
    %v1760 = vpop.f32.mrb[0].mxu0
    %1761 = vdwg.mxu0
    %v1762 = vxor.u32 %v1759, 2147483648
    %v1763 = vmul.f32 %v1762, 1.442695
    %v1764 = vpow.pop %v1763
    %v1765 = vadd.f32 %v1764, 1.0
    %v1766 = vrcp.pop %v1765
    %v1767 = vmul.f32 1.0, %v1766
    %v1768 = vld [vmem:[%s6] sm:$0xff]
    %v1770 = vsel %vm1602, %v1767, 0
    %1772 = vmatprep.subr.mxu0 0.0
    %1773 = vmatpush1.msra.mxu0 %v1768
    %1774 = vmatprep.subr.mxu0 0.0
    %1775 = vmatpush1.msra.mxu0 0.0
    %1776 = vmatprep.subr.mxu0 0.0
    %1777 = vmatpush1.msra.mxu0 0.0
    %1778 = vmatprep.subr.mxu0 0.0
    %1779 = vmatpush1.msra.mxu0 0.0
    %1780 = vmatprep.subr.mxu0 0.0
    %1781 = vmatpush1.msra.mxu0 0.0
    %1782 = vmatprep.subr.mxu0 0.0
    %1783 = vmatpush1.msra.mxu0 0.0
    %1784 = vmatprep.subr.mxu0 0.0
    %1785 = vmatpush1.msra.mxu0 0.0
    %1786 = vmatprep.subr.mxu0 0.0
    %1787 = vmatpush1.msra.mxu0 0.0
    %1788 = vmatprep.subr.mxu0 0.0
    %1789 = vmatpush1.msra.mxu0 0.0
    %1790 = vmatprep.subr.mxu0 0.0
    %1791 = vmatpush1.msra.mxu0 0.0
    %1792 = vmatprep.subr.mxu0 0.0
    %1793 = vmatpush1.msra.mxu0 0.0
    %1794 = vmatprep.subr.mxu0 0.0
    %1795 = vmatpush1.msra.mxu0 0.0
    %1796 = vmatprep.subr.mxu0 0.0
    %1797 = vmatpush1.msra.mxu0 0.0
    %1798 = vmatprep.subr.mxu0 0.0
    %1799 = vmatpush1.msra.mxu0 0.0
    %1800 = vmatprep.subr.mxu0 0.0
    %1801 = vmatpush1.msra.mxu0 0.0
    %1802 = vmatprep.subr.mxu0 0.0
    %1803 = vmatpush1.msra.mxu0 0.0
    %1804 = vmatprep.subr.mxu0 0.0
    %1805 = vmatpush1.msra.mxu0 0.0
    %1806 = vmatprep.subr.mxu0 0.0
    %1807 = vmatpush1.msra.mxu0 0.0
    %1808 = vmatprep.subr.mxu0 0.0
    %1809 = vmatpush1.msra.mxu0 0.0
    %1810 = vmatprep.subr.mxu0 0.0
    %1811 = vmatpush1.msra.mxu0 0.0
    %1812 = vmatprep.subr.mxu0 0.0
    %1813 = vmatpush1.msra.mxu0 0.0
    %1814 = vmatprep.subr.mxu0 0.0
    %1815 = vmatpush1.msra.mxu0 0.0
    %1816 = vmatprep.subr.mxu0 0.0
    %1817 = vmatpush1.msra.mxu0 0.0
    %1818 = vmatprep.subr.mxu0 0.0
    %1819 = vmatpush1.msra.mxu0 0.0
    %1820 = vmatprep.subr.mxu0 0.0
    %1821 = vmatpush1.msra.mxu0 0.0
    %1822 = vmatprep.subr.mxu0 0.0
    %1823 = vmatpush1.msra.mxu0 0.0
    %1824 = vmatprep.subr.mxu0 0.0
    %1825 = vmatpush1.msra.mxu0 0.0
    %1826 = vmatprep.subr.mxu0 0.0
    %1827 = vmatpush1.msra.mxu0 0.0
    %1828 = vmatprep.subr.mxu0 0.0
    %1829 = vmatpush1.msra.mxu0 0.0
    %1830 = vmatprep.subr.mxu0 0.0
    %1831 = vmatpush1.msra.mxu0 0.0
    %1832 = vmatprep.subr.mxu0 0.0
    %1833 = vmatpush1.msra.mxu0 0.0
    %1834 = vmatprep.subr.mxu0 0.0
    %1835 = vmatpush1.msra.mxu0 0.0
    %1836 = vmatprep.mubr.f32.mxu0 0.0
    %1837 = vmatmul.mubr.f32.gmra.mrb[0].mxu0 %v1770
    %v1838 = vpop.f32.mrb[0].mxu0
    %v1839 = vadd.f32 0.0, %v1838
    %v1840 = vpop.f32.mrb[0].mxu0
    %1841 = vdwg.mxu0
    %v1844 = vunpack.c.l.s4 1966171168
    %v1845 = vunpack.c.0.s8 %v1844
    %v1846 = vlaneseq
    %v1847 = vshrl.u32 %v1846, 7
    %v1848 = vsub.s32 %v1845, %v1847
    %v1849 = vrot.slane %v1839, %v1848
    %v1850 = vcombine.high %v1849, %v1849
    %v1852 = vunpack.c.l.s4 1966171168
    %v1853 = vunpack.c.0.s8 %v1852
    %v1854 = vlaneseq
    %v1855 = vshrl.u32 %v1854, 7
    %v1856 = vsub.s32 %v1853, %v1855
    %v1857 = vrot.slane %v1849, %v1856
    %v1859 = vunpack.c.l.s4 1966171168
    %v1860 = vunpack.c.0.s8 %v1859
    %v1861 = vlaneseq
    %v1862 = vshrl.u32 %v1861, 7
    %v1863 = vsub.s32 %v1860, %v1862
    %v1864 = vrot.slane %v1850, %v1863
    %v1865 = vlaneseq
    %v1866 = vshrl.u32 %v1865, 7
    %v1867 = vsub.s32 0, %v1866
    %v1868 = vrot.slane %v1857, %v1867
    %v1869 = vlaneseq
    %v1870 = vshrl.u32 %v1869, 7
    %v1871 = vsub.s32 0, %v1870
    %v1872 = vrot.slane %v1864, %v1871
    %v1875 = vmul.f32 %v1485, %v1868
    %v1876 = vmul.f32 %v1486, %v1868
    %v1877 = vmul.f32 %v1487, %v1872
    %v1878 = vmul.f32 %v1488, %v1872
    %v1879 = vadd.f32 %v1875, %v795
    %v1880 = vadd.f32 %v1876, %v798
    %v1881 = vadd.f32 %v1877, %v801
    %v1882 = vadd.f32 %v1878, %v804
    %v1883 = vmax.f32 %v1879, 0.0
    %v1884 = vmax.f32 %v1880, 0.0
    %v1885 = vmax.f32 %v1881, 0.0
    %v1886 = vmax.f32 %v1882, 0.0
    %1887 = vst [vmem:[#allocation8] sm:$0xff] %v1883
    %1888 = vst [vmem:[#allocation8 + $0x8] sm:$0xff] %v1884
    %1889 = vst [vmem:[#allocation8 + $0x10] sm:$0xff] %v1885
    %1890 = vst [vmem:[#allocation8 + $0x18] sm:$0xff] %v1886
    // Predicated region
    $region54: #{tpu_custom_call.1} parent=1 // pred_check
      _
    $region55: #{tpu_custom_call.1} parent=1 // pred_check_branch
      %1892 = sbr.rel (0) target = $region57
    $region56: #{tpu_custom_call.1} parent=1 // pred_region
      %s1894 = ssub.s32 512, 512
      %1895 = vsyncadd [#allocation5], %s1894
      %s1896 = sshll.u32 [#allocation8], 4
      %s1897 = int_to_ptr.vmem [resolvable:$true] %s1896
      %1902 = dma.vmem_to_hbm [thread:$0]  %s1897, 512, %s11, [#allocation5], 128, 128, 8
    $region57: #{tpu_custom_call.1} parent=1 // pred_fallthru
      _
    // Predicated region
    $region58: #{tpu_custom_call.1} parent=1 // pred_check
      _
    $region59: #{tpu_custom_call.1} parent=1 // pred_check_branch
      %1904 = sbr.rel (0) target = $region61
    $region60: #{tpu_custom_call.1} parent=1 // pred_region
      %1905 = dma.done [#allocation5], 512
    $region61: #{tpu_custom_call.1} parent=1 // pred_fallthru
      _
    %1906 = vsyncpa [#allocation4], 1
    %1907 = vsyncpa [#allocation7], 1
    %1908 = vsyncpa [#allocation5], 1

</llo_original>
